<compile_context>
chip_gen: v6e
topology: v6e:2x2x1
jax: 0.10.0
libtpu: 0.0.40
codegen_flags: <defaults>
</compile_context>

<pallas_src>
import jax
import jax.numpy as jnp
from jax.experimental import pallas as pl
from jax.experimental.pallas import tpu as pltpu

_LANE = 128          # sentence / side axes are padded to a multiple of the lane width
_NEG_INF = -1e18     # same fill value as prob_normalize in the PyTorch code


# ----------------------------------------------------------------------------
# Kernel 1: single-layer LSTM, whole batch per invocation
# ----------------------------------------------------------------------------

def _make_lstm_kernel(T1, B, H, unroll):
    def kernel(x_ref, wih_ref, whh_ref, b_ref, h0_ref, c0_ref, q_ref, gx_ref):
        # x_ref : (T1*B, Din) bf16, time-major flattened (row = t*B + b)
        # wih   : (Din, 4H) bf16, whh: (H, 4H) bf16, b: (1, 4H) f32
        # h0/c0 : (1, H) f32 ;  q_ref: (T1, B, H) bf16 out ; gx: (T1*B, 4H) f32 scratch
        gx_ref[...] = (jnp.dot(x_ref[...], wih_ref[...],
                               preferred_element_type=jnp.float32) + b_ref[...])
        h0 = jnp.broadcast_to(h0_ref[...], (B, H))
        c0 = jnp.broadcast_to(c0_ref[...], (B, H))

        def step(t, carry):
            h, c = carry                                            # (B, H) f32
            # one wide, lane-dense recurrence matmul per step: (B,H)@(H,4H)
            g = gx_ref[pl.ds(t * B, B), :] + jnp.dot(
                h.astype(jnp.bfloat16), whh_ref[...],
                preferred_element_type=jnp.float32)                 # (B, 4H)
            sig = jax.nn.sigmoid(g)                                 # full-width EUP
            tnh = jnp.tanh(g)
            i = sig[:, 0:H]
            f = sig[:, H:2 * H]
            gg = tnh[:, 2 * H:3 * H]
            o = sig[:, 3 * H:4 * H]
            c_new = f * c + i * gg
            h_new = o * jnp.tanh(c_new)
            q_ref[t] = h_new.astype(q_ref.dtype)                    # time-major store
            return h_new, c_new

        jax.lax.fori_loop(0, T1, step, (h0, c0), unroll=unroll)
    return kernel


def pallas_lstm(x_flat, wih, whh, bias, h0, c0, *, T1, B, H):
    """x_flat: (T1*B, Din) bf16 time-major -> query (T1, B, H) bf16."""
    Din = x_flat.shape[1]
    G = 4 * H
    unroll = True if T1 <= 32 else 8           # cap unroll for long decode lengths
    return pl.pallas_call(
        _make_lstm_kernel(T1, B, H, unroll),
        out_shape=jax.ShapeDtypeStruct((T1, B, H), jnp.bfloat16),
        grid=(1,),
        in_specs=[
            pl.BlockSpec((T1 * B, Din), lambda i: (0, 0)),
            pl.BlockSpec((Din, G), lambda i: (0, 0)),
            pl.BlockSpec((H, G), lambda i: (0, 0)),
            pl.BlockSpec((1, G), lambda i: (0, 0)),
            pl.BlockSpec((1, H), lambda i: (0, 0)),
            pl.BlockSpec((1, H), lambda i: (0, 0)),
        ],
        out_specs=pl.BlockSpec((T1, B, H), lambda i: (0, 0, 0)),
        scratch_shapes=[pltpu.VMEM((T1 * B, G), jnp.float32)],
        compiler_params=pltpu.CompilerParams(dimension_semantics=("arbitrary",)),
    )(x_flat, wih, whh, bias, h0, c0)


# ----------------------------------------------------------------------------
# Kernel 2: fused hop-context + side-context + side-aware score, one batch / step
# ----------------------------------------------------------------------------

def _masked_ctx(mem_ref, wm_ref, q, wq_ref, v, size):
    """Masked softmax attention context over the projected memory.

    mem_ref: (L, D) bf16 ref, wm_ref: (D, H) bf16 ref, q: (T1, H) value,
    wq_ref: (H, H) bf16 ref, v: (1, H) f32 value, size: scalar valid length.
    Returns (T1, H) f32 context.
    NOTE: if size == 0 the result is a uniform average over padding (reference
    behavior is undefined there); guard upstream if 0-length inputs can occur.
    """
    L = mem_ref.shape[0]
    H = wq_ref.shape[1]
    T1 = q.shape[0]
    nc = min(L, _LANE)                         # L is a multiple of nc by construction
    qp = jnp.dot(q.astype(jnp.bfloat16), wq_ref[...],
                 preferred_element_type=jnp.float32)                # (T1, H)
    m = jnp.full((T1, 1), -1e30, jnp.float32)
    l = jnp.zeros((T1, 1), jnp.float32)
    acc = jnp.zeros((T1, H), jnp.float32)
    # Static chunk loop (typically 1-4 chunks); per-chunk projection keeps live
    # VMEM ~O(nc) instead of O(L).  TODO(synk): switch to lax.fori_loop for very
    # long documents.
    for c in range(L // nc):
        feat_c = jnp.dot(mem_ref[c * nc:(c + 1) * nc, :], wm_ref[...],
                         preferred_element_type=jnp.float32)        # (nc, H)
        s = jnp.tanh(feat_c[None, :, :] + qp[:, None, :])           # (T1, nc, H)
        sc = jnp.sum(s * v[None, :, :], axis=-1)                    # (T1, nc)
        col = jax.lax.broadcasted_iota(jnp.int32, (1, nc), 1) + c * nc
        sc = jnp.where(col < size, sc, jnp.float32(_NEG_INF))
        m_new = jnp.maximum(m, jnp.max(sc, axis=-1, keepdims=True))
        alpha = jnp.exp(m - m_new)
        p = jnp.exp(sc - m_new)
        l = alpha * l + jnp.sum(p, axis=-1, keepdims=True)
        acc = alpha * acc + jnp.dot(p.astype(jnp.bfloat16),
                                    feat_c.astype(jnp.bfloat16),
                                    preferred_element_type=jnp.float32)
        m = m_new
    return acc / l                              # exact divide (parity with torch)


def _pointer_attn_kernel(msz_ref, ssz_ref,
                         mem_ref, side_ref, q_ref,
                         hop_wm_ref, hop_wq_ref, hop_v_ref,
                         side_wm_ref, side_wq_ref, side_v_ref,
                         attn_wm_ref, attn_wq_ref, attn_ws_ref, attn_v_ref,
                         out_ref):
    b = pl.program_id(0)
    Np = mem_ref.shape[0]
    nc = min(Np, _LANE)

    # n_hop == 1 glimpse over the sentence memory (masked by mem_sizes + 1)
    q1 = _masked_ctx(mem_ref, hop_wm_ref, q_ref[...], hop_wq_ref,
                     hop_v_ref[...], msz_ref[b])                    # (T1, H)
    # side-attention context (masked by side_sizes)
    side_e = _masked_ctx(side_ref, side_wm_ref, q1, side_wq_ref,
                         side_v_ref[...], ssz_ref[b])               # (T1, H)

    # final unnormalized side-aware scores over all (padded) sentence slots
    qf = (jnp.dot(q1.astype(jnp.bfloat16), attn_wq_ref[...],
                  preferred_element_type=jnp.float32)
          + jnp.dot(side_e.astype(jnp.bfloat16), attn_ws_ref[...],
                    preferred_element_type=jnp.float32))            # (T1, H)
    v = attn_v_ref[...]
    for c in range(Np // nc):
        feat_c = jnp.dot(mem_ref[c * nc:(c + 1) * nc, :], attn_wm_ref[...],
                         preferred_element_type=jnp.float32)        # (nc, H)
        s = jnp.tanh(feat_c[None, :, :] + qf[:, None, :])           # (T1, nc, H)
        # lane-dense (128-aligned) store slice
        out_ref[:, c * nc:(c + 1) * nc] = jnp.sum(s * v[None, :, :], axis=-1)


def pallas_pointer_attention(mem_sizes1, side_sizes, attn_mem_p, side_mem_p, query,
                             hop_wm, hop_wq, hop_v, side_wm, side_wq, side_v,
                             attn_wm, attn_wq, attn_ws, attn_v):
    B, Np, Din = attn_mem_p.shape
    Mp, SideD = side_mem_p.shape[1], side_mem_p.shape[2]
    T1, H = query.shape[1], query.shape[2]
    return pl.pallas_call(
        _pointer_attn_kernel,
        out_shape=jax.ShapeDtypeStruct((B, T1, Np), jnp.float32),
        grid_spec=pltpu.PrefetchScalarGridSpec(
            num_scalar_prefetch=2,
            grid=(B,),
            in_specs=[
                pl.BlockSpec((None, Np, Din), lambda b, m, s: (b, 0, 0)),
                pl.BlockSpec((None, Mp, SideD), lambda b, m, s: (b, 0, 0)),
                pl.BlockSpec((None, T1, H), lambda b, m, s: (b, 0, 0)),
                pl.BlockSpec((Din, H), lambda b, m, s: (0, 0)),
                pl.BlockSpec((H, H), lambda b, m, s: (0, 0)),
                pl.BlockSpec((1, H), lambda b, m, s: (0, 0)),
                pl.BlockSpec((SideD, H), lambda b, m, s: (0, 0)),
                pl.BlockSpec((H, H), lambda b, m, s: (0, 0)),
                pl.BlockSpec((1, H), lambda b, m, s: (0, 0)),
                pl.BlockSpec((Din, H), lambda b, m, s: (0, 0)),
                pl.BlockSpec((H, H), lambda b, m, s: (0, 0)),
                pl.BlockSpec((H, H), lambda b, m, s: (0, 0)),
                pl.BlockSpec((1, H), lambda b, m, s: (0, 0)),
            ],
            out_specs=pl.BlockSpec((None, T1, Np), lambda b, m, s: (b, 0, 0)),
        ),
        compiler_params=pltpu.CompilerParams(dimension_semantics=("parallel",)),
    )(mem_sizes1, side_sizes, attn_mem_p, side_mem_p, query,
      hop_wm, hop_wq, hop_v, side_wm, side_wq, side_v,
      attn_wm, attn_wq, attn_ws, attn_v)


# ----------------------------------------------------------------------------
# Forward pass (thin XLA glue: padding, stop-slot insertion, casts, final slice)
# ----------------------------------------------------------------------------

def lstm_pointer_net_forward(params, attn_mem, mem_sizes, lstm_in,
                             side_mem, side_sizes):
    B, N, Din = attn_mem.shape
    M, SideD = side_mem.shape[1], side_mem.shape[2]
    H = params["attn_wq"].shape[0]
    T1 = lstm_in.shape[1] + 1

    Np = pl.cdiv(N + 1, _LANE) * _LANE          # padded sentence axis (lane-dense)
    Mp = pl.cdiv(M, _LANE) * _LANE

    # stop slot: pad with zeros, then add the stop vector at position mem_sizes[i]
    attn_mem_p = jnp.zeros((B, Np, Din), jnp.float32).at[:, :N, :].set(
        attn_mem.astype(jnp.float32))
    one_hot = (jnp.arange(Np)[None, :] == mem_sizes[:, None]).astype(jnp.float32)
    attn_mem_p = (attn_mem_p
                  + one_hot[:, :, None] * params["stop"][None, None, :]
                  ).astype(jnp.bfloat16)
    mem_sizes1 = (mem_sizes + 1).astype(jnp.int32)

    side_mem_p = jnp.zeros((B, Mp, SideD), jnp.float32).at[:, :M, :].set(
        side_mem.astype(jnp.float32)).astype(jnp.bfloat16)
    side_sizes = side_sizes.astype(jnp.int32)

    # LSTM input sequence [init_i ; lstm_in], time-major flattened (row = t*B + b)
    init_i = jnp.broadcast_to(params["init_i"][None, None, :], (B, 1, Din))
    lstm_seq = jnp.concatenate([init_i, lstm_in], axis=1)            # (B, T+1, Din)
    x_flat = jnp.swapaxes(lstm_seq, 0, 1).reshape(T1 * B, Din).astype(jnp.bfloat16)

    q_tm = pallas_lstm(x_flat,
                       params["w_ih"].astype(jnp.bfloat16),
                       params["w_hh"].astype(jnp.bfloat16),
                       params["bias"], params["init_h"], params["init_c"],
                       T1=T1, B=B, H=H)                              # (T+1, B, H) bf16
    query0 = jnp.swapaxes(q_tm, 0, 1)                                # (B, T+1, H) bf16

    bf = lambda w: w.astype(jnp.bfloat16)
    out = pallas_pointer_attention(
        mem_sizes1, side_sizes, attn_mem_p, side_mem_p, query0,
        bf(params["hop_wm"]), bf(params["hop_wq"]), params["hop_v"].reshape(1, H),
        bf(params["side_wm"]), bf(params["side_wq"]), params["side_v"].reshape(1, H),
        bf(params["attn_wm"]), bf(params["attn_wq"]), bf(params["attn_ws"]),
        params["attn_v"].reshape(1, H))                              # (B, T+1, Np)
    return out[:, :, :N + 1]


# ----------------------------------------------------------------------------
# Deterministic parameter init (synthetic; shapes follow the module __init__)
# ----------------------------------------------------------------------------

def init_params(key, input_dim, n_hidden, side_dim):
    ks = jax.random.split(key, 17)
    uni = lambda k, shape, a: jax.random.uniform(k, shape, jnp.float32, -a, a)
    xav = lambda k, shape: jax.random.normal(k, shape, jnp.float32) * 0.05
    return dict(
        init_h=uni(ks[0], (1, n_hidden), 0.01),
        init_c=uni(ks[1], (1, n_hidden), 0.01),
        init_i=uni(ks[2], (input_dim,), 0.1),
        # nn.LSTM weights, stored transposed ([in, 4H]) with gate order i,f,g,o;
        # bias is the sum of bias_ih + bias_hh.
        w_ih=uni(ks[3], (input_dim, 4 * n_hidden), 0.1),
        w_hh=uni(ks[4], (n_hidden, 4 * n_hidden), 0.1),
        bias=uni(ks[5], (1, 4 * n_hidden), 0.1),
        attn_wm=xav(ks[6], (input_dim, n_hidden)),
        attn_wq=xav(ks[7], (n_hidden, n_hidden)),
        attn_v=uni(ks[8], (n_hidden,), 0.01),
        hop_wm=xav(ks[9], (input_dim, n_hidden)),
        hop_wq=xav(ks[10], (n_hidden, n_hidden)),
        hop_v=uni(ks[11], (n_hidden,), 0.01),
        side_wm=xav(ks[12], (side_dim, n_hidden)),
        side_wq=xav(ks[13], (n_hidden, n_hidden)),
        side_v=uni(ks[14], (n_hidden,), 0.01),
        attn_ws=xav(ks[15], (n_hidden, n_hidden)),
        stop=uni(ks[16], (input_dim,), 0.01),
    )


if __name__ == "__main__":
    # small shapes: batch=2, max_sent_num=7, input_dim=16, n_hidden=32,
    # side_dim=24, side_len=6, decode_len=5
    B, N, Din, H, SideD, M, T = 2, 7, 16, 32, 24, 6, 5

    key = jax.random.PRNGKey(0)
    k1, k2, k3, kp = jax.random.split(key, 4)
    attn_mem = jax.random.normal(k1, (B, N, Din), jnp.float32)
    lstm_in = jax.random.normal(k2, (B, T, Din), jnp.float32)
    side_mem = jax.random.normal(k3, (B, M, SideD), jnp.float32)
    # like real batches, at least one example is full length
    mem_sizes = jnp.array([N, 5], jnp.int32)
    side_sizes = jnp.array([M, 4], jnp.int32)

    params = init_params(kp, Din, H, SideD)

    fwd = jax.jit(lstm_pointer_net_forward)
    out = fwd(params, attn_mem, mem_sizes, lstm_in, side_mem, side_sizes)
    out = jax.block_until_ready(out)

    assert out.shape == (B, T + 1, N + 1), out.shape
    assert bool(jnp.all(jnp.isfinite(out)))
    print("KERNEL_OK")
</pallas_src>

<mosaic_0001>
module attributes {stable_mosaic.version = 11 : i64} {
  func.func @kernel(%arg0: i32, %arg1: memref<12x16xbf16, #tpu.memory_space<vmem>>, %arg2: memref<16x128xbf16, #tpu.memory_space<vmem>>, %arg3: memref<32x128xbf16, #tpu.memory_space<vmem>>, %arg4: memref<1x128xf32, #tpu.memory_space<vmem>>, %arg5: memref<1x32xf32, #tpu.memory_space<vmem>>, %arg6: memref<1x32xf32, #tpu.memory_space<vmem>>, %arg7: memref<6x2x32xbf16, #tpu.memory_space<vmem>>, %arg8: memref<12x128xf32, #tpu.memory_space<vmem>>) attributes {dimension_semantics = [#tpu.dimension_semantics<arbitrary>], iteration_bounds = array<i64: 1>, scalar_prefetch = 0 : i64, scratch_operands = 1 : i64, tpu.core_type = #tpu.core_type<tc>, window_params = [{pipeline_mode = #tpu.pipeline_mode<synchronous>, transform_indices = @transform_0, window_bounds = array<i64: 12, 16>}, {pipeline_mode = #tpu.pipeline_mode<synchronous>, transform_indices = @transform_1, window_bounds = array<i64: 16, 128>}, {pipeline_mode = #tpu.pipeline_mode<synchronous>, transform_indices = @transform_2, window_bounds = array<i64: 32, 128>}, {pipeline_mode = #tpu.pipeline_mode<synchronous>, transform_indices = @transform_3, window_bounds = array<i64: 1, 128>}, {pipeline_mode = #tpu.pipeline_mode<synchronous>, transform_indices = @transform_4, window_bounds = array<i64: 1, 32>}, {pipeline_mode = #tpu.pipeline_mode<synchronous>, transform_indices = @transform_5, window_bounds = array<i64: 1, 32>}, {pipeline_mode = #tpu.pipeline_mode<synchronous>, transform_indices = @transform_6, window_bounds = array<i64: 6, 2, 32>}]} {
    %c0 = arith.constant 0 : index
    %c0_0 = arith.constant 0 : index
    %0 = vector.load %arg1[%c0, %c0_0] : memref<12x16xbf16, #tpu.memory_space<vmem>>, vector<12x16xbf16>
    %c0_1 = arith.constant 0 : index
    %c0_2 = arith.constant 0 : index
    %1 = vector.load %arg2[%c0_1, %c0_2] : memref<16x128xbf16, #tpu.memory_space<vmem>>, vector<16x128xbf16>
    %cst = arith.constant dense<0.000000e+00> : vector<12x128xf32>
    %2 = tpu.matmul %0, %1, %cst {dimension_numbers = #tpu.dot_dimension_numbers<[1], [0], [0], [1], [0, 0, 1, 1], [], []>} : vector<12x16xbf16>, vector<16x128xbf16>, vector<12x128xf32> -> vector<12x128xf32>
    %c0_3 = arith.constant 0 : index
    %c0_4 = arith.constant 0 : index
    %3 = vector.load %arg4[%c0_3, %c0_4] : memref<1x128xf32, #tpu.memory_space<vmem>>, vector<1x128xf32>
    %4 = vector.broadcast %3 : vector<1x128xf32> to vector<12x128xf32>
    %5 = arith.addf %2, %4 : vector<12x128xf32>
    %c0_5 = arith.constant 0 : index
    %c0_6 = arith.constant 0 : index
    %6 = vector.load %arg8[%c0_5, %c0_6] : memref<12x128xf32, #tpu.memory_space<vmem>>, vector<12x128xf32>
    tpu.vector_store %arg8[%c0_5, %c0_6], %5 {strides = array<i32>} : memref<12x128xf32, #tpu.memory_space<vmem>>, vector<12x128xf32>,
    %c0_7 = arith.constant 0 : index
    %c0_8 = arith.constant 0 : index
    %7 = vector.load %arg5[%c0_7, %c0_8] : memref<1x32xf32, #tpu.memory_space<vmem>>, vector<1x32xf32>
    %8 = vector.shape_cast %7 : vector<1x32xf32> to vector<1x32xf32>
    %9 = vector.broadcast %8 : vector<1x32xf32> to vector<2x32xf32>
    %c0_9 = arith.constant 0 : index
    %c0_10 = arith.constant 0 : index
    %10 = vector.load %arg6[%c0_9, %c0_10] : memref<1x32xf32, #tpu.memory_space<vmem>>, vector<1x32xf32>
    %11 = vector.shape_cast %10 : vector<1x32xf32> to vector<1x32xf32>
    %12 = vector.broadcast %11 : vector<1x32xf32> to vector<2x32xf32>
    %c0_i32 = arith.constant 0 : i32
    %c2_i32 = arith.constant 2 : i32
    %13 = arith.muli %c0_i32, %c2_i32 : i32
    %14 = arith.index_cast %13 : i32 to index
    %c0_11 = arith.constant 0 : index
    %15 = vector.load %arg8[%14, %c0_11] : memref<12x128xf32, #tpu.memory_space<vmem>>, vector<2x128xf32>
    %16 = arith.truncf %9 : vector<2x32xf32> to vector<2x32xbf16>
    %c0_12 = arith.constant 0 : index
    %c0_13 = arith.constant 0 : index
    %17 = vector.load %arg3[%c0_12, %c0_13] : memref<32x128xbf16, #tpu.memory_space<vmem>>, vector<32x128xbf16>
    %cst_14 = arith.constant dense<0.000000e+00> : vector<2x128xf32>
    %18 = tpu.matmul %16, %17, %cst_14 {dimension_numbers = #tpu.dot_dimension_numbers<[1], [0], [0], [1], [0, 0, 1, 1], [], []>} : vector<2x32xbf16>, vector<32x128xbf16>, vector<2x128xf32> -> vector<2x128xf32>
    %19 = arith.addf %15, %18 : vector<2x128xf32>
    %20 = arith.negf %19 : vector<2x128xf32>
    %21 = math.exp %20 : vector<2x128xf32>
    %cst_15 = arith.constant 1.000000e+00 : f32
    %22 = vector.broadcast %cst_15 : f32 to vector<2x128xf32>
    %23 = arith.addf %22, %21 : vector<2x128xf32>
    %24 = arith.divf %22, %23 : vector<2x128xf32>
    %25 = math.tanh %19 : vector<2x128xf32>
    %26 = vector.extract_strided_slice %24 {offsets = [0, 0], sizes = [2, 32], strides = [1, 1]} : vector<2x128xf32> to vector<2x32xf32>
    %27 = vector.extract_strided_slice %24 {offsets = [0, 32], sizes = [2, 32], strides = [1, 1]} : vector<2x128xf32> to vector<2x32xf32>
    %28 = vector.extract_strided_slice %25 {offsets = [0, 64], sizes = [2, 32], strides = [1, 1]} : vector<2x128xf32> to vector<2x32xf32>
    %29 = vector.extract_strided_slice %24 {offsets = [0, 96], sizes = [2, 32], strides = [1, 1]} : vector<2x128xf32> to vector<2x32xf32>
    %30 = arith.mulf %27, %12 : vector<2x32xf32>
    %31 = arith.mulf %26, %28 : vector<2x32xf32>
    %32 = arith.addf %30, %31 : vector<2x32xf32>
    %33 = math.tanh %32 : vector<2x32xf32>
    %34 = arith.mulf %29, %33 : vector<2x32xf32>
    %35 = arith.truncf %34 : vector<2x32xf32> to vector<2x32xbf16>
    %36 = arith.index_cast %c0_i32 : i32 to index
    %c0_16 = arith.constant 0 : index
    %c0_17 = arith.constant 0 : index
    %37 = vector.load %arg7[%36, %c0_16, %c0_17] : memref<6x2x32xbf16, #tpu.memory_space<vmem>>, vector<1x2x32xbf16>
    %38 = vector.shape_cast %37 : vector<1x2x32xbf16> to vector<2x32xbf16>
    %39 = vector.shape_cast %35 : vector<2x32xbf16> to vector<1x2x32xbf16>
    tpu.vector_store %arg7[%36, %c0_16, %c0_17], %39 {strides = array<i32>} : memref<6x2x32xbf16, #tpu.memory_space<vmem>>, vector<1x2x32xbf16>,
    %c1_i32 = arith.constant 1 : i32
    %c2_i32_18 = arith.constant 2 : i32
    %40 = arith.muli %c1_i32, %c2_i32_18 : i32
    %41 = arith.index_cast %40 : i32 to index
    %c0_19 = arith.constant 0 : index
    %42 = vector.load %arg8[%41, %c0_19] : memref<12x128xf32, #tpu.memory_space<vmem>>, vector<2x128xf32>
    %43 = arith.truncf %34 : vector<2x32xf32> to vector<2x32xbf16>
    %c0_20 = arith.constant 0 : index
    %c0_21 = arith.constant 0 : index
    %44 = vector.load %arg3[%c0_20, %c0_21] : memref<32x128xbf16, #tpu.memory_space<vmem>>, vector<32x128xbf16>
    %cst_22 = arith.constant dense<0.000000e+00> : vector<2x128xf32>
    %45 = tpu.matmul %43, %44, %cst_22 {dimension_numbers = #tpu.dot_dimension_numbers<[1], [0], [0], [1], [0, 0, 1, 1], [], []>} : vector<2x32xbf16>, vector<32x128xbf16>, vector<2x128xf32> -> vector<2x128xf32>
    %46 = arith.addf %42, %45 : vector<2x128xf32>
    %47 = arith.negf %46 : vector<2x128xf32>
    %48 = math.exp %47 : vector<2x128xf32>
    %cst_23 = arith.constant 1.000000e+00 : f32
    %49 = vector.broadcast %cst_23 : f32 to vector<2x128xf32>
    %50 = arith.addf %49, %48 : vector<2x128xf32>
    %51 = arith.divf %49, %50 : vector<2x128xf32>
    %52 = math.tanh %46 : vector<2x128xf32>
    %53 = vector.extract_strided_slice %51 {offsets = [0, 0], sizes = [2, 32], strides = [1, 1]} : vector<2x128xf32> to vector<2x32xf32>
    %54 = vector.extract_strided_slice %51 {offsets = [0, 32], sizes = [2, 32], strides = [1, 1]} : vector<2x128xf32> to vector<2x32xf32>
    %55 = vector.extract_strided_slice %52 {offsets = [0, 64], sizes = [2, 32], strides = [1, 1]} : vector<2x128xf32> to vector<2x32xf32>
    %56 = vector.extract_strided_slice %51 {offsets = [0, 96], sizes = [2, 32], strides = [1, 1]} : vector<2x128xf32> to vector<2x32xf32>
    %57 = arith.mulf %54, %32 : vector<2x32xf32>
    %58 = arith.mulf %53, %55 : vector<2x32xf32>
    %59 = arith.addf %57, %58 : vector<2x32xf32>
    %60 = math.tanh %59 : vector<2x32xf32>
    %61 = arith.mulf %56, %60 : vector<2x32xf32>
    %62 = arith.truncf %61 : vector<2x32xf32> to vector<2x32xbf16>
    %63 = arith.index_cast %c1_i32 : i32 to index
    %c0_24 = arith.constant 0 : index
    %c0_25 = arith.constant 0 : index
    %64 = vector.load %arg7[%63, %c0_24, %c0_25] : memref<6x2x32xbf16, #tpu.memory_space<vmem>>, vector<1x2x32xbf16>
    %65 = vector.shape_cast %64 : vector<1x2x32xbf16> to vector<2x32xbf16>
    %66 = vector.shape_cast %62 : vector<2x32xbf16> to vector<1x2x32xbf16>
    tpu.vector_store %arg7[%63, %c0_24, %c0_25], %66 {strides = array<i32>} : memref<6x2x32xbf16, #tpu.memory_space<vmem>>, vector<1x2x32xbf16>,
    %c2_i32_26 = arith.constant 2 : i32
    %c2_i32_27 = arith.constant 2 : i32
    %67 = arith.muli %c2_i32_26, %c2_i32_27 : i32
    %68 = arith.index_cast %67 : i32 to index
    %c0_28 = arith.constant 0 : index
    %69 = vector.load %arg8[%68, %c0_28] : memref<12x128xf32, #tpu.memory_space<vmem>>, vector<2x128xf32>
    %70 = arith.truncf %61 : vector<2x32xf32> to vector<2x32xbf16>
    %c0_29 = arith.constant 0 : index
    %c0_30 = arith.constant 0 : index
    %71 = vector.load %arg3[%c0_29, %c0_30] : memref<32x128xbf16, #tpu.memory_space<vmem>>, vector<32x128xbf16>
    %cst_31 = arith.constant dense<0.000000e+00> : vector<2x128xf32>
    %72 = tpu.matmul %70, %71, %cst_31 {dimension_numbers = #tpu.dot_dimension_numbers<[1], [0], [0], [1], [0, 0, 1, 1], [], []>} : vector<2x32xbf16>, vector<32x128xbf16>, vector<2x128xf32> -> vector<2x128xf32>
    %73 = arith.addf %69, %72 : vector<2x128xf32>
    %74 = arith.negf %73 : vector<2x128xf32>
    %75 = math.exp %74 : vector<2x128xf32>
    %cst_32 = arith.constant 1.000000e+00 : f32
    %76 = vector.broadcast %cst_32 : f32 to vector<2x128xf32>
    %77 = arith.addf %76, %75 : vector<2x128xf32>
    %78 = arith.divf %76, %77 : vector<2x128xf32>
    %79 = math.tanh %73 : vector<2x128xf32>
    %80 = vector.extract_strided_slice %78 {offsets = [0, 0], sizes = [2, 32], strides = [1, 1]} : vector<2x128xf32> to vector<2x32xf32>
    %81 = vector.extract_strided_slice %78 {offsets = [0, 32], sizes = [2, 32], strides = [1, 1]} : vector<2x128xf32> to vector<2x32xf32>
    %82 = vector.extract_strided_slice %79 {offsets = [0, 64], sizes = [2, 32], strides = [1, 1]} : vector<2x128xf32> to vector<2x32xf32>
    %83 = vector.extract_strided_slice %78 {offsets = [0, 96], sizes = [2, 32], strides = [1, 1]} : vector<2x128xf32> to vector<2x32xf32>
    %84 = arith.mulf %81, %59 : vector<2x32xf32>
    %85 = arith.mulf %80, %82 : vector<2x32xf32>
    %86 = arith.addf %84, %85 : vector<2x32xf32>
    %87 = math.tanh %86 : vector<2x32xf32>
    %88 = arith.mulf %83, %87 : vector<2x32xf32>
    %89 = arith.truncf %88 : vector<2x32xf32> to vector<2x32xbf16>
    %90 = arith.index_cast %c2_i32_26 : i32 to index
    %c0_33 = arith.constant 0 : index
    %c0_34 = arith.constant 0 : index
    %91 = vector.load %arg7[%90, %c0_33, %c0_34] : memref<6x2x32xbf16, #tpu.memory_space<vmem>>, vector<1x2x32xbf16>
    %92 = vector.shape_cast %91 : vector<1x2x32xbf16> to vector<2x32xbf16>
    %93 = vector.shape_cast %89 : vector<2x32xbf16> to vector<1x2x32xbf16>
    tpu.vector_store %arg7[%90, %c0_33, %c0_34], %93 {strides = array<i32>} : memref<6x2x32xbf16, #tpu.memory_space<vmem>>, vector<1x2x32xbf16>,
    %c3_i32 = arith.constant 3 : i32
    %c2_i32_35 = arith.constant 2 : i32
    %94 = arith.muli %c3_i32, %c2_i32_35 : i32
    %95 = arith.index_cast %94 : i32 to index
    %c0_36 = arith.constant 0 : index
    %96 = vector.load %arg8[%95, %c0_36] : memref<12x128xf32, #tpu.memory_space<vmem>>, vector<2x128xf32>
    %97 = arith.truncf %88 : vector<2x32xf32> to vector<2x32xbf16>
    %c0_37 = arith.constant 0 : index
    %c0_38 = arith.constant 0 : index
    %98 = vector.load %arg3[%c0_37, %c0_38] : memref<32x128xbf16, #tpu.memory_space<vmem>>, vector<32x128xbf16>
    %cst_39 = arith.constant dense<0.000000e+00> : vector<2x128xf32>
    %99 = tpu.matmul %97, %98, %cst_39 {dimension_numbers = #tpu.dot_dimension_numbers<[1], [0], [0], [1], [0, 0, 1, 1], [], []>} : vector<2x32xbf16>, vector<32x128xbf16>, vector<2x128xf32> -> vector<2x128xf32>
    %100 = arith.addf %96, %99 : vector<2x128xf32>
    %101 = arith.negf %100 : vector<2x128xf32>
    %102 = math.exp %101 : vector<2x128xf32>
    %cst_40 = arith.constant 1.000000e+00 : f32
    %103 = vector.broadcast %cst_40 : f32 to vector<2x128xf32>
    %104 = arith.addf %103, %102 : vector<2x128xf32>
    %105 = arith.divf %103, %104 : vector<2x128xf32>
    %106 = math.tanh %100 : vector<2x128xf32>
    %107 = vector.extract_strided_slice %105 {offsets = [0, 0], sizes = [2, 32], strides = [1, 1]} : vector<2x128xf32> to vector<2x32xf32>
    %108 = vector.extract_strided_slice %105 {offsets = [0, 32], sizes = [2, 32], strides = [1, 1]} : vector<2x128xf32> to vector<2x32xf32>
    %109 = vector.extract_strided_slice %106 {offsets = [0, 64], sizes = [2, 32], strides = [1, 1]} : vector<2x128xf32> to vector<2x32xf32>
    %110 = vector.extract_strided_slice %105 {offsets = [0, 96], sizes = [2, 32], strides = [1, 1]} : vector<2x128xf32> to vector<2x32xf32>
    %111 = arith.mulf %108, %86 : vector<2x32xf32>
    %112 = arith.mulf %107, %109 : vector<2x32xf32>
    %113 = arith.addf %111, %112 : vector<2x32xf32>
    %114 = math.tanh %113 : vector<2x32xf32>
    %115 = arith.mulf %110, %114 : vector<2x32xf32>
    %116 = arith.truncf %115 : vector<2x32xf32> to vector<2x32xbf16>
    %117 = arith.index_cast %c3_i32 : i32 to index
    %c0_41 = arith.constant 0 : index
    %c0_42 = arith.constant 0 : index
    %118 = vector.load %arg7[%117, %c0_41, %c0_42] : memref<6x2x32xbf16, #tpu.memory_space<vmem>>, vector<1x2x32xbf16>
    %119 = vector.shape_cast %118 : vector<1x2x32xbf16> to vector<2x32xbf16>
    %120 = vector.shape_cast %116 : vector<2x32xbf16> to vector<1x2x32xbf16>
    tpu.vector_store %arg7[%117, %c0_41, %c0_42], %120 {strides = array<i32>} : memref<6x2x32xbf16, #tpu.memory_space<vmem>>, vector<1x2x32xbf16>,
    %c4_i32 = arith.constant 4 : i32
    %c2_i32_43 = arith.constant 2 : i32
    %121 = arith.muli %c4_i32, %c2_i32_43 : i32
    %122 = arith.index_cast %121 : i32 to index
    %c0_44 = arith.constant 0 : index
    %123 = vector.load %arg8[%122, %c0_44] : memref<12x128xf32, #tpu.memory_space<vmem>>, vector<2x128xf32>
    %124 = arith.truncf %115 : vector<2x32xf32> to vector<2x32xbf16>
    %c0_45 = arith.constant 0 : index
    %c0_46 = arith.constant 0 : index
    %125 = vector.load %arg3[%c0_45, %c0_46] : memref<32x128xbf16, #tpu.memory_space<vmem>>, vector<32x128xbf16>
    %cst_47 = arith.constant dense<0.000000e+00> : vector<2x128xf32>
    %126 = tpu.matmul %124, %125, %cst_47 {dimension_numbers = #tpu.dot_dimension_numbers<[1], [0], [0], [1], [0, 0, 1, 1], [], []>} : vector<2x32xbf16>, vector<32x128xbf16>, vector<2x128xf32> -> vector<2x128xf32>
    %127 = arith.addf %123, %126 : vector<2x128xf32>
    %128 = arith.negf %127 : vector<2x128xf32>
    %129 = math.exp %128 : vector<2x128xf32>
    %cst_48 = arith.constant 1.000000e+00 : f32
    %130 = vector.broadcast %cst_48 : f32 to vector<2x128xf32>
    %131 = arith.addf %130, %129 : vector<2x128xf32>
    %132 = arith.divf %130, %131 : vector<2x128xf32>
    %133 = math.tanh %127 : vector<2x128xf32>
    %134 = vector.extract_strided_slice %132 {offsets = [0, 0], sizes = [2, 32], strides = [1, 1]} : vector<2x128xf32> to vector<2x32xf32>
    %135 = vector.extract_strided_slice %132 {offsets = [0, 32], sizes = [2, 32], strides = [1, 1]} : vector<2x128xf32> to vector<2x32xf32>
    %136 = vector.extract_strided_slice %133 {offsets = [0, 64], sizes = [2, 32], strides = [1, 1]} : vector<2x128xf32> to vector<2x32xf32>
    %137 = vector.extract_strided_slice %132 {offsets = [0, 96], sizes = [2, 32], strides = [1, 1]} : vector<2x128xf32> to vector<2x32xf32>
    %138 = arith.mulf %135, %113 : vector<2x32xf32>
    %139 = arith.mulf %134, %136 : vector<2x32xf32>
    %140 = arith.addf %138, %139 : vector<2x32xf32>
    %141 = math.tanh %140 : vector<2x32xf32>
    %142 = arith.mulf %137, %141 : vector<2x32xf32>
    %143 = arith.truncf %142 : vector<2x32xf32> to vector<2x32xbf16>
    %144 = arith.index_cast %c4_i32 : i32 to index
    %c0_49 = arith.constant 0 : index
    %c0_50 = arith.constant 0 : index
    %145 = vector.load %arg7[%144, %c0_49, %c0_50] : memref<6x2x32xbf16, #tpu.memory_space<vmem>>, vector<1x2x32xbf16>
    %146 = vector.shape_cast %145 : vector<1x2x32xbf16> to vector<2x32xbf16>
    %147 = vector.shape_cast %143 : vector<2x32xbf16> to vector<1x2x32xbf16>
    tpu.vector_store %arg7[%144, %c0_49, %c0_50], %147 {strides = array<i32>} : memref<6x2x32xbf16, #tpu.memory_space<vmem>>, vector<1x2x32xbf16>,
    %c5_i32 = arith.constant 5 : i32
    %c2_i32_51 = arith.constant 2 : i32
    %148 = arith.muli %c5_i32, %c2_i32_51 : i32
    %149 = arith.index_cast %148 : i32 to index
    %c0_52 = arith.constant 0 : index
    %150 = vector.load %arg8[%149, %c0_52] : memref<12x128xf32, #tpu.memory_space<vmem>>, vector<2x128xf32>
    %151 = arith.truncf %142 : vector<2x32xf32> to vector<2x32xbf16>
    %c0_53 = arith.constant 0 : index
    %c0_54 = arith.constant 0 : index
    %152 = vector.load %arg3[%c0_53, %c0_54] : memref<32x128xbf16, #tpu.memory_space<vmem>>, vector<32x128xbf16>
    %cst_55 = arith.constant dense<0.000000e+00> : vector<2x128xf32>
    %153 = tpu.matmul %151, %152, %cst_55 {dimension_numbers = #tpu.dot_dimension_numbers<[1], [0], [0], [1], [0, 0, 1, 1], [], []>} : vector<2x32xbf16>, vector<32x128xbf16>, vector<2x128xf32> -> vector<2x128xf32>
    %154 = arith.addf %150, %153 : vector<2x128xf32>
    %155 = arith.negf %154 : vector<2x128xf32>
    %156 = math.exp %155 : vector<2x128xf32>
    %cst_56 = arith.constant 1.000000e+00 : f32
    %157 = vector.broadcast %cst_56 : f32 to vector<2x128xf32>
    %158 = arith.addf %157, %156 : vector<2x128xf32>
    %159 = arith.divf %157, %158 : vector<2x128xf32>
    %160 = math.tanh %154 : vector<2x128xf32>
    %161 = vector.extract_strided_slice %159 {offsets = [0, 0], sizes = [2, 32], strides = [1, 1]} : vector<2x128xf32> to vector<2x32xf32>
    %162 = vector.extract_strided_slice %159 {offsets = [0, 32], sizes = [2, 32], strides = [1, 1]} : vector<2x128xf32> to vector<2x32xf32>
    %163 = vector.extract_strided_slice %160 {offsets = [0, 64], sizes = [2, 32], strides = [1, 1]} : vector<2x128xf32> to vector<2x32xf32>
    %164 = vector.extract_strided_slice %159 {offsets = [0, 96], sizes = [2, 32], strides = [1, 1]} : vector<2x128xf32> to vector<2x32xf32>
    %165 = arith.mulf %162, %140 : vector<2x32xf32>
    %166 = arith.mulf %161, %163 : vector<2x32xf32>
    %167 = arith.addf %165, %166 : vector<2x32xf32>
    %168 = math.tanh %167 : vector<2x32xf32>
    %169 = arith.mulf %164, %168 : vector<2x32xf32>
    %170 = arith.truncf %169 : vector<2x32xf32> to vector<2x32xbf16>
    %171 = arith.index_cast %c5_i32 : i32 to index
    %c0_57 = arith.constant 0 : index
    %c0_58 = arith.constant 0 : index
    %172 = vector.load %arg7[%171, %c0_57, %c0_58] : memref<6x2x32xbf16, #tpu.memory_space<vmem>>, vector<1x2x32xbf16>
    %173 = vector.shape_cast %172 : vector<1x2x32xbf16> to vector<2x32xbf16>
    %174 = vector.shape_cast %170 : vector<2x32xbf16> to vector<1x2x32xbf16>
    tpu.vector_store %arg7[%171, %c0_57, %c0_58], %174 {strides = array<i32>} : memref<6x2x32xbf16, #tpu.memory_space<vmem>>, vector<1x2x32xbf16>,
    %c6_i32 = arith.constant 6 : i32
    return
  }
  func.func @transform_0(%arg0: i32) -> (i32, i32) {
    %c0_i32 = arith.constant 0 : i32
    %c0_i32_0 = arith.constant 0 : i32
    %c0_i32_1 = arith.constant 0 : i32
    return %c0_i32, %c0_i32_0 : i32, i32
  }
  func.func @transform_1(%arg0: i32) -> (i32, i32) {
    %c0_i32 = arith.constant 0 : i32
    %c0_i32_0 = arith.constant 0 : i32
    %c0_i32_1 = arith.constant 0 : i32
    return %c0_i32, %c0_i32_0 : i32, i32
  }
  func.func @transform_2(%arg0: i32) -> (i32, i32) {
    %c0_i32 = arith.constant 0 : i32
    %c0_i32_0 = arith.constant 0 : i32
    %c0_i32_1 = arith.constant 0 : i32
    return %c0_i32, %c0_i32_0 : i32, i32
  }
  func.func @transform_3(%arg0: i32) -> (i32, i32) {
    %c0_i32 = arith.constant 0 : i32
    %c0_i32_0 = arith.constant 0 : i32
    %c0_i32_1 = arith.constant 0 : i32
    return %c0_i32, %c0_i32_0 : i32, i32
  }
  func.func @transform_4(%arg0: i32) -> (i32, i32) {
    %c0_i32 = arith.constant 0 : i32
    %c0_i32_0 = arith.constant 0 : i32
    %c0_i32_1 = arith.constant 0 : i32
    return %c0_i32, %c0_i32_0 : i32, i32
  }
  func.func @transform_5(%arg0: i32) -> (i32, i32) {
    %c0_i32 = arith.constant 0 : i32
    %c0_i32_0 = arith.constant 0 : i32
    %c0_i32_1 = arith.constant 0 : i32
    return %c0_i32, %c0_i32_0 : i32, i32
  }
  func.func @transform_6(%arg0: i32) -> (i32, i32, i32) {
    %c0_i32 = arith.constant 0 : i32
    %c0_i32_0 = arith.constant 0 : i32
    %c0_i32_1 = arith.constant 0 : i32
    %c0_i32_2 = arith.constant 0 : i32
    return %c0_i32, %c0_i32_0, %c0_i32_1 : i32, i32, i32
  }
}

module attributes {stable_mosaic.version = 11 : i64} {
  func.func @_pointer_attn_kernel(%arg0: i32, %arg1: memref<2xi32, #tpu.memory_space<smem>>, %arg2: memref<2xi32, #tpu.memory_space<smem>>, %arg3: memref<1x128x16xbf16, #tpu.memory_space<vmem>>, %arg4: memref<1x128x24xbf16, #tpu.memory_space<vmem>>, %arg5: memref<1x6x32xbf16, #tpu.memory_space<vmem>>, %arg6: memref<16x32xbf16, #tpu.memory_space<vmem>>, %arg7: memref<32x32xbf16, #tpu.memory_space<vmem>>, %arg8: memref<1x32xf32, #tpu.memory_space<vmem>>, %arg9: memref<24x32xbf16, #tpu.memory_space<vmem>>, %arg10: memref<32x32xbf16, #tpu.memory_space<vmem>>, %arg11: memref<1x32xf32, #tpu.memory_space<vmem>>, %arg12: memref<16x32xbf16, #tpu.memory_space<vmem>>, %arg13: memref<32x32xbf16, #tpu.memory_space<vmem>>, %arg14: memref<32x32xbf16, #tpu.memory_space<vmem>>, %arg15: memref<1x32xf32, #tpu.memory_space<vmem>>, %arg16: memref<1x6x128xf32, #tpu.memory_space<vmem>>) attributes {dimension_semantics = [#tpu.dimension_semantics<parallel>], iteration_bounds = array<i64: 2>, scalar_prefetch = 2 : i64, scratch_operands = 0 : i64, tpu.core_type = #tpu.core_type<tc>, window_params = [{transform_indices = @transform_0, window_bounds = array<i64: 1, 128, 16>}, {transform_indices = @transform_1, window_bounds = array<i64: 1, 128, 24>}, {transform_indices = @transform_2, window_bounds = array<i64: 1, 6, 32>}, {pipeline_mode = #tpu.pipeline_mode<synchronous>, transform_indices = @transform_3, window_bounds = array<i64: 16, 32>}, {pipeline_mode = #tpu.pipeline_mode<synchronous>, transform_indices = @transform_4, window_bounds = array<i64: 32, 32>}, {pipeline_mode = #tpu.pipeline_mode<synchronous>, transform_indices = @transform_5, window_bounds = array<i64: 1, 32>}, {pipeline_mode = #tpu.pipeline_mode<synchronous>, transform_indices = @transform_6, window_bounds = array<i64: 24, 32>}, {pipeline_mode = #tpu.pipeline_mode<synchronous>, transform_indices = @transform_7, window_bounds = array<i64: 32, 32>}, {pipeline_mode = #tpu.pipeline_mode<synchronous>, transform_indices = @transform_8, window_bounds = array<i64: 1, 32>}, {pipeline_mode = #tpu.pipeline_mode<synchronous>, transform_indices = @transform_9, window_bounds = array<i64: 16, 32>}, {pipeline_mode = #tpu.pipeline_mode<synchronous>, transform_indices = @transform_10, window_bounds = array<i64: 32, 32>}, {pipeline_mode = #tpu.pipeline_mode<synchronous>, transform_indices = @transform_11, window_bounds = array<i64: 32, 32>}, {pipeline_mode = #tpu.pipeline_mode<synchronous>, transform_indices = @transform_12, window_bounds = array<i64: 1, 32>}, {transform_indices = @transform_13, window_bounds = array<i64: 1, 6, 128>}]} {
    %c0 = arith.constant 0 : index
    %c0_0 = arith.constant 0 : index
    %c0_1 = arith.constant 0 : index
    %0 = vector.load %arg5[%c0, %c0_0, %c0_1] : memref<1x6x32xbf16, #tpu.memory_space<vmem>>, vector<1x6x32xbf16>
    %1 = vector.shape_cast %0 : vector<1x6x32xbf16> to vector<6x32xbf16>
    %c0_2 = arith.constant 0 : index
    %c0_3 = arith.constant 0 : index
    %2 = vector.load %arg8[%c0_2, %c0_3] : memref<1x32xf32, #tpu.memory_space<vmem>>, vector<1x32xf32>
    %3 = arith.index_cast %arg0 : i32 to index
    %4 = memref.load %arg1[%3] : memref<2xi32, #tpu.memory_space<smem>>
    %c0_4 = arith.constant 0 : index
    %c0_5 = arith.constant 0 : index
    %5 = vector.load %arg7[%c0_4, %c0_5] : memref<32x32xbf16, #tpu.memory_space<vmem>>, vector<32x32xbf16>
    %cst = arith.constant dense<0.000000e+00> : vector<6x32xf32>
    %6 = tpu.matmul %1, %5, %cst {dimension_numbers = #tpu.dot_dimension_numbers<[1], [0], [0], [1], [0, 0, 1, 1], [], []>} : vector<6x32xbf16>, vector<32x32xbf16>, vector<6x32xf32> -> vector<6x32xf32>
    %cst_6 = arith.constant -1.000000e+30 : f32
    %7 = vector.broadcast %cst_6 : f32 to vector<6x1xf32>
    %cst_7 = arith.constant 0.000000e+00 : f32
    %8 = vector.broadcast %cst_7 : f32 to vector<6x1xf32>
    %cst_8 = arith.constant 0.000000e+00 : f32
    %9 = vector.broadcast %cst_8 : f32 to vector<6x32xf32>
    %c0_9 = arith.constant 0 : index
    %c0_10 = arith.constant 0 : index
    %c0_11 = arith.constant 0 : index
    %10 = vector.load %arg3[%c0_9, %c0_10, %c0_11] : memref<1x128x16xbf16, #tpu.memory_space<vmem>>, vector<1x128x16xbf16>
    %11 = vector.shape_cast %10 : vector<1x128x16xbf16> to vector<128x16xbf16>
    %c0_12 = arith.constant 0 : index
    %c0_13 = arith.constant 0 : index
    %12 = vector.load %arg6[%c0_12, %c0_13] : memref<16x32xbf16, #tpu.memory_space<vmem>>, vector<16x32xbf16>
    %cst_14 = arith.constant dense<0.000000e+00> : vector<128x32xf32>
    %13 = tpu.matmul %11, %12, %cst_14 {dimension_numbers = #tpu.dot_dimension_numbers<[1], [0], [0], [1], [0, 0, 1, 1], [], []>} : vector<128x16xbf16>, vector<16x32xbf16>, vector<128x32xf32> -> vector<128x32xf32>
    %14 = vector.shape_cast %13 : vector<128x32xf32> to vector<1x128x32xf32>
    %15 = vector.shape_cast %6 : vector<6x32xf32> to vector<6x1x32xf32>
    %16 = vector.broadcast %14 : vector<1x128x32xf32> to vector<6x128x32xf32>
    %17 = vector.broadcast %15 : vector<6x1x32xf32> to vector<6x128x32xf32>
    %18 = arith.addf %16, %17 : vector<6x128x32xf32>
    %19 = math.tanh %18 : vector<6x128x32xf32>
    %20 = vector.shape_cast %2 : vector<1x32xf32> to vector<1x1x32xf32>
    %21 = vector.broadcast %20 : vector<1x1x32xf32> to vector<6x128x32xf32>
    %22 = arith.mulf %19, %21 : vector<6x128x32xf32>
    %cst_15 = arith.constant dense<0.000000e+00> : vector<6x128xf32>
    %23 = vector.multi_reduction <add>, %22, %cst_15 [2] : vector<6x128x32xf32> to vector<6x128xf32>
    %24 = tpu.iota {dimensions = array<i32: 1>} : vector<1x128xi32>
    %c0_i32 = arith.constant 0 : i32
    %25 = vector.broadcast %c0_i32 : i32 to vector<1x128xi32>
    %26 = arith.addi %24, %25 : vector<1x128xi32>
    %27 = vector.broadcast %4 : i32 to vector<1x128xi32>
    %28 = arith.cmpi slt, %26, %27 : vector<1x128xi32>
    %cst_16 = arith.constant -9.99999984E+17 : f32
    %29 = vector.shape_cast %28 : vector<1x128xi1> to vector<1x128xi1>
    %30 = vector.broadcast %29 : vector<1x128xi1> to vector<6x128xi1>
    %31 = vector.broadcast %cst_16 : f32 to vector<6x128xf32>
    %32 = arith.select %30, %23, %31 : vector<6x128xi1>, vector<6x128xf32>
    %cst_17 = arith.constant dense<0xFF800000> : vector<6xf32>
    %33 = vector.multi_reduction <maximumf>, %32, %cst_17 [1] : vector<6x128xf32> to vector<6xf32>
    %34 = vector.shape_cast %33 : vector<6xf32> to vector<6x1xf32>
    %35 = arith.maximumf %7, %34 : vector<6x1xf32>
    %36 = arith.subf %7, %35 : vector<6x1xf32>
    %37 = math.exp %36 : vector<6x1xf32>
    %38 = vector.broadcast %35 : vector<6x1xf32> to vector<6x128xf32>
    %39 = arith.subf %32, %38 : vector<6x128xf32>
    %40 = math.exp %39 : vector<6x128xf32>
    %41 = arith.mulf %37, %8 : vector<6x1xf32>
    %cst_18 = arith.constant dense<0.000000e+00> : vector<6xf32>
    %42 = vector.multi_reduction <add>, %40, %cst_18 [1] : vector<6x128xf32> to vector<6xf32>
    %43 = vector.shape_cast %42 : vector<6xf32> to vector<6x1xf32>
    %44 = arith.addf %41, %43 : vector<6x1xf32>
    %45 = vector.broadcast %37 : vector<6x1xf32> to vector<6x32xf32>
    %46 = arith.mulf %45, %9 : vector<6x32xf32>
    %47 = arith.truncf %40 : vector<6x128xf32> to vector<6x128xbf16>
    %48 = arith.truncf %13 : vector<128x32xf32> to vector<128x32xbf16>
    %cst_19 = arith.constant dense<0.000000e+00> : vector<6x32xf32>
    %49 = tpu.matmul %47, %48, %cst_19 {dimension_numbers = #tpu.dot_dimension_numbers<[1], [0], [0], [1], [0, 0, 1, 1], [], []>} : vector<6x128xbf16>, vector<128x32xbf16>, vector<6x32xf32> -> vector<6x32xf32>
    %50 = arith.addf %46, %49 : vector<6x32xf32>
    %51 = vector.broadcast %44 : vector<6x1xf32> to vector<6x32xf32>
    %52 = arith.divf %50, %51 : vector<6x32xf32>
    %c0_20 = arith.constant 0 : index
    %c0_21 = arith.constant 0 : index
    %53 = vector.load %arg11[%c0_20, %c0_21] : memref<1x32xf32, #tpu.memory_space<vmem>>, vector<1x32xf32>
    %54 = arith.index_cast %arg0 : i32 to index
    %55 = memref.load %arg2[%54] : memref<2xi32, #tpu.memory_space<smem>>
    %56 = arith.truncf %52 : vector<6x32xf32> to vector<6x32xbf16>
    %c0_22 = arith.constant 0 : index
    %c0_23 = arith.constant 0 : index
    %57 = vector.load %arg10[%c0_22, %c0_23] : memref<32x32xbf16, #tpu.memory_space<vmem>>, vector<32x32xbf16>
    %cst_24 = arith.constant dense<0.000000e+00> : vector<6x32xf32>
    %58 = tpu.matmul %56, %57, %cst_24 {dimension_numbers = #tpu.dot_dimension_numbers<[1], [0], [0], [1], [0, 0, 1, 1], [], []>} : vector<6x32xbf16>, vector<32x32xbf16>, vector<6x32xf32> -> vector<6x32xf32>
    %cst_25 = arith.constant -1.000000e+30 : f32
    %59 = vector.broadcast %cst_25 : f32 to vector<6x1xf32>
    %cst_26 = arith.constant 0.000000e+00 : f32
    %60 = vector.broadcast %cst_26 : f32 to vector<6x1xf32>
    %cst_27 = arith.constant 0.000000e+00 : f32
    %61 = vector.broadcast %cst_27 : f32 to vector<6x32xf32>
    %c0_28 = arith.constant 0 : index
    %c0_29 = arith.constant 0 : index
    %c0_30 = arith.constant 0 : index
    %62 = vector.load %arg4[%c0_28, %c0_29, %c0_30] : memref<1x128x24xbf16, #tpu.memory_space<vmem>>, vector<1x128x24xbf16>
    %63 = vector.shape_cast %62 : vector<1x128x24xbf16> to vector<128x24xbf16>
    %c0_31 = arith.constant 0 : index
    %c0_32 = arith.constant 0 : index
    %64 = vector.load %arg9[%c0_31, %c0_32] : memref<24x32xbf16, #tpu.memory_space<vmem>>, vector<24x32xbf16>
    %cst_33 = arith.constant dense<0.000000e+00> : vector<128x32xf32>
    %65 = tpu.matmul %63, %64, %cst_33 {dimension_numbers = #tpu.dot_dimension_numbers<[1], [0], [0], [1], [0, 0, 1, 1], [], []>} : vector<128x24xbf16>, vector<24x32xbf16>, vector<128x32xf32> -> vector<128x32xf32>
    %66 = vector.shape_cast %65 : vector<128x32xf32> to vector<1x128x32xf32>
    %67 = vector.shape_cast %58 : vector<6x32xf32> to vector<6x1x32xf32>
    %68 = vector.broadcast %66 : vector<1x128x32xf32> to vector<6x128x32xf32>
    %69 = vector.broadcast %67 : vector<6x1x32xf32> to vector<6x128x32xf32>
    %70 = arith.addf %68, %69 : vector<6x128x32xf32>
    %71 = math.tanh %70 : vector<6x128x32xf32>
    %72 = vector.shape_cast %53 : vector<1x32xf32> to vector<1x1x32xf32>
    %73 = vector.broadcast %72 : vector<1x1x32xf32> to vector<6x128x32xf32>
    %74 = arith.mulf %71, %73 : vector<6x128x32xf32>
    %cst_34 = arith.constant dense<0.000000e+00> : vector<6x128xf32>
    %75 = vector.multi_reduction <add>, %74, %cst_34 [2] : vector<6x128x32xf32> to vector<6x128xf32>
    %76 = tpu.iota {dimensions = array<i32: 1>} : vector<1x128xi32>
    %c0_i32_35 = arith.constant 0 : i32
    %77 = vector.broadcast %c0_i32_35 : i32 to vector<1x128xi32>
    %78 = arith.addi %76, %77 : vector<1x128xi32>
    %79 = vector.broadcast %55 : i32 to vector<1x128xi32>
    %80 = arith.cmpi slt, %78, %79 : vector<1x128xi32>
    %cst_36 = arith.constant -9.99999984E+17 : f32
    %81 = vector.shape_cast %80 : vector<1x128xi1> to vector<1x128xi1>
    %82 = vector.broadcast %81 : vector<1x128xi1> to vector<6x128xi1>
    %83 = vector.broadcast %cst_36 : f32 to vector<6x128xf32>
    %84 = arith.select %82, %75, %83 : vector<6x128xi1>, vector<6x128xf32>
    %cst_37 = arith.constant dense<0xFF800000> : vector<6xf32>
    %85 = vector.multi_reduction <maximumf>, %84, %cst_37 [1] : vector<6x128xf32> to vector<6xf32>
    %86 = vector.shape_cast %85 : vector<6xf32> to vector<6x1xf32>
    %87 = arith.maximumf %59, %86 : vector<6x1xf32>
    %88 = arith.subf %59, %87 : vector<6x1xf32>
    %89 = math.exp %88 : vector<6x1xf32>
    %90 = vector.broadcast %87 : vector<6x1xf32> to vector<6x128xf32>
    %91 = arith.subf %84, %90 : vector<6x128xf32>
    %92 = math.exp %91 : vector<6x128xf32>
    %93 = arith.mulf %89, %60 : vector<6x1xf32>
    %cst_38 = arith.constant dense<0.000000e+00> : vector<6xf32>
    %94 = vector.multi_reduction <add>, %92, %cst_38 [1] : vector<6x128xf32> to vector<6xf32>
    %95 = vector.shape_cast %94 : vector<6xf32> to vector<6x1xf32>
    %96 = arith.addf %93, %95 : vector<6x1xf32>
    %97 = vector.broadcast %89 : vector<6x1xf32> to vector<6x32xf32>
    %98 = arith.mulf %97, %61 : vector<6x32xf32>
    %99 = arith.truncf %92 : vector<6x128xf32> to vector<6x128xbf16>
    %100 = arith.truncf %65 : vector<128x32xf32> to vector<128x32xbf16>
    %cst_39 = arith.constant dense<0.000000e+00> : vector<6x32xf32>
    %101 = tpu.matmul %99, %100, %cst_39 {dimension_numbers = #tpu.dot_dimension_numbers<[1], [0], [0], [1], [0, 0, 1, 1], [], []>} : vector<6x128xbf16>, vector<128x32xbf16>, vector<6x32xf32> -> vector<6x32xf32>
    %102 = arith.addf %98, %101 : vector<6x32xf32>
    %103 = vector.broadcast %96 : vector<6x1xf32> to vector<6x32xf32>
    %104 = arith.divf %102, %103 : vector<6x32xf32>
    %105 = arith.truncf %52 : vector<6x32xf32> to vector<6x32xbf16>
    %c0_40 = arith.constant 0 : index
    %c0_41 = arith.constant 0 : index
    %106 = vector.load %arg13[%c0_40, %c0_41] : memref<32x32xbf16, #tpu.memory_space<vmem>>, vector<32x32xbf16>
    %cst_42 = arith.constant dense<0.000000e+00> : vector<6x32xf32>
    %107 = tpu.matmul %105, %106, %cst_42 {dimension_numbers = #tpu.dot_dimension_numbers<[1], [0], [0], [1], [0, 0, 1, 1], [], []>} : vector<6x32xbf16>, vector<32x32xbf16>, vector<6x32xf32> -> vector<6x32xf32>
    %108 = arith.truncf %104 : vector<6x32xf32> to vector<6x32xbf16>
    %c0_43 = arith.constant 0 : index
    %c0_44 = arith.constant 0 : index
    %109 = vector.load %arg14[%c0_43, %c0_44] : memref<32x32xbf16, #tpu.memory_space<vmem>>, vector<32x32xbf16>
    %cst_45 = arith.constant dense<0.000000e+00> : vector<6x32xf32>
    %110 = tpu.matmul %108, %109, %cst_45 {dimension_numbers = #tpu.dot_dimension_numbers<[1], [0], [0], [1], [0, 0, 1, 1], [], []>} : vector<6x32xbf16>, vector<32x32xbf16>, vector<6x32xf32> -> vector<6x32xf32>
    %111 = arith.addf %107, %110 : vector<6x32xf32>
    %c0_46 = arith.constant 0 : index
    %c0_47 = arith.constant 0 : index
    %112 = vector.load %arg15[%c0_46, %c0_47] : memref<1x32xf32, #tpu.memory_space<vmem>>, vector<1x32xf32>
    %c0_48 = arith.constant 0 : index
    %c0_49 = arith.constant 0 : index
    %c0_50 = arith.constant 0 : index
    %113 = vector.load %arg3[%c0_48, %c0_49, %c0_50] : memref<1x128x16xbf16, #tpu.memory_space<vmem>>, vector<1x128x16xbf16>
    %114 = vector.shape_cast %113 : vector<1x128x16xbf16> to vector<128x16xbf16>
    %c0_51 = arith.constant 0 : index
    %c0_52 = arith.constant 0 : index
    %115 = vector.load %arg12[%c0_51, %c0_52] : memref<16x32xbf16, #tpu.memory_space<vmem>>, vector<16x32xbf16>
    %cst_53 = arith.constant dense<0.000000e+00> : vector<128x32xf32>
    %116 = tpu.matmul %114, %115, %cst_53 {dimension_numbers = #tpu.dot_dimension_numbers<[1], [0], [0], [1], [0, 0, 1, 1], [], []>} : vector<128x16xbf16>, vector<16x32xbf16>, vector<128x32xf32> -> vector<128x32xf32>
    %117 = vector.shape_cast %116 : vector<128x32xf32> to vector<1x128x32xf32>
    %118 = vector.shape_cast %111 : vector<6x32xf32> to vector<6x1x32xf32>
    %119 = vector.broadcast %117 : vector<1x128x32xf32> to vector<6x128x32xf32>
    %120 = vector.broadcast %118 : vector<6x1x32xf32> to vector<6x128x32xf32>
    %121 = arith.addf %119, %120 : vector<6x128x32xf32>
    %122 = math.tanh %121 : vector<6x128x32xf32>
    %123 = vector.shape_cast %112 : vector<1x32xf32> to vector<1x1x32xf32>
    %124 = vector.broadcast %123 : vector<1x1x32xf32> to vector<6x128x32xf32>
    %125 = arith.mulf %122, %124 : vector<6x128x32xf32>
    %cst_54 = arith.constant dense<0.000000e+00> : vector<6x128xf32>
    %126 = vector.multi_reduction <add>, %125, %cst_54 [2] : vector<6x128x32xf32> to vector<6x128xf32>
    %c0_55 = arith.constant 0 : index
    %c0_56 = arith.constant 0 : index
    %c0_57 = arith.constant 0 : index
    %127 = vector.load %arg16[%c0_55, %c0_56, %c0_57] : memref<1x6x128xf32, #tpu.memory_space<vmem>>, vector<1x6x128xf32>
    %128 = vector.shape_cast %127 : vector<1x6x128xf32> to vector<6x128xf32>
    %129 = vector.shape_cast %126 : vector<6x128xf32> to vector<1x6x128xf32>
    tpu.vector_store %arg16[%c0_55, %c0_56, %c0_57], %129 {strides = array<i32>} : memref<1x6x128xf32, #tpu.memory_space<vmem>>, vector<1x6x128xf32>,
    return
  }
  func.func @transform_0(%arg0: i32, %arg1: memref<2xi32, #tpu.memory_space<smem>>, %arg2: memref<2xi32, #tpu.memory_space<smem>>) -> (i32, i32, i32) {
    %c0_i32 = arith.constant 0 : i32
    %c0_i32_0 = arith.constant 0 : i32
    %c0_i32_1 = arith.constant 0 : i32
    return %arg0, %c0_i32, %c0_i32_0 : i32, i32, i32
  }
  func.func @transform_1(%arg0: i32, %arg1: memref<2xi32, #tpu.memory_space<smem>>, %arg2: memref<2xi32, #tpu.memory_space<smem>>) -> (i32, i32, i32) {
    %c0_i32 = arith.constant 0 : i32
    %c0_i32_0 = arith.constant 0 : i32
    %c0_i32_1 = arith.constant 0 : i32
    return %arg0, %c0_i32, %c0_i32_0 : i32, i32, i32
  }
  func.func @transform_2(%arg0: i32, %arg1: memref<2xi32, #tpu.memory_space<smem>>, %arg2: memref<2xi32, #tpu.memory_space<smem>>) -> (i32, i32, i32) {
    %c0_i32 = arith.constant 0 : i32
    %c0_i32_0 = arith.constant 0 : i32
    %c0_i32_1 = arith.constant 0 : i32
    return %arg0, %c0_i32, %c0_i32_0 : i32, i32, i32
  }
  func.func @transform_3(%arg0: i32, %arg1: memref<2xi32, #tpu.memory_space<smem>>, %arg2: memref<2xi32, #tpu.memory_space<smem>>) -> (i32, i32) {
    %c0_i32 = arith.constant 0 : i32
    %c0_i32_0 = arith.constant 0 : i32
    %c0_i32_1 = arith.constant 0 : i32
    return %c0_i32, %c0_i32_0 : i32, i32
  }
  func.func @transform_4(%arg0: i32, %arg1: memref<2xi32, #tpu.memory_space<smem>>, %arg2: memref<2xi32, #tpu.memory_space<smem>>) -> (i32, i32) {
    %c0_i32 = arith.constant 0 : i32
    %c0_i32_0 = arith.constant 0 : i32
    %c0_i32_1 = arith.constant 0 : i32
    return %c0_i32, %c0_i32_0 : i32, i32
  }
  func.func @transform_5(%arg0: i32, %arg1: memref<2xi32, #tpu.memory_space<smem>>, %arg2: memref<2xi32, #tpu.memory_space<smem>>) -> (i32, i32) {
    %c0_i32 = arith.constant 0 : i32
    %c0_i32_0 = arith.constant 0 : i32
    %c0_i32_1 = arith.constant 0 : i32
    return %c0_i32, %c0_i32_0 : i32, i32
  }
  func.func @transform_6(%arg0: i32, %arg1: memref<2xi32, #tpu.memory_space<smem>>, %arg2: memref<2xi32, #tpu.memory_space<smem>>) -> (i32, i32) {
    %c0_i32 = arith.constant 0 : i32
    %c0_i32_0 = arith.constant 0 : i32
    %c0_i32_1 = arith.constant 0 : i32
    return %c0_i32, %c0_i32_0 : i32, i32
  }
  func.func @transform_7(%arg0: i32, %arg1: memref<2xi32, #tpu.memory_space<smem>>, %arg2: memref<2xi32, #tpu.memory_space<smem>>) -> (i32, i32) {
    %c0_i32 = arith.constant 0 : i32
    %c0_i32_0 = arith.constant 0 : i32
    %c0_i32_1 = arith.constant 0 : i32
    return %c0_i32, %c0_i32_0 : i32, i32
  }
  func.func @transform_8(%arg0: i32, %arg1: memref<2xi32, #tpu.memory_space<smem>>, %arg2: memref<2xi32, #tpu.memory_space<smem>>) -> (i32, i32) {
    %c0_i32 = arith.constant 0 : i32
    %c0_i32_0 = arith.constant 0 : i32
    %c0_i32_1 = arith.constant 0 : i32
    return %c0_i32, %c0_i32_0 : i32, i32
  }
  func.func @transform_9(%arg0: i32, %arg1: memref<2xi32, #tpu.memory_space<smem>>, %arg2: memref<2xi32, #tpu.memory_space<smem>>) -> (i32, i32) {
    %c0_i32 = arith.constant 0 : i32
    %c0_i32_0 = arith.constant 0 : i32
    %c0_i32_1 = arith.constant 0 : i32
    return %c0_i32, %c0_i32_0 : i32, i32
  }
  func.func @transform_10(%arg0: i32, %arg1: memref<2xi32, #tpu.memory_space<smem>>, %arg2: memref<2xi32, #tpu.memory_space<smem>>) -> (i32, i32) {
    %c0_i32 = arith.constant 0 : i32
    %c0_i32_0 = arith.constant 0 : i32
    %c0_i32_1 = arith.constant 0 : i32
    return %c0_i32, %c0_i32_0 : i32, i32
  }
  func.func @transform_11(%arg0: i32, %arg1: memref<2xi32, #tpu.memory_space<smem>>, %arg2: memref<2xi32, #tpu.memory_space<smem>>) -> (i32, i32) {
    %c0_i32 = arith.constant 0 : i32
    %c0_i32_0 = arith.constant 0 : i32
    %c0_i32_1 = arith.constant 0 : i32
    return %c0_i32, %c0_i32_0 : i32, i32
  }
  func.func @transform_12(%arg0: i32, %arg1: memref<2xi32, #tpu.memory_space<smem>>, %arg2: memref<2xi32, #tpu.memory_space<smem>>) -> (i32, i32) {
    %c0_i32 = arith.constant 0 : i32
    %c0_i32_0 = arith.constant 0 : i32
    %c0_i32_1 = arith.constant 0 : i32
    return %c0_i32, %c0_i32_0 : i32, i32
  }
  func.func @transform_13(%arg0: i32, %arg1: memref<2xi32, #tpu.memory_space<smem>>, %arg2: memref<2xi32, #tpu.memory_space<smem>>) -> (i32, i32, i32) {
    %c0_i32 = arith.constant 0 : i32
    %c0_i32_0 = arith.constant 0 : i32
    %c0_i32_1 = arith.constant 0 : i32
    return %arg0, %c0_i32, %c0_i32_0 : i32, i32, i32
  }
}

</mosaic_0001>

<llo_original>
// kernel: lstm_pointer_net_forward.2
$region0: #{lstm_pointer_net_forward.2}
  #allocation0 [shape = 'u32[]', space=smem, size = 0x4, offset = 0x4, fixed_abs, tag = 'smem constant byte address 0x4 - core index']
  #allocation1 [shape = 'u32[144,128]{1,0:T(1,128)}', space=vmem, size = 0x12000, scoped, tag = 'internal scratch']
  #allocation2 [shape = 'f32[12,128]{1,0:T(8,128)}', space=vmem, size = 0x2000, scoped, tag = 'scratch operand']
  %s0 = inlined_call_operand.vmem [shape: bf16[12,16], index: 0, kind: input, shape index: {}]
  %s1 = inlined_call_operand.vmem [shape: bf16[16,128], index: 1, kind: input, shape index: {}]
  %s2 = inlined_call_operand.vmem [shape: bf16[32,128], index: 2, kind: input, shape index: {}]
  %s3 = inlined_call_operand.vmem [shape: f32[1,128], index: 3, kind: input, shape index: {}]
  %s4 = inlined_call_operand.vmem [shape: f32[1,32], index: 4, kind: input, shape index: {}]
  %s5 = inlined_call_operand.vmem [shape: f32[1,32], index: 5, kind: input, shape index: {}]
  %s6 = inlined_call_operand.vmem [shape: bf16[6,2,32], index: 6, kind: output, shape index: {}]
  %s7 = sld [smem:[#allocation0]]
  $region34: #{lstm_pointer_net_forward.2} parent=0
    _
  %s9 = ssub.s32 1, %s7
  %s10 = scalar_select 0, %s9, %s7
  // Predicated region
  $region2: #{lstm_pointer_net_forward.2} parent=0 // pred_check
    _
  $region3: #{lstm_pointer_net_forward.2} parent=0 // pred_check_branch
    %12 = sbr.rel (0) target = $region5
  $region4: #{lstm_pointer_net_forward.2} parent=0 // pred_region
    _
  $region5: #{lstm_pointer_net_forward.2} parent=0 // pred_fallthru
    _
  // Predicated region
  $region6: #{lstm_pointer_net_forward.2} parent=0 // pred_check
    _
  $region7: #{lstm_pointer_net_forward.2} parent=0 // pred_check_branch
    %14 = sbr.rel (0) target = $region9
  $region8: #{lstm_pointer_net_forward.2} parent=0 // pred_region
    _
  $region9: #{lstm_pointer_net_forward.2} parent=0 // pred_fallthru
    _
  // Predicated region
  $region10: #{lstm_pointer_net_forward.2} parent=0 // pred_check
    _
  $region11: #{lstm_pointer_net_forward.2} parent=0 // pred_check_branch
    %16 = sbr.rel (0) target = $region13
  $region12: #{lstm_pointer_net_forward.2} parent=0 // pred_region
    _
  $region13: #{lstm_pointer_net_forward.2} parent=0 // pred_fallthru
    _
  // Predicated region
  $region14: #{lstm_pointer_net_forward.2} parent=0 // pred_check
    _
  $region15: #{lstm_pointer_net_forward.2} parent=0 // pred_check_branch
    %18 = sbr.rel (0) target = $region17
  $region16: #{lstm_pointer_net_forward.2} parent=0 // pred_region
    _
  $region17: #{lstm_pointer_net_forward.2} parent=0 // pred_fallthru
    _
  // Predicated region
  $region18: #{lstm_pointer_net_forward.2} parent=0 // pred_check
    _
  $region19: #{lstm_pointer_net_forward.2} parent=0 // pred_check_branch
    %20 = sbr.rel (0) target = $region21
  $region20: #{lstm_pointer_net_forward.2} parent=0 // pred_region
    _
  $region21: #{lstm_pointer_net_forward.2} parent=0 // pred_fallthru
    _
  // Predicated region
  $region22: #{lstm_pointer_net_forward.2} parent=0 // pred_check
    _
  $region23: #{lstm_pointer_net_forward.2} parent=0 // pred_check_branch
    %22 = sbr.rel (0) target = $region25
  $region24: #{lstm_pointer_net_forward.2} parent=0 // pred_region
    _
  $region25: #{lstm_pointer_net_forward.2} parent=0 // pred_fallthru
    _
  %v24 = vld [vmem:[%s0] sm:$0xf]
  %v25 = vld [vmem:[%s0 + $0x4] sm:$0x3]
  %v26 = vld [vmem:[%s1] sm:$0xf]
  %v27 = vld [vmem:[%s1 + $0x4] sm:$0xf]
  %v28 = vld [vmem:[%s3] sm:$0x1]
  %v30 = vlaneseq
  %v31 = vshrl.u32 %v30, 7
  %v32 = vsub.s32 0, %v31
  %v33 = vrot.slane %v28, %v32
  %v37 = vunpack.c.l.b16 %v24
  %v38 = vunpack.c.l.b16 %v25
  %v39 = vpack.c.b16 %v38, %v37
  %v42 = vunpack.c.l.b16 %v26
  %v43 = vunpack.c.l.b16 %v27
  %v44 = vpack.c.b16 %v43, %v42
  %vm46 = vcmask 130048
  %v48 = vsel %vm46, %v39, 0
  %50 = vmatprep.subr.bf16.mxu0 0
  %51 = vmatpush1.bf16.msra.mxu0 0
  %52 = vmatprep.subr.bf16.mxu0 0
  %53 = vmatpush1.bf16.msra.mxu0 0
  %54 = vmatprep.subr.bf16.mxu0 0
  %55 = vmatpush1.bf16.msra.mxu0 0
  %56 = vmatprep.subr.bf16.mxu0 0
  %57 = vmatpush1.bf16.msra.mxu0 0
  %58 = vmatprep.subr.bf16.mxu0 0
  %59 = vmatpush1.bf16.msra.mxu0 0
  %60 = vmatprep.subr.bf16.mxu0 0
  %61 = vmatpush1.bf16.msra.mxu0 0
  %62 = vmatprep.subr.bf16.mxu0 0
  %63 = vmatpush1.bf16.msra.mxu0 0
  %64 = vmatprep.subr.bf16.mxu0 0
  %65 = vmatpush1.bf16.msra.mxu0 %v44
  %66 = vmatprep.subr.bf16.mxu0 0
  %67 = vmatpush2.bf16.msra.mxu0 0
  %68 = vmatprep.subr.bf16.mxu0 0
  %69 = vmatpush2.bf16.msra.mxu0 0
  %70 = vmatprep.subr.bf16.mxu0 0
  %71 = vmatpush2.bf16.msra.mxu0 0
  %72 = vmatprep.subr.bf16.mxu0 0
  %73 = vmatpush2.bf16.msra.mxu0 0
  %74 = vmatprep.subr.bf16.mxu0 0
  %75 = vmatpush2.bf16.msra.mxu0 0
  %76 = vmatprep.subr.bf16.mxu0 0
  %77 = vmatpush2.bf16.msra.mxu0 0
  %78 = vmatprep.subr.bf16.mxu0 0
  %79 = vmatpush2.bf16.msra.mxu0 0
  %80 = vmatprep.subr.bf16.mxu0 0
  %81 = vmatpush2.bf16.msra.mxu0 0
  %82 = vmatprep.mubr.bf16.mxu0 0
  %83 = vmatmul.mubr.bf16.gmra.mxu0 %v48
  %v84 = vpop.f32.mrf.mxu0
  %v85 = vadd.f32 %v33, %v84
  %v86 = vpop.f32.mrf.mxu0
  %v87 = vpop.f32.mrf.mxu0
  %v88 = vadd.f32 %v33, %v87
  %v89 = vpop.f32.mrf.mxu0
  %90 = vdwg.mxu0
  %91 = vst [vmem:[#allocation2] sm:$0xff] %v85
  %92 = vst [vmem:[#allocation2 + $0x8] sm:$0xf] %v88
  %v93 = vld [vmem:[%s4] sm:$0x1]
  %v95 = vlaneseq
  %v96 = vshrl.u32 %v95, 7
  %v97 = vsub.s32 0, %v96
  %v98 = vrot.slane %v93, %v97
  %v100 = vld [vmem:[%s5] sm:$0x1]
  %v102 = vlaneseq
  %v103 = vshrl.u32 %v102, 7
  %v104 = vsub.s32 0, %v103
  %v105 = vrot.slane %v100, %v104
  %v106 = vld [vmem:[#allocation2] sm:$0x3]
  %v107 = vpack.c.bf16 %v98, %v98
  %v108 = vld [vmem:[%s2] sm:$0xf]
  %v109 = vld [vmem:[%s2 + $0x4] sm:$0xf]
  %v110 = vld [vmem:[%s2 + $0x8] sm:$0xf]
  %v111 = vld [vmem:[%s2 + $0xc] sm:$0xf]
  %v116 = vunpack.c.l.b16 %v108
  %v117 = vunpack.c.l.b16 %v109
  %v118 = vunpack.c.l.b16 %v110
  %v119 = vunpack.c.l.b16 %v111
  %v120 = vpack.c.b16 %v117, %v116
  %v121 = vpack.c.b16 %v119, %v118
  %vm124 = vcmask 261120
  %v126 = vsel %vm124, %v107, 0
  %128 = vmatprep.subr.bf16.mxu0 0
  %129 = vmatpush1.bf16.msra.mxu0 0
  %130 = vmatprep.subr.bf16.mxu0 0
  %131 = vmatpush1.bf16.msra.mxu0 0
  %132 = vmatprep.subr.bf16.mxu0 0
  %133 = vmatpush1.bf16.msra.mxu0 0
  %134 = vmatprep.subr.bf16.mxu0 0
  %135 = vmatpush1.bf16.msra.mxu0 0
  %136 = vmatprep.subr.bf16.mxu0 0
  %137 = vmatpush1.bf16.msra.mxu0 0
  %138 = vmatprep.subr.bf16.mxu0 0
  %139 = vmatpush1.bf16.msra.mxu0 0
  %140 = vmatprep.subr.bf16.mxu0 0
  %141 = vmatpush1.bf16.msra.mxu0 %v121
  %142 = vmatprep.subr.bf16.mxu0 0
  %143 = vmatpush1.bf16.msra.mxu0 %v120
  %144 = vmatprep.subr.bf16.mxu0 0
  %145 = vmatpush2.bf16.msra.mxu0 0
  %146 = vmatprep.subr.bf16.mxu0 0
  %147 = vmatpush2.bf16.msra.mxu0 0
  %148 = vmatprep.subr.bf16.mxu0 0
  %149 = vmatpush2.bf16.msra.mxu0 0
  %150 = vmatprep.subr.bf16.mxu0 0
  %151 = vmatpush2.bf16.msra.mxu0 0
  %152 = vmatprep.subr.bf16.mxu0 0
  %153 = vmatpush2.bf16.msra.mxu0 0
  %154 = vmatprep.subr.bf16.mxu0 0
  %155 = vmatpush2.bf16.msra.mxu0 0
  %156 = vmatprep.subr.bf16.mxu0 0
  %157 = vmatpush2.bf16.msra.mxu0 0
  %158 = vmatprep.subr.bf16.mxu0 0
  %159 = vmatpush2.bf16.msra.mxu0 0
  %160 = vmatprep.mubr.bf16.mxu0 0
  %161 = vmatmul.mubr.bf16.gmra.mxu0 %v126
  %v162 = vpop.f32.mrf.mxu0
  %v163 = vadd.f32 0.0, %v162
  %v164 = vpop.f32.mrf.mxu0
  %v165 = vpop.f32.mrf.mxu0
  %v166 = vpop.f32.mrf.mxu0
  %167 = vdwg.mxu0
  %v168 = vadd.f32 %v106, %v163
  %v169 = vxor.u32 %v168, 2147483648
  %v170 = vmul.f32 %v169, 1.442695
  %v171 = vpow.pop %v170
  %v172 = vadd.f32 %v171, 1.0
  %v173 = vrcp.pop %v172
  %v174 = vmul.f32 1.0, %v173
  %v175 = vtanh.pop %v168
  %176 = vrot.lane.b32.xlu0 %v105, 32
  %v177 = vpop.permute.xlu0 %176
  %v179 = vmul.f32 %v174, %v177
  %181 = vrot.lane.b32.xlu0 %v175, 64
  %v182 = vpop.permute.xlu0 %181
  %v184 = vmul.f32 %v174, %v182
  %186 = vrot.lane.b32.xlu0 %v184, 32
  %v187 = vpop.permute.xlu0 %186
  %v189 = vadd.f32 %v179, %v187
  %v190 = vtanh.pop %v189
  %192 = vrot.lane.b32.xlu0 %v190, 64
  %v193 = vpop.permute.xlu0 %192
  %v195 = vmul.f32 %v174, %v193
  %v196 = vpack.c.bf16 %v195, %v195
  %v199 = vunpack.c.l.s4 1966171168
  %v200 = vunpack.c.0.s8 %v199
  %v201 = vlaneseq
  %v202 = vshrl.u32 %v201, 7
  %v203 = vsub.s32 %v200, %v202
  %v204 = vrot.slane %v196, %v203
  %v206 = vunpack.c.l.s4 1966171168
  %v207 = vunpack.c.0.s8 %v206
  %v208 = vlaneseq
  %v209 = vshrl.u32 %v208, 7
  %v210 = vsub.s32 %v207, %v209
  %v211 = vrot.slane %v204, %v210
  %212 = vrot.lane.b32.xlu0 %v211, 32
  %v213 = vpop.permute.xlu0 %212
  %vm215 = vcmask 253952
  %216 = vst.msk [vmem:[%s6] sm:$0x1] %vm215, %v213
  %v217 = vld [vmem:[#allocation2 + $0x2] sm:$0x3]
  %v218 = vld [vmem:[%s2] sm:$0xf]
  %v219 = vld [vmem:[%s2 + $0x4] sm:$0xf]
  %v220 = vld [vmem:[%s2 + $0x8] sm:$0xf]
  %v221 = vld [vmem:[%s2 + $0xc] sm:$0xf]
  %222 = vrot.lane.b32.xlu0 %v196, 32
  %v223 = vpop.permute.xlu0 %222
  %v228 = vunpack.c.l.b16 %v218
  %v229 = vunpack.c.l.b16 %v219
  %v230 = vunpack.c.l.b16 %v220
  %v231 = vunpack.c.l.b16 %v221
  %v232 = vpack.c.b16 %v229, %v228
  %v233 = vpack.c.b16 %v231, %v230
  %v237 = vsel %vm124, %v223, 0
  %239 = vmatprep.subr.bf16.mxu0 0
  %240 = vmatpush1.bf16.msra.mxu0 0
  %241 = vmatprep.subr.bf16.mxu0 0
  %242 = vmatpush1.bf16.msra.mxu0 0
  %243 = vmatprep.subr.bf16.mxu0 0
  %244 = vmatpush1.bf16.msra.mxu0 0
  %245 = vmatprep.subr.bf16.mxu0 0
  %246 = vmatpush1.bf16.msra.mxu0 0
  %247 = vmatprep.subr.bf16.mxu0 0
  %248 = vmatpush1.bf16.msra.mxu0 0
  %249 = vmatprep.subr.bf16.mxu0 0
  %250 = vmatpush1.bf16.msra.mxu0 0
  %251 = vmatprep.subr.bf16.mxu0 0
  %252 = vmatpush1.bf16.msra.mxu0 %v233
  %253 = vmatprep.subr.bf16.mxu0 0
  %254 = vmatpush1.bf16.msra.mxu0 %v232
  %255 = vmatprep.subr.bf16.mxu0 0
  %256 = vmatpush2.bf16.msra.mxu0 0
  %257 = vmatprep.subr.bf16.mxu0 0
  %258 = vmatpush2.bf16.msra.mxu0 0
  %259 = vmatprep.subr.bf16.mxu0 0
  %260 = vmatpush2.bf16.msra.mxu0 0
  %261 = vmatprep.subr.bf16.mxu0 0
  %262 = vmatpush2.bf16.msra.mxu0 0
  %263 = vmatprep.subr.bf16.mxu0 0
  %264 = vmatpush2.bf16.msra.mxu0 0
  %265 = vmatprep.subr.bf16.mxu0 0
  %266 = vmatpush2.bf16.msra.mxu0 0
  %267 = vmatprep.subr.bf16.mxu0 0
  %268 = vmatpush2.bf16.msra.mxu0 0
  %269 = vmatprep.subr.bf16.mxu0 0
  %270 = vmatpush2.bf16.msra.mxu0 0
  %271 = vmatprep.mubr.bf16.mxu0 0
  %272 = vmatmul.mubr.bf16.gmra.mxu0 %v237
  %v273 = vpop.f32.mrf.mxu0
  %v274 = vadd.f32 0.0, %v273
  %v275 = vpop.f32.mrf.mxu0
  %v276 = vpop.f32.mrf.mxu0
  %v277 = vpop.f32.mrf.mxu0
  %278 = vdwg.mxu0
  %v279 = vadd.f32 %v217, %v274
  %v280 = vxor.u32 %v279, 2147483648
  %v281 = vmul.f32 %v280, 1.442695
  %v282 = vpow.pop %v281
  %v283 = vadd.f32 %v282, 1.0
  %v284 = vrcp.pop %v283
  %v285 = vmul.f32 1.0, %v284
  %v286 = vtanh.pop %v279
  %v287 = vmul.f32 %v285, %v189
  %289 = vrot.lane.b32.xlu0 %v286, 64
  %v290 = vpop.permute.xlu0 %289
  %v292 = vmul.f32 %v285, %v290
  %294 = vrot.lane.b32.xlu0 %v292, 32
  %v295 = vpop.permute.xlu0 %294
  %v297 = vadd.f32 %v287, %v295
  %v298 = vtanh.pop %v297
  %300 = vrot.lane.b32.xlu0 %v298, 64
  %v301 = vpop.permute.xlu0 %300
  %v303 = vmul.f32 %v285, %v301
  %v304 = vpack.c.bf16 %v303, %v303
  %v307 = vunpack.c.l.s4 1966171168
  %v308 = vunpack.c.0.s8 %v307
  %v309 = vlaneseq
  %v310 = vshrl.u32 %v309, 7
  %v311 = vsub.s32 %v308, %v310
  %v312 = vrot.slane %v304, %v311
  %v314 = vunpack.c.l.s4 1966171168
  %v315 = vunpack.c.0.s8 %v314
  %v316 = vlaneseq
  %v317 = vshrl.u32 %v316, 7
  %v318 = vsub.s32 %v315, %v317
  %v319 = vrot.slane %v312, %v318
  %320 = vrot.lane.b32.xlu0 %v319, 32
  %v321 = vpop.permute.xlu0 %320
  %s323 = scalar_lea.vmem %s6, 1
  %324 = vst.msk [vmem:[%s323] sm:$0x1] %vm215, %v321
  %v325 = vld [vmem:[#allocation2 + $0x4] sm:$0x3]
  %v326 = vld [vmem:[%s2] sm:$0xf]
  %v327 = vld [vmem:[%s2 + $0x4] sm:$0xf]
  %v328 = vld [vmem:[%s2 + $0x8] sm:$0xf]
  %v329 = vld [vmem:[%s2 + $0xc] sm:$0xf]
  %330 = vrot.lane.b32.xlu0 %v304, 32
  %v331 = vpop.permute.xlu0 %330
  %v336 = vunpack.c.l.b16 %v326
  %v337 = vunpack.c.l.b16 %v327
  %v338 = vunpack.c.l.b16 %v328
  %v339 = vunpack.c.l.b16 %v329
  %v340 = vpack.c.b16 %v337, %v336
  %v341 = vpack.c.b16 %v339, %v338
  %v345 = vsel %vm124, %v331, 0
  %347 = vmatprep.subr.bf16.mxu0 0
  %348 = vmatpush1.bf16.msra.mxu0 0
  %349 = vmatprep.subr.bf16.mxu0 0
  %350 = vmatpush1.bf16.msra.mxu0 0
  %351 = vmatprep.subr.bf16.mxu0 0
  %352 = vmatpush1.bf16.msra.mxu0 0
  %353 = vmatprep.subr.bf16.mxu0 0
  %354 = vmatpush1.bf16.msra.mxu0 0
  %355 = vmatprep.subr.bf16.mxu0 0
  %356 = vmatpush1.bf16.msra.mxu0 0
  %357 = vmatprep.subr.bf16.mxu0 0
  %358 = vmatpush1.bf16.msra.mxu0 0
  %359 = vmatprep.subr.bf16.mxu0 0
  %360 = vmatpush1.bf16.msra.mxu0 %v341
  %361 = vmatprep.subr.bf16.mxu0 0
  %362 = vmatpush1.bf16.msra.mxu0 %v340
  %363 = vmatprep.subr.bf16.mxu0 0
  %364 = vmatpush2.bf16.msra.mxu0 0
  %365 = vmatprep.subr.bf16.mxu0 0
  %366 = vmatpush2.bf16.msra.mxu0 0
  %367 = vmatprep.subr.bf16.mxu0 0
  %368 = vmatpush2.bf16.msra.mxu0 0
  %369 = vmatprep.subr.bf16.mxu0 0
  %370 = vmatpush2.bf16.msra.mxu0 0
  %371 = vmatprep.subr.bf16.mxu0 0
  %372 = vmatpush2.bf16.msra.mxu0 0
  %373 = vmatprep.subr.bf16.mxu0 0
  %374 = vmatpush2.bf16.msra.mxu0 0
  %375 = vmatprep.subr.bf16.mxu0 0
  %376 = vmatpush2.bf16.msra.mxu0 0
  %377 = vmatprep.subr.bf16.mxu0 0
  %378 = vmatpush2.bf16.msra.mxu0 0
  %379 = vmatprep.mubr.bf16.mxu0 0
  %380 = vmatmul.mubr.bf16.gmra.mxu0 %v345
  %v381 = vpop.f32.mrf.mxu0
  %v382 = vadd.f32 0.0, %v381
  %v383 = vpop.f32.mrf.mxu0
  %v384 = vpop.f32.mrf.mxu0
  %v385 = vpop.f32.mrf.mxu0
  %386 = vdwg.mxu0
  %v387 = vadd.f32 %v325, %v382
  %v388 = vxor.u32 %v387, 2147483648
  %v389 = vmul.f32 %v388, 1.442695
  %v390 = vpow.pop %v389
  %v391 = vadd.f32 %v390, 1.0
  %v392 = vrcp.pop %v391
  %v393 = vmul.f32 1.0, %v392
  %v394 = vtanh.pop %v387
  %v395 = vmul.f32 %v393, %v297
  %397 = vrot.lane.b32.xlu0 %v394, 64
  %v398 = vpop.permute.xlu0 %397
  %v400 = vmul.f32 %v393, %v398
  %402 = vrot.lane.b32.xlu0 %v400, 32
  %v403 = vpop.permute.xlu0 %402
  %v405 = vadd.f32 %v395, %v403
  %v406 = vtanh.pop %v405
  %408 = vrot.lane.b32.xlu0 %v406, 64
  %v409 = vpop.permute.xlu0 %408
  %v411 = vmul.f32 %v393, %v409
  %v412 = vpack.c.bf16 %v411, %v411
  %v415 = vunpack.c.l.s4 1966171168
  %v416 = vunpack.c.0.s8 %v415
  %v417 = vlaneseq
  %v418 = vshrl.u32 %v417, 7
  %v419 = vsub.s32 %v416, %v418
  %v420 = vrot.slane %v412, %v419
  %v422 = vunpack.c.l.s4 1966171168
  %v423 = vunpack.c.0.s8 %v422
  %v424 = vlaneseq
  %v425 = vshrl.u32 %v424, 7
  %v426 = vsub.s32 %v423, %v425
  %v427 = vrot.slane %v420, %v426
  %428 = vrot.lane.b32.xlu0 %v427, 32
  %v429 = vpop.permute.xlu0 %428
  %s431 = scalar_lea.vmem %s6, 2
  %432 = vst.msk [vmem:[%s431] sm:$0x1] %vm215, %v429
  %v433 = vld [vmem:[#allocation2 + $0x6] sm:$0x3]
  %v434 = vld [vmem:[%s2] sm:$0xf]
  %v435 = vld [vmem:[%s2 + $0x4] sm:$0xf]
  %v436 = vld [vmem:[%s2 + $0x8] sm:$0xf]
  %v437 = vld [vmem:[%s2 + $0xc] sm:$0xf]
  %438 = vrot.lane.b32.xlu0 %v412, 32
  %v439 = vpop.permute.xlu0 %438
  %v444 = vunpack.c.l.b16 %v434
  %v445 = vunpack.c.l.b16 %v435
  %v446 = vunpack.c.l.b16 %v436
  %v447 = vunpack.c.l.b16 %v437
  %v448 = vpack.c.b16 %v445, %v444
  %v449 = vpack.c.b16 %v447, %v446
  %v453 = vsel %vm124, %v439, 0
  %455 = vmatprep.subr.bf16.mxu0 0
  %456 = vmatpush1.bf16.msra.mxu0 0
  %457 = vmatprep.subr.bf16.mxu0 0
  %458 = vmatpush1.bf16.msra.mxu0 0
  %459 = vmatprep.subr.bf16.mxu0 0
  %460 = vmatpush1.bf16.msra.mxu0 0
  %461 = vmatprep.subr.bf16.mxu0 0
  %462 = vmatpush1.bf16.msra.mxu0 0
  %463 = vmatprep.subr.bf16.mxu0 0
  %464 = vmatpush1.bf16.msra.mxu0 0
  %465 = vmatprep.subr.bf16.mxu0 0
  %466 = vmatpush1.bf16.msra.mxu0 0
  %467 = vmatprep.subr.bf16.mxu0 0
  %468 = vmatpush1.bf16.msra.mxu0 %v449
  %469 = vmatprep.subr.bf16.mxu0 0
  %470 = vmatpush1.bf16.msra.mxu0 %v448
  %471 = vmatprep.subr.bf16.mxu0 0
  %472 = vmatpush2.bf16.msra.mxu0 0
  %473 = vmatprep.subr.bf16.mxu0 0
  %474 = vmatpush2.bf16.msra.mxu0 0
  %475 = vmatprep.subr.bf16.mxu0 0
  %476 = vmatpush2.bf16.msra.mxu0 0
  %477 = vmatprep.subr.bf16.mxu0 0
  %478 = vmatpush2.bf16.msra.mxu0 0
  %479 = vmatprep.subr.bf16.mxu0 0
  %480 = vmatpush2.bf16.msra.mxu0 0
  %481 = vmatprep.subr.bf16.mxu0 0
  %482 = vmatpush2.bf16.msra.mxu0 0
  %483 = vmatprep.subr.bf16.mxu0 0
  %484 = vmatpush2.bf16.msra.mxu0 0
  %485 = vmatprep.subr.bf16.mxu0 0
  %486 = vmatpush2.bf16.msra.mxu0 0
  %487 = vmatprep.mubr.bf16.mxu0 0
  %488 = vmatmul.mubr.bf16.gmra.mxu0 %v453
  %v489 = vpop.f32.mrf.mxu0
  %v490 = vadd.f32 0.0, %v489
  %v491 = vpop.f32.mrf.mxu0
  %v492 = vpop.f32.mrf.mxu0
  %v493 = vpop.f32.mrf.mxu0
  %494 = vdwg.mxu0
  %v495 = vadd.f32 %v433, %v490
  %v496 = vxor.u32 %v495, 2147483648
  %v497 = vmul.f32 %v496, 1.442695
  %v498 = vpow.pop %v497
  %v499 = vadd.f32 %v498, 1.0
  %v500 = vrcp.pop %v499
  %v501 = vmul.f32 1.0, %v500
  %v502 = vtanh.pop %v495
  %v503 = vmul.f32 %v501, %v405
  %505 = vrot.lane.b32.xlu0 %v502, 64
  %v506 = vpop.permute.xlu0 %505
  %v508 = vmul.f32 %v501, %v506
  %510 = vrot.lane.b32.xlu0 %v508, 32
  %v511 = vpop.permute.xlu0 %510
  %v513 = vadd.f32 %v503, %v511
  %v514 = vtanh.pop %v513
  %516 = vrot.lane.b32.xlu0 %v514, 64
  %v517 = vpop.permute.xlu0 %516
  %v519 = vmul.f32 %v501, %v517
  %v520 = vpack.c.bf16 %v519, %v519
  %v523 = vunpack.c.l.s4 1966171168
  %v524 = vunpack.c.0.s8 %v523
  %v525 = vlaneseq
  %v526 = vshrl.u32 %v525, 7
  %v527 = vsub.s32 %v524, %v526
  %v528 = vrot.slane %v520, %v527
  %v530 = vunpack.c.l.s4 1966171168
  %v531 = vunpack.c.0.s8 %v530
  %v532 = vlaneseq
  %v533 = vshrl.u32 %v532, 7
  %v534 = vsub.s32 %v531, %v533
  %v535 = vrot.slane %v528, %v534
  %536 = vrot.lane.b32.xlu0 %v535, 32
  %v537 = vpop.permute.xlu0 %536
  %s539 = scalar_lea.vmem %s6, 3
  %540 = vst.msk [vmem:[%s539] sm:$0x1] %vm215, %v537
  %v541 = vld [vmem:[#allocation2 + $0x8] sm:$0x3]
  %v542 = vld [vmem:[%s2] sm:$0xf]
  %v543 = vld [vmem:[%s2 + $0x4] sm:$0xf]
  %v544 = vld [vmem:[%s2 + $0x8] sm:$0xf]
  %v545 = vld [vmem:[%s2 + $0xc] sm:$0xf]
  %546 = vrot.lane.b32.xlu0 %v520, 32
  %v547 = vpop.permute.xlu0 %546
  %v552 = vunpack.c.l.b16 %v542
  %v553 = vunpack.c.l.b16 %v543
  %v554 = vunpack.c.l.b16 %v544
  %v555 = vunpack.c.l.b16 %v545
  %v556 = vpack.c.b16 %v553, %v552
  %v557 = vpack.c.b16 %v555, %v554
  %v561 = vsel %vm124, %v547, 0
  %563 = vmatprep.subr.bf16.mxu0 0
  %564 = vmatpush1.bf16.msra.mxu0 0
  %565 = vmatprep.subr.bf16.mxu0 0
  %566 = vmatpush1.bf16.msra.mxu0 0
  %567 = vmatprep.subr.bf16.mxu0 0
  %568 = vmatpush1.bf16.msra.mxu0 0
  %569 = vmatprep.subr.bf16.mxu0 0
  %570 = vmatpush1.bf16.msra.mxu0 0
  %571 = vmatprep.subr.bf16.mxu0 0
  %572 = vmatpush1.bf16.msra.mxu0 0
  %573 = vmatprep.subr.bf16.mxu0 0
  %574 = vmatpush1.bf16.msra.mxu0 0
  %575 = vmatprep.subr.bf16.mxu0 0
  %576 = vmatpush1.bf16.msra.mxu0 %v557
  %577 = vmatprep.subr.bf16.mxu0 0
  %578 = vmatpush1.bf16.msra.mxu0 %v556
  %579 = vmatprep.subr.bf16.mxu0 0
  %580 = vmatpush2.bf16.msra.mxu0 0
  %581 = vmatprep.subr.bf16.mxu0 0
  %582 = vmatpush2.bf16.msra.mxu0 0
  %583 = vmatprep.subr.bf16.mxu0 0
  %584 = vmatpush2.bf16.msra.mxu0 0
  %585 = vmatprep.subr.bf16.mxu0 0
  %586 = vmatpush2.bf16.msra.mxu0 0
  %587 = vmatprep.subr.bf16.mxu0 0
  %588 = vmatpush2.bf16.msra.mxu0 0
  %589 = vmatprep.subr.bf16.mxu0 0
  %590 = vmatpush2.bf16.msra.mxu0 0
  %591 = vmatprep.subr.bf16.mxu0 0
  %592 = vmatpush2.bf16.msra.mxu0 0
  %593 = vmatprep.subr.bf16.mxu0 0
  %594 = vmatpush2.bf16.msra.mxu0 0
  %595 = vmatprep.mubr.bf16.mxu0 0
  %596 = vmatmul.mubr.bf16.gmra.mxu0 %v561
  %v597 = vpop.f32.mrf.mxu0
  %v598 = vadd.f32 0.0, %v597
  %v599 = vpop.f32.mrf.mxu0
  %v600 = vpop.f32.mrf.mxu0
  %v601 = vpop.f32.mrf.mxu0
  %602 = vdwg.mxu0
  %v603 = vadd.f32 %v541, %v598
  %v604 = vxor.u32 %v603, 2147483648
  %v605 = vmul.f32 %v604, 1.442695
  %v606 = vpow.pop %v605
  %v607 = vadd.f32 %v606, 1.0
  %v608 = vrcp.pop %v607
  %v609 = vmul.f32 1.0, %v608
  %v610 = vtanh.pop %v603
  %v611 = vmul.f32 %v609, %v513
  %613 = vrot.lane.b32.xlu0 %v610, 64
  %v614 = vpop.permute.xlu0 %613
  %v616 = vmul.f32 %v609, %v614
  %618 = vrot.lane.b32.xlu0 %v616, 32
  %v619 = vpop.permute.xlu0 %618
  %v621 = vadd.f32 %v611, %v619
  %v622 = vtanh.pop %v621
  %624 = vrot.lane.b32.xlu0 %v622, 64
  %v625 = vpop.permute.xlu0 %624
  %v627 = vmul.f32 %v609, %v625
  %v628 = vpack.c.bf16 %v627, %v627
  %v631 = vunpack.c.l.s4 1966171168
  %v632 = vunpack.c.0.s8 %v631
  %v633 = vlaneseq
  %v634 = vshrl.u32 %v633, 7
  %v635 = vsub.s32 %v632, %v634
  %v636 = vrot.slane %v628, %v635
  %v638 = vunpack.c.l.s4 1966171168
  %v639 = vunpack.c.0.s8 %v638
  %v640 = vlaneseq
  %v641 = vshrl.u32 %v640, 7
  %v642 = vsub.s32 %v639, %v641
  %v643 = vrot.slane %v636, %v642
  %644 = vrot.lane.b32.xlu0 %v643, 32
  %v645 = vpop.permute.xlu0 %644
  %s647 = scalar_lea.vmem %s6, 4
  %648 = vst.msk [vmem:[%s647] sm:$0x1] %vm215, %v645
  %v649 = vld [vmem:[#allocation2 + $0xa] sm:$0x3]
  %v650 = vld [vmem:[%s2] sm:$0xf]
  %v651 = vld [vmem:[%s2 + $0x4] sm:$0xf]
  %v652 = vld [vmem:[%s2 + $0x8] sm:$0xf]
  %v653 = vld [vmem:[%s2 + $0xc] sm:$0xf]
  %654 = vrot.lane.b32.xlu0 %v628, 32
  %v655 = vpop.permute.xlu0 %654
  %v660 = vunpack.c.l.b16 %v650
  %v661 = vunpack.c.l.b16 %v651
  %v662 = vunpack.c.l.b16 %v652
  %v663 = vunpack.c.l.b16 %v653
  %v664 = vpack.c.b16 %v661, %v660
  %v665 = vpack.c.b16 %v663, %v662
  %v669 = vsel %vm124, %v655, 0
  %671 = vmatprep.subr.bf16.mxu0 0
  %672 = vmatpush1.bf16.msra.mxu0 0
  %673 = vmatprep.subr.bf16.mxu0 0
  %674 = vmatpush1.bf16.msra.mxu0 0
  %675 = vmatprep.subr.bf16.mxu0 0
  %676 = vmatpush1.bf16.msra.mxu0 0
  %677 = vmatprep.subr.bf16.mxu0 0
  %678 = vmatpush1.bf16.msra.mxu0 0
  %679 = vmatprep.subr.bf16.mxu0 0
  %680 = vmatpush1.bf16.msra.mxu0 0
  %681 = vmatprep.subr.bf16.mxu0 0
  %682 = vmatpush1.bf16.msra.mxu0 0
  %683 = vmatprep.subr.bf16.mxu0 0
  %684 = vmatpush1.bf16.msra.mxu0 %v665
  %685 = vmatprep.subr.bf16.mxu0 0
  %686 = vmatpush1.bf16.msra.mxu0 %v664
  %687 = vmatprep.subr.bf16.mxu0 0
  %688 = vmatpush2.bf16.msra.mxu0 0
  %689 = vmatprep.subr.bf16.mxu0 0
  %690 = vmatpush2.bf16.msra.mxu0 0
  %691 = vmatprep.subr.bf16.mxu0 0
  %692 = vmatpush2.bf16.msra.mxu0 0
  %693 = vmatprep.subr.bf16.mxu0 0
  %694 = vmatpush2.bf16.msra.mxu0 0
  %695 = vmatprep.subr.bf16.mxu0 0
  %696 = vmatpush2.bf16.msra.mxu0 0
  %697 = vmatprep.subr.bf16.mxu0 0
  %698 = vmatpush2.bf16.msra.mxu0 0
  %699 = vmatprep.subr.bf16.mxu0 0
  %700 = vmatpush2.bf16.msra.mxu0 0
  %701 = vmatprep.subr.bf16.mxu0 0
  %702 = vmatpush2.bf16.msra.mxu0 0
  %703 = vmatprep.mubr.bf16.mxu0 0
  %704 = vmatmul.mubr.bf16.gmra.mxu0 %v669
  %v705 = vpop.f32.mrf.mxu0
  %v706 = vadd.f32 0.0, %v705
  %v707 = vpop.f32.mrf.mxu0
  %v708 = vpop.f32.mrf.mxu0
  %v709 = vpop.f32.mrf.mxu0
  %710 = vdwg.mxu0
  %v711 = vadd.f32 %v649, %v706
  %v712 = vxor.u32 %v711, 2147483648
  %v713 = vmul.f32 %v712, 1.442695
  %v714 = vpow.pop %v713
  %v715 = vadd.f32 %v714, 1.0
  %v716 = vrcp.pop %v715
  %v717 = vmul.f32 1.0, %v716
  %v718 = vtanh.pop %v711
  %v719 = vmul.f32 %v717, %v621
  %721 = vrot.lane.b32.xlu0 %v718, 64
  %v722 = vpop.permute.xlu0 %721
  %v724 = vmul.f32 %v717, %v722
  %726 = vrot.lane.b32.xlu0 %v724, 32
  %v727 = vpop.permute.xlu0 %726
  %v729 = vadd.f32 %v719, %v727
  %v730 = vtanh.pop %v729
  %732 = vrot.lane.b32.xlu0 %v730, 64
  %v733 = vpop.permute.xlu0 %732
  %v735 = vmul.f32 %v717, %v733
  %v736 = vpack.c.bf16 %v735, %v735
  %v739 = vunpack.c.l.s4 1966171168
  %v740 = vunpack.c.0.s8 %v739
  %v741 = vlaneseq
  %v742 = vshrl.u32 %v741, 7
  %v743 = vsub.s32 %v740, %v742
  %v744 = vrot.slane %v736, %v743
  %v746 = vunpack.c.l.s4 1966171168
  %v747 = vunpack.c.0.s8 %v746
  %v748 = vlaneseq
  %v749 = vshrl.u32 %v748, 7
  %v750 = vsub.s32 %v747, %v749
  %v751 = vrot.slane %v744, %v750
  %752 = vrot.lane.b32.xlu0 %v751, 32
  %v753 = vpop.permute.xlu0 %752
  %s755 = scalar_lea.vmem %s6, 5
  %756 = vst.msk [vmem:[%s755] sm:$0x1] %vm215, %v753
  // Predicated region
  $region26: #{lstm_pointer_net_forward.2} parent=0 // pred_check
    _
  $region27: #{lstm_pointer_net_forward.2} parent=0 // pred_check_branch
    %758 = sbr.rel (0) target = $region29
  $region28: #{lstm_pointer_net_forward.2} parent=0 // pred_region
    _
  $region29: #{lstm_pointer_net_forward.2} parent=0 // pred_fallthru
    _
  // Predicated region
  $region30: #{lstm_pointer_net_forward.2} parent=0 // pred_check
    _
  $region31: #{lstm_pointer_net_forward.2} parent=0 // pred_check_branch
    %760 = sbr.rel (0) target = $region33
  $region32: #{lstm_pointer_net_forward.2} parent=0 // pred_region
    _
  $region33: #{lstm_pointer_net_forward.2} parent=0 // pred_fallthru
    _

// kernel: lstm_pointer_net_forward.3
$region0: #{lstm_pointer_net_forward.3}
  #allocation0 [shape = 'u32[]', space=smem, size = 0x4, offset = 0x4, fixed_abs, tag = 'smem constant byte address 0x4 - core index']
  #allocation1 [shape = 'u32[144,128]{1,0:T(1,128)}', space=vmem, size = 0x12000, scoped, tag = 'internal scratch']
  #allocation2 [shape = 's32[1]{0}', space=sflag, size = 0x4, scoped, tag = 'scoped memory for lstm_pointer_net_forward.3']
  #allocation3 [shape = 'u8[512]{0}', space=smem, size = 0x200, scoped, tag = 'prefetched SMEM operand 0']
  #allocation4 [shape = 'u8[512]{0}', space=smem, size = 0x200, scoped, tag = 'prefetched SMEM operand 1']
  %s0 = inlined_call_operand.vmem [shape: s32[2], index: 0, kind: input, shape index: {}]
  %s1 = inlined_call_operand.vmem [shape: s32[2], index: 1, kind: input, shape index: {}]
  %s2 = inlined_call_operand.vmem [shape: bf16[2,128,16], index: 2, kind: input, shape index: {}]
  %s3 = inlined_call_operand.vmem [shape: bf16[2,128,24], index: 3, kind: input, shape index: {}]
  %s4 = inlined_call_operand.vmem [shape: bf16[2,6,32], index: 4, kind: input, shape index: {}]
  %s5 = inlined_call_operand.vmem [shape: bf16[16,32], index: 5, kind: input, shape index: {}]
  %s6 = inlined_call_operand.vmem [shape: bf16[32,32], index: 6, kind: input, shape index: {}]
  %s7 = inlined_call_operand.vmem [shape: f32[1,32], index: 7, kind: input, shape index: {}]
  %s8 = inlined_call_operand.vmem [shape: bf16[24,32], index: 8, kind: input, shape index: {}]
  %s9 = inlined_call_operand.vmem [shape: bf16[32,32], index: 9, kind: input, shape index: {}]
  %s10 = inlined_call_operand.vmem [shape: f32[1,32], index: 10, kind: input, shape index: {}]
  %s11 = inlined_call_operand.vmem [shape: bf16[16,32], index: 11, kind: input, shape index: {}]
  %s12 = inlined_call_operand.vmem [shape: bf16[32,32], index: 12, kind: input, shape index: {}]
  %s13 = inlined_call_operand.vmem [shape: bf16[32,32], index: 13, kind: input, shape index: {}]
  %s14 = inlined_call_operand.vmem [shape: f32[1,32], index: 14, kind: input, shape index: {}]
  %s15 = inlined_call_operand.vmem [shape: f32[2,6,128], index: 15, kind: output, shape index: {}]
  %s16 = sld [smem:[#allocation0]]
  $region85: #{lstm_pointer_net_forward.3} parent=0
    _
  %s18 = ssub.s32 1, %s16
  %s19 = scalar_select 0, %s18, %s16
  %s20 = sshll.u32 %s0, 4
  %s21 = int_to_ptr.vmem [resolvable:$true] %s20
  %23 = dma.vmem_to_smem %s21, 16, [#allocation3], [#allocation2]
  %s24 = sshll.u32 %s1, 4
  %s25 = int_to_ptr.vmem [resolvable:$true] %s24
  %27 = dma.vmem_to_smem %s25, 16, [#allocation4], [#allocation2]
  %28 = dma.done [#allocation2], 32
  %29 = sfence
  loop: start=0, step=1, limit=4
  $region2: #{lstm_pointer_net_forward.3} parent=0 // loop_pre_header
    _
  $region3: #{lstm_pointer_net_forward.3} parent=0 // loop_header
    %s31 = sphi 0, %s35
    %p32 = scmp.ge.s32.totalorder %s31, 4
    %s41 = sphi 0, %s43
    %s44 = sphi 0, %s41
    %s45 = sphi 0, %s44
    %s61 = sphi 0, %s45
    %s67 = sphi 0, %s69
    %s70 = sphi 0, %s67
    %s71 = sphi 0, %s70
    %s87 = sphi 0, %s71
    %s93 = sphi 0, %s95
    %s96 = sphi 0, %s93
    %s97 = sphi 0, %s96
    %s113 = sphi 0, %s97
    %s117 = sphi 0, %s117
    %s119 = sphi 0, %s117
    %s120 = sphi 0, %s119
    %s134 = sphi 0, %s120
    %s138 = sphi 0, %s138
    %s140 = sphi 0, %s138
    %s141 = sphi 0, %s140
    %s155 = sphi 0, %s141
    %s159 = sphi 0, %s159
    %s161 = sphi 0, %s159
    %s162 = sphi 0, %s161
    %s176 = sphi 0, %s162
    %s180 = sphi 0, %s180
    %s182 = sphi 0, %s180
    %s183 = sphi 0, %s182
    %s197 = sphi 0, %s183
    %s201 = sphi 0, %s201
    %s203 = sphi 0, %s201
    %s204 = sphi 0, %s203
    %s218 = sphi 0, %s204
    %s222 = sphi 0, %s222
    %s224 = sphi 0, %s222
    %s225 = sphi 0, %s224
    %s239 = sphi 0, %s225
    %s243 = sphi 0, %s243
    %s245 = sphi 0, %s243
    %s246 = sphi 0, %s245
    %s260 = sphi 0, %s246
    %s264 = sphi 0, %s264
    %s266 = sphi 0, %s264
    %s267 = sphi 0, %s266
    %s281 = sphi 0, %s267
    %s285 = sphi 0, %s285
    %s287 = sphi 0, %s285
    %s288 = sphi 0, %s287
    %s302 = sphi 0, %s288
    %s306 = sphi 0, %s306
    %s308 = sphi 0, %s306
    %s309 = sphi 0, %s308
    %s323 = sphi 0, %s309
    %s329 = sphi 0, %s331
    %s332 = sphi 0, %s329
    %s333 = sphi 0, %s332
    %s349 = sphi 0, %s333
  $region4: #{lstm_pointer_net_forward.3} parent=0 // loop_header_branch
    %34 = sbr.rel (%p32) target = $region8
  $region5: #{lstm_pointer_net_forward.3} parent=0 // loop_body
    %s36 = ssub.s32 %s31, 1
    %s37 = ssub.s32 %s31, 2
    %s38 = sadd.s32 %s31, 1
    %s39 = ssub.s32 %s31, %s38
    %p40 = scmp.eq.s32.totalorder %s39, 0
    %s42 = sadd.s32 %s41, 1
    %s43 = scalar_select %p40, %s41, %s42
    %p46 = pneg %p40
    %p47 = scmp.eq.s32.totalorder %s31, 1
    %p48 = por %p46, %p47
    %p49 = scmp.ne.s32.totalorder %s41, %s44
    %p50 = scmp.eq.s32.totalorder %s31, 0
    %p51 = por %p49, %p50
    %p52 = scmp.ne.s32.totalorder %s41, %s44
    %p53 = scmp.eq.s32.totalorder %s36, 1
    %p54 = por %p52, %p53
    %p55 = scmp.ne.s32.totalorder %s44, %s45
    %p56 = scmp.eq.s32.totalorder %s36, 0
    %p57 = por %p55, %p56
    %p58 = scmp.ne.s32.totalorder %s44, %s45
    %p59 = scmp.eq.s32.totalorder %s37, 1
    %p60 = por %p58, %p59
    %p62 = scmp.ne.s32.totalorder %s45, %s61
    %p63 = scmp.eq.s32.totalorder %s37, 0
    %p64 = por %p62, %p63
    %s65 = ssub.s32 %s31, %s38
    %p66 = scmp.eq.s32.totalorder %s65, 0
    %s68 = sadd.s32 %s67, 1
    %s69 = scalar_select %p66, %s67, %s68
    %p72 = pneg %p66
    %p73 = scmp.eq.s32.totalorder %s31, 1
    %p74 = por %p72, %p73
    %p75 = scmp.ne.s32.totalorder %s67, %s70
    %p76 = scmp.eq.s32.totalorder %s31, 0
    %p77 = por %p75, %p76
    %p78 = scmp.ne.s32.totalorder %s67, %s70
    %p79 = scmp.eq.s32.totalorder %s36, 1
    %p80 = por %p78, %p79
    %p81 = scmp.ne.s32.totalorder %s70, %s71
    %p82 = scmp.eq.s32.totalorder %s36, 0
    %p83 = por %p81, %p82
    %p84 = scmp.ne.s32.totalorder %s70, %s71
    %p85 = scmp.eq.s32.totalorder %s37, 1
    %p86 = por %p84, %p85
    %p88 = scmp.ne.s32.totalorder %s71, %s87
    %p89 = scmp.eq.s32.totalorder %s37, 0
    %p90 = por %p88, %p89
    %s91 = ssub.s32 %s31, %s38
    %p92 = scmp.eq.s32.totalorder %s91, 0
    %s94 = sadd.s32 %s93, 1
    %s95 = scalar_select %p92, %s93, %s94
    %p98 = pneg %p92
    %p99 = scmp.eq.s32.totalorder %s31, 1
    %p100 = por %p98, %p99
    %p101 = scmp.ne.s32.totalorder %s93, %s96
    %p102 = scmp.eq.s32.totalorder %s31, 0
    %p103 = por %p101, %p102
    %p104 = scmp.ne.s32.totalorder %s93, %s96
    %p105 = scmp.eq.s32.totalorder %s36, 1
    %p106 = por %p104, %p105
    %p107 = scmp.ne.s32.totalorder %s96, %s97
    %p108 = scmp.eq.s32.totalorder %s36, 0
    %p109 = por %p107, %p108
    %p110 = scmp.ne.s32.totalorder %s96, %s97
    %p111 = scmp.eq.s32.totalorder %s37, 1
    %p112 = por %p110, %p111
    %p114 = scmp.ne.s32.totalorder %s97, %s113
    %p115 = scmp.eq.s32.totalorder %s37, 0
    %p116 = por %p114, %p115
    %s118 = sadd.s32 %s117, 1
    %p121 = scmp.eq.s32.totalorder %s31, 1
    %p122 = scmp.ne.s32.totalorder %s117, %s119
    %p123 = scmp.eq.s32.totalorder %s31, 0
    %p124 = por %p122, %p123
    %p125 = scmp.ne.s32.totalorder %s117, %s119
    %p126 = scmp.eq.s32.totalorder %s36, 1
    %p127 = por %p125, %p126
    %p128 = scmp.ne.s32.totalorder %s119, %s120
    %p129 = scmp.eq.s32.totalorder %s36, 0
    %p130 = por %p128, %p129
    %p131 = scmp.ne.s32.totalorder %s119, %s120
    %p132 = scmp.eq.s32.totalorder %s37, 1
    %p133 = por %p131, %p132
    %p135 = scmp.ne.s32.totalorder %s120, %s134
    %p136 = scmp.eq.s32.totalorder %s37, 0
    %p137 = por %p135, %p136
    %s139 = sadd.s32 %s138, 1
    %p142 = scmp.eq.s32.totalorder %s31, 1
    %p143 = scmp.ne.s32.totalorder %s138, %s140
    %p144 = scmp.eq.s32.totalorder %s31, 0
    %p145 = por %p143, %p144
    %p146 = scmp.ne.s32.totalorder %s138, %s140
    %p147 = scmp.eq.s32.totalorder %s36, 1
    %p148 = por %p146, %p147
    %p149 = scmp.ne.s32.totalorder %s140, %s141
    %p150 = scmp.eq.s32.totalorder %s36, 0
    %p151 = por %p149, %p150
    %p152 = scmp.ne.s32.totalorder %s140, %s141
    %p153 = scmp.eq.s32.totalorder %s37, 1
    %p154 = por %p152, %p153
    %p156 = scmp.ne.s32.totalorder %s141, %s155
    %p157 = scmp.eq.s32.totalorder %s37, 0
    %p158 = por %p156, %p157
    %s160 = sadd.s32 %s159, 1
    %p163 = scmp.eq.s32.totalorder %s31, 1
    %p164 = scmp.ne.s32.totalorder %s159, %s161
    %p165 = scmp.eq.s32.totalorder %s31, 0
    %p166 = por %p164, %p165
    %p167 = scmp.ne.s32.totalorder %s159, %s161
    %p168 = scmp.eq.s32.totalorder %s36, 1
    %p169 = por %p167, %p168
    %p170 = scmp.ne.s32.totalorder %s161, %s162
    %p171 = scmp.eq.s32.totalorder %s36, 0
    %p172 = por %p170, %p171
    %p173 = scmp.ne.s32.totalorder %s161, %s162
    %p174 = scmp.eq.s32.totalorder %s37, 1
    %p175 = por %p173, %p174
    %p177 = scmp.ne.s32.totalorder %s162, %s176
    %p178 = scmp.eq.s32.totalorder %s37, 0
    %p179 = por %p177, %p178
    %s181 = sadd.s32 %s180, 1
    %p184 = scmp.eq.s32.totalorder %s31, 1
    %p185 = scmp.ne.s32.totalorder %s180, %s182
    %p186 = scmp.eq.s32.totalorder %s31, 0
    %p187 = por %p185, %p186
    %p188 = scmp.ne.s32.totalorder %s180, %s182
    %p189 = scmp.eq.s32.totalorder %s36, 1
    %p190 = por %p188, %p189
    %p191 = scmp.ne.s32.totalorder %s182, %s183
    %p192 = scmp.eq.s32.totalorder %s36, 0
    %p193 = por %p191, %p192
    %p194 = scmp.ne.s32.totalorder %s182, %s183
    %p195 = scmp.eq.s32.totalorder %s37, 1
    %p196 = por %p194, %p195
    %p198 = scmp.ne.s32.totalorder %s183, %s197
    %p199 = scmp.eq.s32.totalorder %s37, 0
    %p200 = por %p198, %p199
    %s202 = sadd.s32 %s201, 1
    %p205 = scmp.eq.s32.totalorder %s31, 1
    %p206 = scmp.ne.s32.totalorder %s201, %s203
    %p207 = scmp.eq.s32.totalorder %s31, 0
    %p208 = por %p206, %p207
    %p209 = scmp.ne.s32.totalorder %s201, %s203
    %p210 = scmp.eq.s32.totalorder %s36, 1
    %p211 = por %p209, %p210
    %p212 = scmp.ne.s32.totalorder %s203, %s204
    %p213 = scmp.eq.s32.totalorder %s36, 0
    %p214 = por %p212, %p213
    %p215 = scmp.ne.s32.totalorder %s203, %s204
    %p216 = scmp.eq.s32.totalorder %s37, 1
    %p217 = por %p215, %p216
    %p219 = scmp.ne.s32.totalorder %s204, %s218
    %p220 = scmp.eq.s32.totalorder %s37, 0
    %p221 = por %p219, %p220
    %s223 = sadd.s32 %s222, 1
    %p226 = scmp.eq.s32.totalorder %s31, 1
    %p227 = scmp.ne.s32.totalorder %s222, %s224
    %p228 = scmp.eq.s32.totalorder %s31, 0
    %p229 = por %p227, %p228
    %p230 = scmp.ne.s32.totalorder %s222, %s224
    %p231 = scmp.eq.s32.totalorder %s36, 1
    %p232 = por %p230, %p231
    %p233 = scmp.ne.s32.totalorder %s224, %s225
    %p234 = scmp.eq.s32.totalorder %s36, 0
    %p235 = por %p233, %p234
    %p236 = scmp.ne.s32.totalorder %s224, %s225
    %p237 = scmp.eq.s32.totalorder %s37, 1
    %p238 = por %p236, %p237
    %p240 = scmp.ne.s32.totalorder %s225, %s239
    %p241 = scmp.eq.s32.totalorder %s37, 0
    %p242 = por %p240, %p241
    %s244 = sadd.s32 %s243, 1
    %p247 = scmp.eq.s32.totalorder %s31, 1
    %p248 = scmp.ne.s32.totalorder %s243, %s245
    %p249 = scmp.eq.s32.totalorder %s31, 0
    %p250 = por %p248, %p249
    %p251 = scmp.ne.s32.totalorder %s243, %s245
    %p252 = scmp.eq.s32.totalorder %s36, 1
    %p253 = por %p251, %p252
    %p254 = scmp.ne.s32.totalorder %s245, %s246
    %p255 = scmp.eq.s32.totalorder %s36, 0
    %p256 = por %p254, %p255
    %p257 = scmp.ne.s32.totalorder %s245, %s246
    %p258 = scmp.eq.s32.totalorder %s37, 1
    %p259 = por %p257, %p258
    %p261 = scmp.ne.s32.totalorder %s246, %s260
    %p262 = scmp.eq.s32.totalorder %s37, 0
    %p263 = por %p261, %p262
    %s265 = sadd.s32 %s264, 1
    %p268 = scmp.eq.s32.totalorder %s31, 1
    %p269 = scmp.ne.s32.totalorder %s264, %s266
    %p270 = scmp.eq.s32.totalorder %s31, 0
    %p271 = por %p269, %p270
    %p272 = scmp.ne.s32.totalorder %s264, %s266
    %p273 = scmp.eq.s32.totalorder %s36, 1
    %p274 = por %p272, %p273
    %p275 = scmp.ne.s32.totalorder %s266, %s267
    %p276 = scmp.eq.s32.totalorder %s36, 0
    %p277 = por %p275, %p276
    %p278 = scmp.ne.s32.totalorder %s266, %s267
    %p279 = scmp.eq.s32.totalorder %s37, 1
    %p280 = por %p278, %p279
    %p282 = scmp.ne.s32.totalorder %s267, %s281
    %p283 = scmp.eq.s32.totalorder %s37, 0
    %p284 = por %p282, %p283
    %s286 = sadd.s32 %s285, 1
    %p289 = scmp.eq.s32.totalorder %s31, 1
    %p290 = scmp.ne.s32.totalorder %s285, %s287
    %p291 = scmp.eq.s32.totalorder %s31, 0
    %p292 = por %p290, %p291
    %p293 = scmp.ne.s32.totalorder %s285, %s287
    %p294 = scmp.eq.s32.totalorder %s36, 1
    %p295 = por %p293, %p294
    %p296 = scmp.ne.s32.totalorder %s287, %s288
    %p297 = scmp.eq.s32.totalorder %s36, 0
    %p298 = por %p296, %p297
    %p299 = scmp.ne.s32.totalorder %s287, %s288
    %p300 = scmp.eq.s32.totalorder %s37, 1
    %p301 = por %p299, %p300
    %p303 = scmp.ne.s32.totalorder %s288, %s302
    %p304 = scmp.eq.s32.totalorder %s37, 0
    %p305 = por %p303, %p304
    %s307 = sadd.s32 %s306, 1
    %p310 = scmp.eq.s32.totalorder %s31, 1
    %p311 = scmp.ne.s32.totalorder %s306, %s308
    %p312 = scmp.eq.s32.totalorder %s31, 0
    %p313 = por %p311, %p312
    %p314 = scmp.ne.s32.totalorder %s306, %s308
    %p315 = scmp.eq.s32.totalorder %s36, 1
    %p316 = por %p314, %p315
    %p317 = scmp.ne.s32.totalorder %s308, %s309
    %p318 = scmp.eq.s32.totalorder %s36, 0
    %p319 = por %p317, %p318
    %p320 = scmp.ne.s32.totalorder %s308, %s309
    %p321 = scmp.eq.s32.totalorder %s37, 1
    %p322 = por %p320, %p321
    %p324 = scmp.ne.s32.totalorder %s309, %s323
    %p325 = scmp.eq.s32.totalorder %s37, 0
    %p326 = por %p324, %p325
    %s327 = ssub.s32 %s31, %s38
    %p328 = scmp.eq.s32.totalorder %s327, 0
    %s330 = sadd.s32 %s329, 1
    %s331 = scalar_select %p328, %s329, %s330
    %p334 = pneg %p328
    %p335 = scmp.eq.s32.totalorder %s31, 1
    %p336 = por %p334, %p335
    %p337 = scmp.ne.s32.totalorder %s329, %s332
    %p338 = scmp.eq.s32.totalorder %s31, 0
    %p339 = por %p337, %p338
    %p340 = scmp.ne.s32.totalorder %s329, %s332
    %p341 = scmp.eq.s32.totalorder %s36, 1
    %p342 = por %p340, %p341
    %p343 = scmp.ne.s32.totalorder %s332, %s333
    %p344 = scmp.eq.s32.totalorder %s36, 0
    %p345 = por %p343, %p344
    %p346 = scmp.ne.s32.totalorder %s332, %s333
    %p347 = scmp.eq.s32.totalorder %s37, 1
    %p348 = por %p346, %p347
    %p350 = scmp.ne.s32.totalorder %s333, %s349
    %p351 = scmp.eq.s32.totalorder %s37, 0
    %p352 = por %p350, %p351
    %p353 = scmp.le.s32.totalorder 1, %s31
    %p354 = scmp.lt.s32.totalorder %s31, 3
    %p355 = pnand %p353, %p354
    %p356 = pneg %p355
    // Predicated region
    $region9: #{lstm_pointer_net_forward.3} parent=5 // pred_check
      _
    $region10: #{lstm_pointer_net_forward.3} parent=5 // pred_check_branch
      %358 = sbr.rel (%p355) target = $region12
    $region11: #{lstm_pointer_net_forward.3} parent=5 // pred_region
      %s359 = ssub.s32 %s31, 1
      // Predicated region
      $region13: #{lstm_pointer_net_forward.3} parent=11 // pred_check
        %p360 = pneg %p130
      $region14: #{lstm_pointer_net_forward.3} parent=11 // pred_check_branch
        %362 = sbr.rel (%p360) target = $region16
      $region15: #{lstm_pointer_net_forward.3} parent=11 // pred_region
        _
      $region16: #{lstm_pointer_net_forward.3} parent=11 // pred_fallthru
        _
      // Predicated region
      $region17: #{lstm_pointer_net_forward.3} parent=11 // pred_check
        %p363 = pneg %p151
      $region18: #{lstm_pointer_net_forward.3} parent=11 // pred_check_branch
        %365 = sbr.rel (%p363) target = $region20
      $region19: #{lstm_pointer_net_forward.3} parent=11 // pred_region
        _
      $region20: #{lstm_pointer_net_forward.3} parent=11 // pred_fallthru
        _
      // Predicated region
      $region21: #{lstm_pointer_net_forward.3} parent=11 // pred_check
        %p366 = pneg %p172
      $region22: #{lstm_pointer_net_forward.3} parent=11 // pred_check_branch
        %368 = sbr.rel (%p366) target = $region24
      $region23: #{lstm_pointer_net_forward.3} parent=11 // pred_region
        _
      $region24: #{lstm_pointer_net_forward.3} parent=11 // pred_fallthru
        _
      // Predicated region
      $region25: #{lstm_pointer_net_forward.3} parent=11 // pred_check
        %p369 = pneg %p193
      $region26: #{lstm_pointer_net_forward.3} parent=11 // pred_check_branch
        %371 = sbr.rel (%p369) target = $region28
      $region27: #{lstm_pointer_net_forward.3} parent=11 // pred_region
        _
      $region28: #{lstm_pointer_net_forward.3} parent=11 // pred_fallthru
        _
      // Predicated region
      $region29: #{lstm_pointer_net_forward.3} parent=11 // pred_check
        %p372 = pneg %p214
      $region30: #{lstm_pointer_net_forward.3} parent=11 // pred_check_branch
        %374 = sbr.rel (%p372) target = $region32
      $region31: #{lstm_pointer_net_forward.3} parent=11 // pred_region
        _
      $region32: #{lstm_pointer_net_forward.3} parent=11 // pred_fallthru
        _
      // Predicated region
      $region33: #{lstm_pointer_net_forward.3} parent=11 // pred_check
        %p375 = pneg %p235
      $region34: #{lstm_pointer_net_forward.3} parent=11 // pred_check_branch
        %377 = sbr.rel (%p375) target = $region36
      $region35: #{lstm_pointer_net_forward.3} parent=11 // pred_region
        _
      $region36: #{lstm_pointer_net_forward.3} parent=11 // pred_fallthru
        _
      // Predicated region
      $region37: #{lstm_pointer_net_forward.3} parent=11 // pred_check
        %p378 = pneg %p256
      $region38: #{lstm_pointer_net_forward.3} parent=11 // pred_check_branch
        %380 = sbr.rel (%p378) target = $region40
      $region39: #{lstm_pointer_net_forward.3} parent=11 // pred_region
        _
      $region40: #{lstm_pointer_net_forward.3} parent=11 // pred_fallthru
        _
      // Predicated region
      $region41: #{lstm_pointer_net_forward.3} parent=11 // pred_check
        %p381 = pneg %p277
      $region42: #{lstm_pointer_net_forward.3} parent=11 // pred_check_branch
        %383 = sbr.rel (%p381) target = $region44
      $region43: #{lstm_pointer_net_forward.3} parent=11 // pred_region
        _
      $region44: #{lstm_pointer_net_forward.3} parent=11 // pred_fallthru
        _
      // Predicated region
      $region45: #{lstm_pointer_net_forward.3} parent=11 // pred_check
        %p384 = pneg %p298
      $region46: #{lstm_pointer_net_forward.3} parent=11 // pred_check_branch
        %386 = sbr.rel (%p384) target = $region48
      $region47: #{lstm_pointer_net_forward.3} parent=11 // pred_region
        _
      $region48: #{lstm_pointer_net_forward.3} parent=11 // pred_fallthru
        _
      // Predicated region
      $region49: #{lstm_pointer_net_forward.3} parent=11 // pred_check
        %p387 = pneg %p319
      $region50: #{lstm_pointer_net_forward.3} parent=11 // pred_check_branch
        %389 = sbr.rel (%p387) target = $region52
      $region51: #{lstm_pointer_net_forward.3} parent=11 // pred_region
        _
      $region52: #{lstm_pointer_net_forward.3} parent=11 // pred_fallthru
        _
    $region12: #{lstm_pointer_net_forward.3} parent=5 // pred_fallthru
      _
    %p390 = scmp.lt.s32.totalorder %s31, 2
    // Predicated region
    $region53: #{lstm_pointer_net_forward.3} parent=5 // pred_check
      %p391 = pneg %p390
    $region54: #{lstm_pointer_net_forward.3} parent=5 // pred_check_branch
      %393 = sbr.rel (%p391) target = $region56
    $region55: #{lstm_pointer_net_forward.3} parent=5 // pred_region
      // Predicated region
      $region57: #{lstm_pointer_net_forward.3} parent=55 // pred_check
        %p394 = pneg %p51
      $region58: #{lstm_pointer_net_forward.3} parent=55 // pred_check_branch
        %396 = sbr.rel (%p394) target = $region60
      $region59: #{lstm_pointer_net_forward.3} parent=55 // pred_region
        %p397 = scmp.lt.s32.totalorder %s31, 1
        %s398 = scalar_select %p397, %s31, 1
        %s399 = smul.addr %s398, 16
        %s400 = smul.addr %s399, 4
        %s401 = scalar_lea.vmem %s2, %s400
      $region60: #{lstm_pointer_net_forward.3} parent=55 // pred_fallthru
        _
      // Predicated region
      $region61: #{lstm_pointer_net_forward.3} parent=55 // pred_check
        %p402 = pneg %p77
      $region62: #{lstm_pointer_net_forward.3} parent=55 // pred_check_branch
        %404 = sbr.rel (%p402) target = $region64
      $region63: #{lstm_pointer_net_forward.3} parent=55 // pred_region
        %p405 = scmp.lt.s32.totalorder %s31, 1
        %s406 = scalar_select %p405, %s31, 1
        %s407 = smul.addr %s406, 16
        %s408 = smul.addr %s407, 4
        %s409 = scalar_lea.vmem %s3, %s408
      $region64: #{lstm_pointer_net_forward.3} parent=55 // pred_fallthru
        _
      // Predicated region
      $region65: #{lstm_pointer_net_forward.3} parent=55 // pred_check
        %p410 = pneg %p103
      $region66: #{lstm_pointer_net_forward.3} parent=55 // pred_check_branch
        %412 = sbr.rel (%p410) target = $region68
      $region67: #{lstm_pointer_net_forward.3} parent=55 // pred_region
        %p413 = scmp.lt.s32.totalorder %s31, 1
        %s414 = scalar_select %p413, %s31, 1
        %s415 = smul.addr %s414, 4
        %s416 = scalar_lea.vmem %s4, %s415
      $region68: #{lstm_pointer_net_forward.3} parent=55 // pred_fallthru
        _
    $region56: #{lstm_pointer_net_forward.3} parent=5 // pred_fallthru
      _
    %p417 = scmp.le.s32.totalorder 1, %s31
    %p418 = scmp.lt.s32.totalorder %s31, 3
    %p419 = pnand %p417, %p418
    %p420 = pneg %p419
    // Predicated region
    $region69: #{lstm_pointer_net_forward.3} parent=5 // pred_check
      _
    $region70: #{lstm_pointer_net_forward.3} parent=5 // pred_check_branch
      %422 = sbr.rel (%p419) target = $region72
    $region71: #{lstm_pointer_net_forward.3} parent=5 // pred_region
      %s423 = ssub.s32 %s31, 1
      %p424 = scmp.lt.s32.totalorder %s36, 1
      %s425 = scalar_select %p424, %s36, 1
      %s426 = smul.addr %s425, 16
      %s427 = smul.addr %s426, 4
      %s428 = scalar_lea.vmem %s2, %s427
      %p429 = pneg %p57
      %p430 = pneg %p54
      %p431 = scmp.lt.s32.totalorder %s36, 1
      %s432 = scalar_select %p431, %s36, 1
      %s433 = smul.addr %s432, 16
      %s434 = smul.addr %s433, 4
      %s435 = scalar_lea.vmem %s3, %s434
      %p436 = pneg %p83
      %p437 = pneg %p80
      %p438 = scmp.lt.s32.totalorder %s36, 1
      %s439 = scalar_select %p438, %s36, 1
      %s440 = smul.addr %s439, 4
      %s441 = scalar_lea.vmem %s4, %s440
      %p442 = pneg %p109
      %p443 = pneg %p106
      %p444 = pneg %p130
      %p445 = pneg %p127
      %p446 = pneg %p151
      %p447 = pneg %p148
      %p448 = pneg %p172
      %p449 = pneg %p169
      %p450 = pneg %p193
      %p451 = pneg %p190
      %p452 = pneg %p214
      %p453 = pneg %p211
      %p454 = pneg %p235
      %p455 = pneg %p232
      %p456 = pneg %p256
      %p457 = pneg %p253
      %p458 = pneg %p277
      %p459 = pneg %p274
      %p460 = pneg %p298
      %p461 = pneg %p295
      %p462 = pneg %p319
      %p463 = pneg %p316
      %p464 = pneg %p345
      %p465 = pneg %p342
      %p466 = scmp.lt.s32.totalorder %s36, 1
      %s467 = scalar_select %p466, %s36, 1
      %s468 = smul.addr %s467, 8
      %s469 = scalar_lea.vmem %s15, %s468
      %p470 = scmp.lt.s32.totalorder %s36, 1
      %s471 = scalar_select %p470, %s36, 1
      %s472 = smul.addr %s471, 16
      %s473 = smul.addr %s472, 4
      %s474 = scalar_lea.vmem %s2, %s473
      %p475 = scmp.lt.s32.totalorder %s36, 1
      %s476 = scalar_select %p475, %s36, 1
      %s477 = smul.addr %s476, 16
      %s478 = smul.addr %s477, 4
      %s479 = scalar_lea.vmem %s3, %s478
      %p480 = scmp.lt.s32.totalorder %s36, 1
      %s481 = scalar_select %p480, %s36, 1
      %s482 = smul.addr %s481, 4
      %s483 = scalar_lea.vmem %s4, %s482
      %p484 = scmp.lt.s32.totalorder %s36, 1
      %s485 = scalar_select %p484, %s36, 1
      %s486 = smul.addr %s485, 8
      %s487 = scalar_lea.vmem %s15, %s486
      %v489 = vld [vmem:[%s483] sm:$0x7]
      %v490 = vld [vmem:[%s7] sm:$0x1]
      %s491 = sld [smem:[#allocation3 + %s36]]
      %v492 = vld [vmem:[%s6] sm:$0xf]
      %v493 = vld [vmem:[%s6 + $0x4] sm:$0xf]
      %v494 = vld [vmem:[%s6 + $0x8] sm:$0xf]
      %v495 = vld [vmem:[%s6 + $0xc] sm:$0xf]
      %v500 = vunpack.c.l.b16 %v492
      %v501 = vunpack.c.l.b16 %v493
      %v502 = vunpack.c.l.b16 %v494
      %v503 = vunpack.c.l.b16 %v495
      %v504 = vpack.c.b16 %v501, %v500
      %v505 = vpack.c.b16 %v503, %v502
      %vm508 = vcmask 261120
      %v510 = vsel %vm508, %v489, 0
      %512 = vmatprep.subr.bf16.mxu0 0
      %513 = vmatpush1.bf16.msra.mxu0 0
      %514 = vmatprep.subr.bf16.mxu0 0
      %515 = vmatpush1.bf16.msra.mxu0 0
      %516 = vmatprep.subr.bf16.mxu0 0
      %517 = vmatpush1.bf16.msra.mxu0 0
      %518 = vmatprep.subr.bf16.mxu0 0
      %519 = vmatpush1.bf16.msra.mxu0 0
      %520 = vmatprep.subr.bf16.mxu0 0
      %521 = vmatpush1.bf16.msra.mxu0 0
      %522 = vmatprep.subr.bf16.mxu0 0
      %523 = vmatpush1.bf16.msra.mxu0 0
      %524 = vmatprep.subr.bf16.mxu0 0
      %525 = vmatpush1.bf16.msra.mxu0 %v505
      %526 = vmatprep.subr.bf16.mxu0 0
      %527 = vmatpush1.bf16.msra.mxu0 %v504
      %528 = vmatprep.subr.bf16.mxu0 0
      %529 = vmatpush2.bf16.msra.mxu0 0
      %530 = vmatprep.subr.bf16.mxu0 0
      %531 = vmatpush2.bf16.msra.mxu0 0
      %532 = vmatprep.subr.bf16.mxu0 0
      %533 = vmatpush2.bf16.msra.mxu0 0
      %534 = vmatprep.subr.bf16.mxu0 0
      %535 = vmatpush2.bf16.msra.mxu0 0
      %536 = vmatprep.subr.bf16.mxu0 0
      %537 = vmatpush2.bf16.msra.mxu0 0
      %538 = vmatprep.subr.bf16.mxu0 0
      %539 = vmatpush2.bf16.msra.mxu0 0
      %540 = vmatprep.subr.bf16.mxu0 0
      %541 = vmatpush2.bf16.msra.mxu0 0
      %542 = vmatprep.subr.bf16.mxu0 0
      %543 = vmatpush2.bf16.msra.mxu0 0
      %544 = vmatprep.mubr.bf16.mxu0 0
      %545 = vmatmul.mubr.bf16.gmra.mxu0 %v510
      %v546 = vpop.f32.mrf.mxu0
      %v547 = vadd.f32 0.0, %v546
      %v548 = vpop.f32.mrf.mxu0
      %v549 = vpop.f32.mrf.mxu0
      %v550 = vpop.f32.mrf.mxu0
      %551 = vdwg.mxu0
      %v552 = vld [vmem:[%s474] sm:$0xf]
      %v553 = vld [vmem:[%s474 + $0x4] sm:$0xf]
      %v554 = vld [vmem:[%s474 + $0x8] sm:$0xf]
      %v555 = vld [vmem:[%s474 + $0xc] sm:$0xf]
      %v556 = vld [vmem:[%s474 + $0x10] sm:$0xf]
      %v557 = vld [vmem:[%s474 + $0x14] sm:$0xf]
      %v558 = vld [vmem:[%s474 + $0x18] sm:$0xf]
      %v559 = vld [vmem:[%s474 + $0x1c] sm:$0xf]
      %v560 = vld [vmem:[%s474 + $0x20] sm:$0xf]
      %v561 = vld [vmem:[%s474 + $0x24] sm:$0xf]
      %v562 = vld [vmem:[%s474 + $0x28] sm:$0xf]
      %v563 = vld [vmem:[%s474 + $0x2c] sm:$0xf]
      %v564 = vld [vmem:[%s474 + $0x30] sm:$0xf]
      %v565 = vld [vmem:[%s474 + $0x34] sm:$0xf]
      %v566 = vld [vmem:[%s474 + $0x38] sm:$0xf]
      %v567 = vld [vmem:[%s474 + $0x3c] sm:$0xf]
      %v568 = vld [vmem:[%s5] sm:$0xf]
      %v569 = vld [vmem:[%s5 + $0x4] sm:$0xf]
      %v586 = vunpack.c.l.b16 %v552
      %v587 = vunpack.c.l.b16 %v553
      %v588 = vunpack.c.l.b16 %v554
      %v589 = vunpack.c.l.b16 %v555
      %v590 = vunpack.c.l.b16 %v556
      %v591 = vunpack.c.l.b16 %v557
      %v592 = vunpack.c.l.b16 %v558
      %v593 = vunpack.c.l.b16 %v559
      %v594 = vunpack.c.l.b16 %v560
      %v595 = vunpack.c.l.b16 %v561
      %v596 = vunpack.c.l.b16 %v562
      %v597 = vunpack.c.l.b16 %v563
      %v598 = vunpack.c.l.b16 %v564
      %v599 = vunpack.c.l.b16 %v565
      %v600 = vunpack.c.l.b16 %v566
      %v601 = vunpack.c.l.b16 %v567
      %v602 = vpack.c.b16 %v587, %v586
      %v603 = vpack.c.b16 %v589, %v588
      %v604 = vpack.c.b16 %v591, %v590
      %v605 = vpack.c.b16 %v593, %v592
      %v606 = vpack.c.b16 %v595, %v594
      %v607 = vpack.c.b16 %v597, %v596
      %v608 = vpack.c.b16 %v599, %v598
      %v609 = vpack.c.b16 %v601, %v600
      %v612 = vunpack.c.l.b16 %v568
      %v613 = vunpack.c.l.b16 %v569
      %v614 = vpack.c.b16 %v613, %v612
      %vm616 = vcmask 130048
      %v618 = vsel %vm616, %v602, 0
      %v621 = vsel %vm616, %v603, 0
      %v624 = vsel %vm616, %v604, 0
      %v627 = vsel %vm616, %v605, 0
      %v630 = vsel %vm616, %v606, 0
      %v633 = vsel %vm616, %v607, 0
      %v636 = vsel %vm616, %v608, 0
      %v639 = vsel %vm616, %v609, 0
      %641 = vmatprep.subr.bf16.mxu0 0
      %642 = vmatpush1.bf16.msra.mxu0 0
      %643 = vmatprep.subr.bf16.mxu0 0
      %644 = vmatpush1.bf16.msra.mxu0 0
      %645 = vmatprep.subr.bf16.mxu0 0
      %646 = vmatpush1.bf16.msra.mxu0 0
      %647 = vmatprep.subr.bf16.mxu0 0
      %648 = vmatpush1.bf16.msra.mxu0 0
      %649 = vmatprep.subr.bf16.mxu0 0
      %650 = vmatpush1.bf16.msra.mxu0 0
      %651 = vmatprep.subr.bf16.mxu0 0
      %652 = vmatpush1.bf16.msra.mxu0 0
      %653 = vmatprep.subr.bf16.mxu0 0
      %654 = vmatpush1.bf16.msra.mxu0 0
      %655 = vmatprep.subr.bf16.mxu0 0
      %656 = vmatpush1.bf16.msra.mxu0 %v614
      %657 = vmatprep.subr.bf16.mxu0 0
      %658 = vmatpush2.bf16.msra.mxu0 0
      %659 = vmatprep.subr.bf16.mxu0 0
      %660 = vmatpush2.bf16.msra.mxu0 0
      %661 = vmatprep.subr.bf16.mxu0 0
      %662 = vmatpush2.bf16.msra.mxu0 0
      %663 = vmatprep.subr.bf16.mxu0 0
      %664 = vmatpush2.bf16.msra.mxu0 0
      %665 = vmatprep.subr.bf16.mxu0 0
      %666 = vmatpush2.bf16.msra.mxu0 0
      %667 = vmatprep.subr.bf16.mxu0 0
      %668 = vmatpush2.bf16.msra.mxu0 0
      %669 = vmatprep.subr.bf16.mxu0 0
      %670 = vmatpush2.bf16.msra.mxu0 0
      %671 = vmatprep.subr.bf16.mxu0 0
      %672 = vmatpush2.bf16.msra.mxu0 0
      %673 = vmatprep.mubr.bf16.mxu0 0
      %674 = vmatmul.mubr.bf16.gmra.mxu0 %v618
      %v675 = vpop.f32.mrf.mxu0
      %v676 = vadd.f32 0.0, %v675
      %v677 = vpop.f32.mrf.mxu0
      %v678 = vpop.f32.mrf.mxu0
      %v679 = vadd.f32 0.0, %v678
      %v680 = vpop.f32.mrf.mxu0
      %681 = vmatprep.mubr.bf16.mxu0 0
      %682 = vmatmul.mubr.bf16.gmra.mxu0 %v621
      %v683 = vpop.f32.mrf.mxu0
      %v684 = vadd.f32 0.0, %v683
      %v685 = vpop.f32.mrf.mxu0
      %v686 = vpop.f32.mrf.mxu0
      %v687 = vadd.f32 0.0, %v686
      %v688 = vpop.f32.mrf.mxu0
      %689 = vmatprep.mubr.bf16.mxu0 0
      %690 = vmatmul.mubr.bf16.gmra.mxu0 %v624
      %v691 = vpop.f32.mrf.mxu0
      %v692 = vadd.f32 0.0, %v691
      %v693 = vpop.f32.mrf.mxu0
      %v694 = vpop.f32.mrf.mxu0
      %v695 = vadd.f32 0.0, %v694
      %v696 = vpop.f32.mrf.mxu0
      %697 = vmatprep.mubr.bf16.mxu0 0
      %698 = vmatmul.mubr.bf16.gmra.mxu0 %v627
      %v699 = vpop.f32.mrf.mxu0
      %v700 = vadd.f32 0.0, %v699
      %v701 = vpop.f32.mrf.mxu0
      %v702 = vpop.f32.mrf.mxu0
      %v703 = vadd.f32 0.0, %v702
      %v704 = vpop.f32.mrf.mxu0
      %705 = vmatprep.mubr.bf16.mxu0 0
      %706 = vmatmul.mubr.bf16.gmra.mxu0 %v630
      %v707 = vpop.f32.mrf.mxu0
      %v708 = vadd.f32 0.0, %v707
      %v709 = vpop.f32.mrf.mxu0
      %v710 = vpop.f32.mrf.mxu0
      %v711 = vadd.f32 0.0, %v710
      %v712 = vpop.f32.mrf.mxu0
      %713 = vmatprep.mubr.bf16.mxu0 0
      %714 = vmatmul.mubr.bf16.gmra.mxu0 %v633
      %v715 = vpop.f32.mrf.mxu0
      %v716 = vadd.f32 0.0, %v715
      %v717 = vpop.f32.mrf.mxu0
      %v718 = vpop.f32.mrf.mxu0
      %v719 = vadd.f32 0.0, %v718
      %v720 = vpop.f32.mrf.mxu0
      %721 = vmatprep.mubr.bf16.mxu0 0
      %722 = vmatmul.mubr.bf16.gmra.mxu0 %v636
      %v723 = vpop.f32.mrf.mxu0
      %v724 = vadd.f32 0.0, %v723
      %v725 = vpop.f32.mrf.mxu0
      %v726 = vpop.f32.mrf.mxu0
      %v727 = vadd.f32 0.0, %v726
      %v728 = vpop.f32.mrf.mxu0
      %729 = vmatprep.mubr.bf16.mxu0 0
      %730 = vmatmul.mubr.bf16.gmra.mxu0 %v639
      %v731 = vpop.f32.mrf.mxu0
      %v732 = vadd.f32 0.0, %v731
      %v733 = vpop.f32.mrf.mxu0
      %v734 = vpop.f32.mrf.mxu0
      %v735 = vadd.f32 0.0, %v734
      %v736 = vpop.f32.mrf.mxu0
      %737 = vdwg.mxu0
      %v739 = vcombine.high %v547, %v547
      %v741 = vunpack.c.l.s4 1966171168
      %v742 = vunpack.c.0.s8 %v741
      %v743 = vlaneseq
      %v744 = vshrl.u32 %v743, 7
      %v745 = vsub.s32 %v742, %v744
      %v746 = vrot.slane %v547, %v745
      %v748 = vunpack.c.l.s4 1966171168
      %v749 = vunpack.c.0.s8 %v748
      %v750 = vlaneseq
      %v751 = vshrl.u32 %v750, 7
      %v752 = vsub.s32 %v749, %v751
      %v753 = vrot.slane %v739, %v752
      %v754 = vcombine.high %v746, %v746
      %v755 = vcombine.high %v753, %v753
      %v757 = vunpack.c.l.s4 1966171168
      %v758 = vunpack.c.0.s8 %v757
      %v759 = vlaneseq
      %v760 = vshrl.u32 %v759, 7
      %v761 = vsub.s32 %v758, %v760
      %v762 = vrot.slane %v746, %v761
      %v764 = vunpack.c.l.s4 1966171168
      %v765 = vunpack.c.0.s8 %v764
      %v766 = vlaneseq
      %v767 = vshrl.u32 %v766, 7
      %v768 = vsub.s32 %v765, %v767
      %v769 = vrot.slane %v753, %v768
      %v771 = vunpack.c.l.s4 1966171168
      %v772 = vunpack.c.0.s8 %v771
      %v773 = vlaneseq
      %v774 = vshrl.u32 %v773, 7
      %v775 = vsub.s32 %v772, %v774
      %v776 = vrot.slane %v754, %v775
      %v778 = vunpack.c.l.s4 1966171168
      %v779 = vunpack.c.0.s8 %v778
      %v780 = vlaneseq
      %v781 = vshrl.u32 %v780, 7
      %v782 = vsub.s32 %v779, %v781
      %v783 = vrot.slane %v755, %v782
      %v784 = vcombine.high %v762, %v762
      %v785 = vcombine.high %v776, %v776
      %v786 = vlaneseq
      %v787 = vshrl.u32 %v786, 7
      %v788 = vsub.s32 0, %v787
      %v789 = vrot.slane %v762, %v788
      %v790 = vlaneseq
      %v791 = vshrl.u32 %v790, 7
      %v792 = vsub.s32 0, %v791
      %v793 = vrot.slane %v776, %v792
      %v794 = vlaneseq
      %v795 = vshrl.u32 %v794, 7
      %v796 = vsub.s32 0, %v795
      %v797 = vrot.slane %v784, %v796
      %v798 = vlaneseq
      %v799 = vshrl.u32 %v798, 7
      %v800 = vsub.s32 0, %v799
      %v801 = vrot.slane %v785, %v800
      %v802 = vlaneseq
      %v803 = vshrl.u32 %v802, 7
      %v804 = vsub.s32 0, %v803
      %v805 = vrot.slane %v769, %v804
      %v806 = vlaneseq
      %v807 = vshrl.u32 %v806, 7
      %v808 = vsub.s32 0, %v807
      %v809 = vrot.slane %v783, %v808
      %v816 = vadd.f32 %v676, %v789
      %v817 = vadd.f32 %v679, %v789
      %v818 = vadd.f32 %v684, %v789
      %v819 = vadd.f32 %v687, %v789
      %v820 = vadd.f32 %v692, %v789
      %v821 = vadd.f32 %v695, %v789
      %v822 = vadd.f32 %v700, %v789
      %v823 = vadd.f32 %v703, %v789
      %v824 = vadd.f32 %v708, %v789
      %v825 = vadd.f32 %v711, %v789
      %v826 = vadd.f32 %v716, %v789
      %v827 = vadd.f32 %v719, %v789
      %v828 = vadd.f32 %v724, %v789
      %v829 = vadd.f32 %v727, %v789
      %v830 = vadd.f32 %v732, %v789
      %v831 = vadd.f32 %v735, %v789
      %v832 = vadd.f32 %v676, %v793
      %v833 = vadd.f32 %v679, %v793
      %v834 = vadd.f32 %v684, %v793
      %v835 = vadd.f32 %v687, %v793
      %v836 = vadd.f32 %v692, %v793
      %v837 = vadd.f32 %v695, %v793
      %v838 = vadd.f32 %v700, %v793
      %v839 = vadd.f32 %v703, %v793
      %v840 = vadd.f32 %v708, %v793
      %v841 = vadd.f32 %v711, %v793
      %v842 = vadd.f32 %v716, %v793
      %v843 = vadd.f32 %v719, %v793
      %v844 = vadd.f32 %v724, %v793
      %v845 = vadd.f32 %v727, %v793
      %v846 = vadd.f32 %v732, %v793
      %v847 = vadd.f32 %v735, %v793
      %v848 = vadd.f32 %v676, %v797
      %v849 = vadd.f32 %v679, %v797
      %v850 = vadd.f32 %v684, %v797
      %v851 = vadd.f32 %v687, %v797
      %v852 = vadd.f32 %v692, %v797
      %v853 = vadd.f32 %v695, %v797
      %v854 = vadd.f32 %v700, %v797
      %v855 = vadd.f32 %v703, %v797
      %v856 = vadd.f32 %v708, %v797
      %v857 = vadd.f32 %v711, %v797
      %v858 = vadd.f32 %v716, %v797
      %v859 = vadd.f32 %v719, %v797
      %v860 = vadd.f32 %v724, %v797
      %v861 = vadd.f32 %v727, %v797
      %v862 = vadd.f32 %v732, %v797
      %v863 = vadd.f32 %v735, %v797
      %v864 = vadd.f32 %v676, %v801
      %v865 = vadd.f32 %v679, %v801
      %v866 = vadd.f32 %v684, %v801
      %v867 = vadd.f32 %v687, %v801
      %v868 = vadd.f32 %v692, %v801
      %v869 = vadd.f32 %v695, %v801
      %v870 = vadd.f32 %v700, %v801
      %v871 = vadd.f32 %v703, %v801
      %v872 = vadd.f32 %v708, %v801
      %v873 = vadd.f32 %v711, %v801
      %v874 = vadd.f32 %v716, %v801
      %v875 = vadd.f32 %v719, %v801
      %v876 = vadd.f32 %v724, %v801
      %v877 = vadd.f32 %v727, %v801
      %v878 = vadd.f32 %v732, %v801
      %v879 = vadd.f32 %v735, %v801
      %v880 = vadd.f32 %v676, %v805
      %v881 = vadd.f32 %v679, %v805
      %v882 = vadd.f32 %v684, %v805
      %v883 = vadd.f32 %v687, %v805
      %v884 = vadd.f32 %v692, %v805
      %v885 = vadd.f32 %v695, %v805
      %v886 = vadd.f32 %v700, %v805
      %v887 = vadd.f32 %v703, %v805
      %v888 = vadd.f32 %v708, %v805
      %v889 = vadd.f32 %v711, %v805
      %v890 = vadd.f32 %v716, %v805
      %v891 = vadd.f32 %v719, %v805
      %v892 = vadd.f32 %v724, %v805
      %v893 = vadd.f32 %v727, %v805
      %v894 = vadd.f32 %v732, %v805
      %v895 = vadd.f32 %v735, %v805
      %v896 = vadd.f32 %v676, %v809
      %v897 = vadd.f32 %v679, %v809
      %v898 = vadd.f32 %v684, %v809
      %v899 = vadd.f32 %v687, %v809
      %v900 = vadd.f32 %v692, %v809
      %v901 = vadd.f32 %v695, %v809
      %v902 = vadd.f32 %v700, %v809
      %v903 = vadd.f32 %v703, %v809
      %v904 = vadd.f32 %v708, %v809
      %v905 = vadd.f32 %v711, %v809
      %v906 = vadd.f32 %v716, %v809
      %v907 = vadd.f32 %v719, %v809
      %v908 = vadd.f32 %v724, %v809
      %v909 = vadd.f32 %v727, %v809
      %v910 = vadd.f32 %v732, %v809
      %v911 = vadd.f32 %v735, %v809
      %v912 = vtanh.pop %v816
      %v913 = vtanh.pop %v817
      %v914 = vtanh.pop %v818
      %v915 = vtanh.pop %v819
      %v916 = vtanh.pop %v820
      %v917 = vtanh.pop %v821
      %v918 = vtanh.pop %v822
      %v919 = vtanh.pop %v823
      %v920 = vtanh.pop %v824
      %v921 = vtanh.pop %v825
      %v922 = vtanh.pop %v826
      %v923 = vtanh.pop %v827
      %v924 = vtanh.pop %v828
      %v925 = vtanh.pop %v829
      %v926 = vtanh.pop %v830
      %v927 = vtanh.pop %v831
      %v928 = vtanh.pop %v832
      %v929 = vtanh.pop %v833
      %v930 = vtanh.pop %v834
      %v931 = vtanh.pop %v835
      %v932 = vtanh.pop %v836
      %v933 = vtanh.pop %v837
      %v934 = vtanh.pop %v838
      %v935 = vtanh.pop %v839
      %v936 = vtanh.pop %v840
      %v937 = vtanh.pop %v841
      %v938 = vtanh.pop %v842
      %v939 = vtanh.pop %v843
      %v940 = vtanh.pop %v844
      %v941 = vtanh.pop %v845
      %v942 = vtanh.pop %v846
      %v943 = vtanh.pop %v847
      %v944 = vtanh.pop %v848
      %v945 = vtanh.pop %v849
      %v946 = vtanh.pop %v850
      %v947 = vtanh.pop %v851
      %v948 = vtanh.pop %v852
      %v949 = vtanh.pop %v853
      %v950 = vtanh.pop %v854
      %v951 = vtanh.pop %v855
      %v952 = vtanh.pop %v856
      %v953 = vtanh.pop %v857
      %v954 = vtanh.pop %v858
      %v955 = vtanh.pop %v859
      %v956 = vtanh.pop %v860
      %v957 = vtanh.pop %v861
      %v958 = vtanh.pop %v862
      %v959 = vtanh.pop %v863
      %v960 = vtanh.pop %v864
      %v961 = vtanh.pop %v865
      %v962 = vtanh.pop %v866
      %v963 = vtanh.pop %v867
      %v964 = vtanh.pop %v868
      %v965 = vtanh.pop %v869
      %v966 = vtanh.pop %v870
      %v967 = vtanh.pop %v871
      %v968 = vtanh.pop %v872
      %v969 = vtanh.pop %v873
      %v970 = vtanh.pop %v874
      %v971 = vtanh.pop %v875
      %v972 = vtanh.pop %v876
      %v973 = vtanh.pop %v877
      %v974 = vtanh.pop %v878
      %v975 = vtanh.pop %v879
      %v976 = vtanh.pop %v880
      %v977 = vtanh.pop %v881
      %v978 = vtanh.pop %v882
      %v979 = vtanh.pop %v883
      %v980 = vtanh.pop %v884
      %v981 = vtanh.pop %v885
      %v982 = vtanh.pop %v886
      %v983 = vtanh.pop %v887
      %v984 = vtanh.pop %v888
      %v985 = vtanh.pop %v889
      %v986 = vtanh.pop %v890
      %v987 = vtanh.pop %v891
      %v988 = vtanh.pop %v892
      %v989 = vtanh.pop %v893
      %v990 = vtanh.pop %v894
      %v991 = vtanh.pop %v895
      %v992 = vtanh.pop %v896
      %v993 = vtanh.pop %v897
      %v994 = vtanh.pop %v898
      %v995 = vtanh.pop %v899
      %v996 = vtanh.pop %v900
      %v997 = vtanh.pop %v901
      %v998 = vtanh.pop %v902
      %v999 = vtanh.pop %v903
      %v1000 = vtanh.pop %v904
      %v1001 = vtanh.pop %v905
      %v1002 = vtanh.pop %v906
      %v1003 = vtanh.pop %v907
      %v1004 = vtanh.pop %v908
      %v1005 = vtanh.pop %v909
      %v1006 = vtanh.pop %v910
      %v1007 = vtanh.pop %v911
      %v1009 = vlaneseq
      %v1010 = vshrl.u32 %v1009, 7
      %v1011 = vsub.s32 0, %v1010
      %v1012 = vrot.slane %v490, %v1011
      %v1014 = vmul.f32 %v912, %v1012
      %v1015 = vmul.f32 %v913, %v1012
      %v1016 = vmul.f32 %v914, %v1012
      %v1017 = vmul.f32 %v915, %v1012
      %v1018 = vmul.f32 %v916, %v1012
      %v1019 = vmul.f32 %v917, %v1012
      %v1020 = vmul.f32 %v918, %v1012
      %v1021 = vmul.f32 %v919, %v1012
      %v1022 = vmul.f32 %v920, %v1012
      %v1023 = vmul.f32 %v921, %v1012
      %v1024 = vmul.f32 %v922, %v1012
      %v1025 = vmul.f32 %v923, %v1012
      %v1026 = vmul.f32 %v924, %v1012
      %v1027 = vmul.f32 %v925, %v1012
      %v1028 = vmul.f32 %v926, %v1012
      %v1029 = vmul.f32 %v927, %v1012
      %v1030 = vmul.f32 %v928, %v1012
      %v1031 = vmul.f32 %v929, %v1012
      %v1032 = vmul.f32 %v930, %v1012
      %v1033 = vmul.f32 %v931, %v1012
      %v1034 = vmul.f32 %v932, %v1012
      %v1035 = vmul.f32 %v933, %v1012
      %v1036 = vmul.f32 %v934, %v1012
      %v1037 = vmul.f32 %v935, %v1012
      %v1038 = vmul.f32 %v936, %v1012
      %v1039 = vmul.f32 %v937, %v1012
      %v1040 = vmul.f32 %v938, %v1012
      %v1041 = vmul.f32 %v939, %v1012
      %v1042 = vmul.f32 %v940, %v1012
      %v1043 = vmul.f32 %v941, %v1012
      %v1044 = vmul.f32 %v942, %v1012
      %v1045 = vmul.f32 %v943, %v1012
      %v1046 = vmul.f32 %v944, %v1012
      %v1047 = vmul.f32 %v945, %v1012
      %v1048 = vmul.f32 %v946, %v1012
      %v1049 = vmul.f32 %v947, %v1012
      %v1050 = vmul.f32 %v948, %v1012
      %v1051 = vmul.f32 %v949, %v1012
      %v1052 = vmul.f32 %v950, %v1012
      %v1053 = vmul.f32 %v951, %v1012
      %v1054 = vmul.f32 %v952, %v1012
      %v1055 = vmul.f32 %v953, %v1012
      %v1056 = vmul.f32 %v954, %v1012
      %v1057 = vmul.f32 %v955, %v1012
      %v1058 = vmul.f32 %v956, %v1012
      %v1059 = vmul.f32 %v957, %v1012
      %v1060 = vmul.f32 %v958, %v1012
      %v1061 = vmul.f32 %v959, %v1012
      %v1062 = vmul.f32 %v960, %v1012
      %v1063 = vmul.f32 %v961, %v1012
      %v1064 = vmul.f32 %v962, %v1012
      %v1065 = vmul.f32 %v963, %v1012
      %v1066 = vmul.f32 %v964, %v1012
      %v1067 = vmul.f32 %v965, %v1012
      %v1068 = vmul.f32 %v966, %v1012
      %v1069 = vmul.f32 %v967, %v1012
      %v1070 = vmul.f32 %v968, %v1012
      %v1071 = vmul.f32 %v969, %v1012
      %v1072 = vmul.f32 %v970, %v1012
      %v1073 = vmul.f32 %v971, %v1012
      %v1074 = vmul.f32 %v972, %v1012
      %v1075 = vmul.f32 %v973, %v1012
      %v1076 = vmul.f32 %v974, %v1012
      %v1077 = vmul.f32 %v975, %v1012
      %v1078 = vmul.f32 %v976, %v1012
      %v1079 = vmul.f32 %v977, %v1012
      %v1080 = vmul.f32 %v978, %v1012
      %v1081 = vmul.f32 %v979, %v1012
      %v1082 = vmul.f32 %v980, %v1012
      %v1083 = vmul.f32 %v981, %v1012
      %v1084 = vmul.f32 %v982, %v1012
      %v1085 = vmul.f32 %v983, %v1012
      %v1086 = vmul.f32 %v984, %v1012
      %v1087 = vmul.f32 %v985, %v1012
      %v1088 = vmul.f32 %v986, %v1012
      %v1089 = vmul.f32 %v987, %v1012
      %v1090 = vmul.f32 %v988, %v1012
      %v1091 = vmul.f32 %v989, %v1012
      %v1092 = vmul.f32 %v990, %v1012
      %v1093 = vmul.f32 %v991, %v1012
      %v1094 = vmul.f32 %v992, %v1012
      %v1095 = vmul.f32 %v993, %v1012
      %v1096 = vmul.f32 %v994, %v1012
      %v1097 = vmul.f32 %v995, %v1012
      %v1098 = vmul.f32 %v996, %v1012
      %v1099 = vmul.f32 %v997, %v1012
      %v1100 = vmul.f32 %v998, %v1012
      %v1101 = vmul.f32 %v999, %v1012
      %v1102 = vmul.f32 %v1000, %v1012
      %v1103 = vmul.f32 %v1001, %v1012
      %v1104 = vmul.f32 %v1002, %v1012
      %v1105 = vmul.f32 %v1003, %v1012
      %v1106 = vmul.f32 %v1004, %v1012
      %v1107 = vmul.f32 %v1005, %v1012
      %v1108 = vmul.f32 %v1006, %v1012
      %v1109 = vmul.f32 %v1007, %v1012
      %v1110 = vsel %vm508, %v1014, 0.0
      %1111 = vadd.xlane.f32.xlu0 %v1110
      %v1112 = vpop.xlane.xlu0 %1111
      %v1113 = vsel %vm508, %v1015, 0.0
      %1114 = vadd.xlane.f32.xlu0 %v1113
      %v1115 = vpop.xlane.xlu0 %1114
      %v1116 = vsel %vm508, %v1016, 0.0
      %1117 = vadd.xlane.f32.xlu0 %v1116
      %v1118 = vpop.xlane.xlu0 %1117
      %v1119 = vsel %vm508, %v1017, 0.0
      %1120 = vadd.xlane.f32.xlu0 %v1119
      %v1121 = vpop.xlane.xlu0 %1120
      %v1122 = vsel %vm508, %v1018, 0.0
      %1123 = vadd.xlane.f32.xlu0 %v1122
      %v1124 = vpop.xlane.xlu0 %1123
      %v1125 = vsel %vm508, %v1019, 0.0
      %1126 = vadd.xlane.f32.xlu0 %v1125
      %v1127 = vpop.xlane.xlu0 %1126
      %v1128 = vsel %vm508, %v1020, 0.0
      %1129 = vadd.xlane.f32.xlu0 %v1128
      %v1130 = vpop.xlane.xlu0 %1129
      %v1131 = vsel %vm508, %v1021, 0.0
      %1132 = vadd.xlane.f32.xlu0 %v1131
      %v1133 = vpop.xlane.xlu0 %1132
      %v1134 = vsel %vm508, %v1022, 0.0
      %1135 = vadd.xlane.f32.xlu0 %v1134
      %v1136 = vpop.xlane.xlu0 %1135
      %v1137 = vsel %vm508, %v1023, 0.0
      %1138 = vadd.xlane.f32.xlu0 %v1137
      %v1139 = vpop.xlane.xlu0 %1138
      %v1140 = vsel %vm508, %v1024, 0.0
      %1141 = vadd.xlane.f32.xlu0 %v1140
      %v1142 = vpop.xlane.xlu0 %1141
      %v1143 = vsel %vm508, %v1025, 0.0
      %1144 = vadd.xlane.f32.xlu0 %v1143
      %v1145 = vpop.xlane.xlu0 %1144
      %v1146 = vsel %vm508, %v1026, 0.0
      %1147 = vadd.xlane.f32.xlu0 %v1146
      %v1148 = vpop.xlane.xlu0 %1147
      %v1149 = vsel %vm508, %v1027, 0.0
      %1150 = vadd.xlane.f32.xlu0 %v1149
      %v1151 = vpop.xlane.xlu0 %1150
      %v1152 = vsel %vm508, %v1028, 0.0
      %1153 = vadd.xlane.f32.xlu0 %v1152
      %v1154 = vpop.xlane.xlu0 %1153
      %v1155 = vsel %vm508, %v1029, 0.0
      %1156 = vadd.xlane.f32.xlu0 %v1155
      %v1157 = vpop.xlane.xlu0 %1156
      %v1158 = vsel %vm508, %v1030, 0.0
      %1159 = vadd.xlane.f32.xlu0 %v1158
      %v1160 = vpop.xlane.xlu0 %1159
      %v1161 = vsel %vm508, %v1031, 0.0
      %1162 = vadd.xlane.f32.xlu0 %v1161
      %v1163 = vpop.xlane.xlu0 %1162
      %v1164 = vsel %vm508, %v1032, 0.0
      %1165 = vadd.xlane.f32.xlu0 %v1164
      %v1166 = vpop.xlane.xlu0 %1165
      %v1167 = vsel %vm508, %v1033, 0.0
      %1168 = vadd.xlane.f32.xlu0 %v1167
      %v1169 = vpop.xlane.xlu0 %1168
      %v1170 = vsel %vm508, %v1034, 0.0
      %1171 = vadd.xlane.f32.xlu0 %v1170
      %v1172 = vpop.xlane.xlu0 %1171
      %v1173 = vsel %vm508, %v1035, 0.0
      %1174 = vadd.xlane.f32.xlu0 %v1173
      %v1175 = vpop.xlane.xlu0 %1174
      %v1176 = vsel %vm508, %v1036, 0.0
      %1177 = vadd.xlane.f32.xlu0 %v1176
      %v1178 = vpop.xlane.xlu0 %1177
      %v1179 = vsel %vm508, %v1037, 0.0
      %1180 = vadd.xlane.f32.xlu0 %v1179
      %v1181 = vpop.xlane.xlu0 %1180
      %v1182 = vsel %vm508, %v1038, 0.0
      %1183 = vadd.xlane.f32.xlu0 %v1182
      %v1184 = vpop.xlane.xlu0 %1183
      %v1185 = vsel %vm508, %v1039, 0.0
      %1186 = vadd.xlane.f32.xlu0 %v1185
      %v1187 = vpop.xlane.xlu0 %1186
      %v1188 = vsel %vm508, %v1040, 0.0
      %1189 = vadd.xlane.f32.xlu0 %v1188
      %v1190 = vpop.xlane.xlu0 %1189
      %v1191 = vsel %vm508, %v1041, 0.0
      %1192 = vadd.xlane.f32.xlu0 %v1191
      %v1193 = vpop.xlane.xlu0 %1192
      %v1194 = vsel %vm508, %v1042, 0.0
      %1195 = vadd.xlane.f32.xlu0 %v1194
      %v1196 = vpop.xlane.xlu0 %1195
      %v1197 = vsel %vm508, %v1043, 0.0
      %1198 = vadd.xlane.f32.xlu0 %v1197
      %v1199 = vpop.xlane.xlu0 %1198
      %v1200 = vsel %vm508, %v1044, 0.0
      %1201 = vadd.xlane.f32.xlu0 %v1200
      %v1202 = vpop.xlane.xlu0 %1201
      %v1203 = vsel %vm508, %v1045, 0.0
      %1204 = vadd.xlane.f32.xlu0 %v1203
      %v1205 = vpop.xlane.xlu0 %1204
      %v1206 = vsel %vm508, %v1046, 0.0
      %1207 = vadd.xlane.f32.xlu0 %v1206
      %v1208 = vpop.xlane.xlu0 %1207
      %v1209 = vsel %vm508, %v1047, 0.0
      %1210 = vadd.xlane.f32.xlu0 %v1209
      %v1211 = vpop.xlane.xlu0 %1210
      %v1212 = vsel %vm508, %v1048, 0.0
      %1213 = vadd.xlane.f32.xlu0 %v1212
      %v1214 = vpop.xlane.xlu0 %1213
      %v1215 = vsel %vm508, %v1049, 0.0
      %1216 = vadd.xlane.f32.xlu0 %v1215
      %v1217 = vpop.xlane.xlu0 %1216
      %v1218 = vsel %vm508, %v1050, 0.0
      %1219 = vadd.xlane.f32.xlu0 %v1218
      %v1220 = vpop.xlane.xlu0 %1219
      %v1221 = vsel %vm508, %v1051, 0.0
      %1222 = vadd.xlane.f32.xlu0 %v1221
      %v1223 = vpop.xlane.xlu0 %1222
      %v1224 = vsel %vm508, %v1052, 0.0
      %1225 = vadd.xlane.f32.xlu0 %v1224
      %v1226 = vpop.xlane.xlu0 %1225
      %v1227 = vsel %vm508, %v1053, 0.0
      %1228 = vadd.xlane.f32.xlu0 %v1227
      %v1229 = vpop.xlane.xlu0 %1228
      %v1230 = vsel %vm508, %v1054, 0.0
      %1231 = vadd.xlane.f32.xlu0 %v1230
      %v1232 = vpop.xlane.xlu0 %1231
      %v1233 = vsel %vm508, %v1055, 0.0
      %1234 = vadd.xlane.f32.xlu0 %v1233
      %v1235 = vpop.xlane.xlu0 %1234
      %v1236 = vsel %vm508, %v1056, 0.0
      %1237 = vadd.xlane.f32.xlu0 %v1236
      %v1238 = vpop.xlane.xlu0 %1237
      %v1239 = vsel %vm508, %v1057, 0.0
      %1240 = vadd.xlane.f32.xlu0 %v1239
      %v1241 = vpop.xlane.xlu0 %1240
      %v1242 = vsel %vm508, %v1058, 0.0
      %1243 = vadd.xlane.f32.xlu0 %v1242
      %v1244 = vpop.xlane.xlu0 %1243
      %v1245 = vsel %vm508, %v1059, 0.0
      %1246 = vadd.xlane.f32.xlu0 %v1245
      %v1247 = vpop.xlane.xlu0 %1246
      %v1248 = vsel %vm508, %v1060, 0.0
      %1249 = vadd.xlane.f32.xlu0 %v1248
      %v1250 = vpop.xlane.xlu0 %1249
      %v1251 = vsel %vm508, %v1061, 0.0
      %1252 = vadd.xlane.f32.xlu0 %v1251
      %v1253 = vpop.xlane.xlu0 %1252
      %v1254 = vsel %vm508, %v1062, 0.0
      %1255 = vadd.xlane.f32.xlu0 %v1254
      %v1256 = vpop.xlane.xlu0 %1255
      %v1257 = vsel %vm508, %v1063, 0.0
      %1258 = vadd.xlane.f32.xlu0 %v1257
      %v1259 = vpop.xlane.xlu0 %1258
      %v1260 = vsel %vm508, %v1064, 0.0
      %1261 = vadd.xlane.f32.xlu0 %v1260
      %v1262 = vpop.xlane.xlu0 %1261
      %v1263 = vsel %vm508, %v1065, 0.0
      %1264 = vadd.xlane.f32.xlu0 %v1263
      %v1265 = vpop.xlane.xlu0 %1264
      %v1266 = vsel %vm508, %v1066, 0.0
      %1267 = vadd.xlane.f32.xlu0 %v1266
      %v1268 = vpop.xlane.xlu0 %1267
      %v1269 = vsel %vm508, %v1067, 0.0
      %1270 = vadd.xlane.f32.xlu0 %v1269
      %v1271 = vpop.xlane.xlu0 %1270
      %v1272 = vsel %vm508, %v1068, 0.0
      %1273 = vadd.xlane.f32.xlu0 %v1272
      %v1274 = vpop.xlane.xlu0 %1273
      %v1275 = vsel %vm508, %v1069, 0.0
      %1276 = vadd.xlane.f32.xlu0 %v1275
      %v1277 = vpop.xlane.xlu0 %1276
      %v1278 = vsel %vm508, %v1070, 0.0
      %1279 = vadd.xlane.f32.xlu0 %v1278
      %v1280 = vpop.xlane.xlu0 %1279
      %v1281 = vsel %vm508, %v1071, 0.0
      %1282 = vadd.xlane.f32.xlu0 %v1281
      %v1283 = vpop.xlane.xlu0 %1282
      %v1284 = vsel %vm508, %v1072, 0.0
      %1285 = vadd.xlane.f32.xlu0 %v1284
      %v1286 = vpop.xlane.xlu0 %1285
      %v1287 = vsel %vm508, %v1073, 0.0
      %1288 = vadd.xlane.f32.xlu0 %v1287
      %v1289 = vpop.xlane.xlu0 %1288
      %v1290 = vsel %vm508, %v1074, 0.0
      %1291 = vadd.xlane.f32.xlu0 %v1290
      %v1292 = vpop.xlane.xlu0 %1291
      %v1293 = vsel %vm508, %v1075, 0.0
      %1294 = vadd.xlane.f32.xlu0 %v1293
      %v1295 = vpop.xlane.xlu0 %1294
      %v1296 = vsel %vm508, %v1076, 0.0
      %1297 = vadd.xlane.f32.xlu0 %v1296
      %v1298 = vpop.xlane.xlu0 %1297
      %v1299 = vsel %vm508, %v1077, 0.0
      %1300 = vadd.xlane.f32.xlu0 %v1299
      %v1301 = vpop.xlane.xlu0 %1300
      %v1302 = vsel %vm508, %v1078, 0.0
      %1303 = vadd.xlane.f32.xlu0 %v1302
      %v1304 = vpop.xlane.xlu0 %1303
      %v1305 = vsel %vm508, %v1079, 0.0
      %1306 = vadd.xlane.f32.xlu0 %v1305
      %v1307 = vpop.xlane.xlu0 %1306
      %v1308 = vsel %vm508, %v1080, 0.0
      %1309 = vadd.xlane.f32.xlu0 %v1308
      %v1310 = vpop.xlane.xlu0 %1309
      %v1311 = vsel %vm508, %v1081, 0.0
      %1312 = vadd.xlane.f32.xlu0 %v1311
      %v1313 = vpop.xlane.xlu0 %1312
      %v1314 = vsel %vm508, %v1082, 0.0
      %1315 = vadd.xlane.f32.xlu0 %v1314
      %v1316 = vpop.xlane.xlu0 %1315
      %v1317 = vsel %vm508, %v1083, 0.0
      %1318 = vadd.xlane.f32.xlu0 %v1317
      %v1319 = vpop.xlane.xlu0 %1318
      %v1320 = vsel %vm508, %v1084, 0.0
      %1321 = vadd.xlane.f32.xlu0 %v1320
      %v1322 = vpop.xlane.xlu0 %1321
      %v1323 = vsel %vm508, %v1085, 0.0
      %1324 = vadd.xlane.f32.xlu0 %v1323
      %v1325 = vpop.xlane.xlu0 %1324
      %v1326 = vsel %vm508, %v1086, 0.0
      %1327 = vadd.xlane.f32.xlu0 %v1326
      %v1328 = vpop.xlane.xlu0 %1327
      %v1329 = vsel %vm508, %v1087, 0.0
      %1330 = vadd.xlane.f32.xlu0 %v1329
      %v1331 = vpop.xlane.xlu0 %1330
      %v1332 = vsel %vm508, %v1088, 0.0
      %1333 = vadd.xlane.f32.xlu0 %v1332
      %v1334 = vpop.xlane.xlu0 %1333
      %v1335 = vsel %vm508, %v1089, 0.0
      %1336 = vadd.xlane.f32.xlu0 %v1335
      %v1337 = vpop.xlane.xlu0 %1336
      %v1338 = vsel %vm508, %v1090, 0.0
      %1339 = vadd.xlane.f32.xlu0 %v1338
      %v1340 = vpop.xlane.xlu0 %1339
      %v1341 = vsel %vm508, %v1091, 0.0
      %1342 = vadd.xlane.f32.xlu0 %v1341
      %v1343 = vpop.xlane.xlu0 %1342
      %v1344 = vsel %vm508, %v1092, 0.0
      %1345 = vadd.xlane.f32.xlu0 %v1344
      %v1346 = vpop.xlane.xlu0 %1345
      %v1347 = vsel %vm508, %v1093, 0.0
      %1348 = vadd.xlane.f32.xlu0 %v1347
      %v1349 = vpop.xlane.xlu0 %1348
      %v1350 = vsel %vm508, %v1094, 0.0
      %1351 = vadd.xlane.f32.xlu0 %v1350
      %v1352 = vpop.xlane.xlu0 %1351
      %v1353 = vsel %vm508, %v1095, 0.0
      %1354 = vadd.xlane.f32.xlu0 %v1353
      %v1355 = vpop.xlane.xlu0 %1354
      %v1356 = vsel %vm508, %v1096, 0.0
      %1357 = vadd.xlane.f32.xlu0 %v1356
      %v1358 = vpop.xlane.xlu0 %1357
      %v1359 = vsel %vm508, %v1097, 0.0
      %1360 = vadd.xlane.f32.xlu0 %v1359
      %v1361 = vpop.xlane.xlu0 %1360
      %v1362 = vsel %vm508, %v1098, 0.0
      %1363 = vadd.xlane.f32.xlu0 %v1362
      %v1364 = vpop.xlane.xlu0 %1363
      %v1365 = vsel %vm508, %v1099, 0.0
      %1366 = vadd.xlane.f32.xlu0 %v1365
      %v1367 = vpop.xlane.xlu0 %1366
      %v1368 = vsel %vm508, %v1100, 0.0
      %1369 = vadd.xlane.f32.xlu0 %v1368
      %v1370 = vpop.xlane.xlu0 %1369
      %v1371 = vsel %vm508, %v1101, 0.0
      %1372 = vadd.xlane.f32.xlu0 %v1371
      %v1373 = vpop.xlane.xlu0 %1372
      %v1374 = vsel %vm508, %v1102, 0.0
      %1375 = vadd.xlane.f32.xlu0 %v1374
      %v1376 = vpop.xlane.xlu0 %1375
      %v1377 = vsel %vm508, %v1103, 0.0
      %1378 = vadd.xlane.f32.xlu0 %v1377
      %v1379 = vpop.xlane.xlu0 %1378
      %v1380 = vsel %vm508, %v1104, 0.0
      %1381 = vadd.xlane.f32.xlu0 %v1380
      %v1382 = vpop.xlane.xlu0 %1381
      %v1383 = vsel %vm508, %v1105, 0.0
      %1384 = vadd.xlane.f32.xlu0 %v1383
      %v1385 = vpop.xlane.xlu0 %1384
      %v1386 = vsel %vm508, %v1106, 0.0
      %1387 = vadd.xlane.f32.xlu0 %v1386
      %v1388 = vpop.xlane.xlu0 %1387
      %v1389 = vsel %vm508, %v1107, 0.0
      %1390 = vadd.xlane.f32.xlu0 %v1389
      %v1391 = vpop.xlane.xlu0 %1390
      %v1392 = vsel %vm508, %v1108, 0.0
      %1393 = vadd.xlane.f32.xlu0 %v1392
      %v1394 = vpop.xlane.xlu0 %1393
      %v1395 = vsel %vm508, %v1109, 0.0
      %1396 = vadd.xlane.f32.xlu0 %v1395
      %v1397 = vpop.xlane.xlu0 %1396
      %v1398 = vlaneseq
      %v1399 = vand.u32 %v1398, 127
      %v1400 = vstv %s491
      %vm1401 = vcmp.lt.s32.totalorder %v1399, %v1400
      %v1402 = vsel %vm1401, 1, 0
      %vm1403 = vcmp.eq.s32.totalorder %v1402, 1
      %v1500 = vlaneseq
      %v1501 = vshrl.u32 %v1500, 7
      %v1502 = vsub.s32 %v1399, %v1501
      %v1503 = vrot.slane %v1112, %v1502
      %v1504 = vadd.s32 %v1399, 4294967288
      %v1505 = vlaneseq
      %v1506 = vshrl.u32 %v1505, 7
      %v1507 = vsub.s32 %v1504, %v1506
      %v1508 = vrot.slane %v1115, %v1507
      %vm1509 = vcmask 130112
      %v1510 = vsel %vm1509, %v1508, %v1503
      %v1511 = vadd.s32 %v1399, 4294967280
      %v1512 = vlaneseq
      %v1513 = vshrl.u32 %v1512, 7
      %v1514 = vsub.s32 %v1511, %v1513
      %v1515 = vrot.slane %v1118, %v1514
      %vm1516 = vcmask 195712
      %v1517 = vsel %vm1516, %v1515, %v1510
      %v1518 = vadd.s32 %v1399, 4294967272
      %v1519 = vlaneseq
      %v1520 = vshrl.u32 %v1519, 7
      %v1521 = vsub.s32 %v1518, %v1520
      %v1522 = vrot.slane %v1121, %v1521
      %vm1523 = vcmask 261312
      %v1524 = vsel %vm1523, %v1522, %v1517
      %v1525 = vadd.s32 %v1399, 4294967264
      %v1526 = vlaneseq
      %v1527 = vshrl.u32 %v1526, 7
      %v1528 = vsub.s32 %v1525, %v1527
      %v1529 = vrot.slane %v1124, %v1528
      %vm1530 = vcmask 326912
      %v1531 = vsel %vm1530, %v1529, %v1524
      %v1532 = vadd.s32 %v1399, 4294967256
      %v1533 = vlaneseq
      %v1534 = vshrl.u32 %v1533, 7
      %v1535 = vsub.s32 %v1532, %v1534
      %v1536 = vrot.slane %v1127, %v1535
      %vm1537 = vcmask 392512
      %v1538 = vsel %vm1537, %v1536, %v1531
      %v1539 = vadd.s32 %v1399, 4294967248
      %v1540 = vlaneseq
      %v1541 = vshrl.u32 %v1540, 7
      %v1542 = vsub.s32 %v1539, %v1541
      %v1543 = vrot.slane %v1130, %v1542
      %vm1544 = vcmask 458112
      %v1545 = vsel %vm1544, %v1543, %v1538
      %v1546 = vadd.s32 %v1399, 4294967240
      %v1547 = vlaneseq
      %v1548 = vshrl.u32 %v1547, 7
      %v1549 = vsub.s32 %v1546, %v1548
      %v1550 = vrot.slane %v1133, %v1549
      %vm1551 = vcmask 523712
      %v1552 = vsel %vm1551, %v1550, %v1545
      %v1553 = vadd.s32 %v1399, 4294967232
      %v1554 = vlaneseq
      %v1555 = vshrl.u32 %v1554, 7
      %v1556 = vsub.s32 %v1553, %v1555
      %v1557 = vrot.slane %v1136, %v1556
      %vm1558 = vcmask 589312
      %v1559 = vsel %vm1558, %v1557, %v1552
      %v1560 = vadd.s32 %v1399, 4294967224
      %v1561 = vlaneseq
      %v1562 = vshrl.u32 %v1561, 7
      %v1563 = vsub.s32 %v1560, %v1562
      %v1564 = vrot.slane %v1139, %v1563
      %vm1565 = vcmask 654912
      %v1566 = vsel %vm1565, %v1564, %v1559
      %v1567 = vadd.s32 %v1399, 4294967216
      %v1568 = vlaneseq
      %v1569 = vshrl.u32 %v1568, 7
      %v1570 = vsub.s32 %v1567, %v1569
      %v1571 = vrot.slane %v1142, %v1570
      %vm1572 = vcmask 720512
      %v1573 = vsel %vm1572, %v1571, %v1566
      %v1574 = vadd.s32 %v1399, 4294967208
      %v1575 = vlaneseq
      %v1576 = vshrl.u32 %v1575, 7
      %v1577 = vsub.s32 %v1574, %v1576
      %v1578 = vrot.slane %v1145, %v1577
      %vm1579 = vcmask 786112
      %v1580 = vsel %vm1579, %v1578, %v1573
      %v1581 = vadd.s32 %v1399, 4294967200
      %v1582 = vlaneseq
      %v1583 = vshrl.u32 %v1582, 7
      %v1584 = vsub.s32 %v1581, %v1583
      %v1585 = vrot.slane %v1148, %v1584
      %vm1586 = vcmask 851712
      %v1587 = vsel %vm1586, %v1585, %v1580
      %v1588 = vadd.s32 %v1399, 4294967192
      %v1589 = vlaneseq
      %v1590 = vshrl.u32 %v1589, 7
      %v1591 = vsub.s32 %v1588, %v1590
      %v1592 = vrot.slane %v1151, %v1591
      %vm1593 = vcmask 917312
      %v1594 = vsel %vm1593, %v1592, %v1587
      %v1595 = vadd.s32 %v1399, 4294967184
      %v1596 = vlaneseq
      %v1597 = vshrl.u32 %v1596, 7
      %v1598 = vsub.s32 %v1595, %v1597
      %v1599 = vrot.slane %v1154, %v1598
      %vm1600 = vcmask 982912
      %v1601 = vsel %vm1600, %v1599, %v1594
      %v1602 = vadd.s32 %v1399, 4294967176
      %v1603 = vlaneseq
      %v1604 = vshrl.u32 %v1603, 7
      %v1605 = vsub.s32 %v1602, %v1604
      %v1606 = vrot.slane %v1157, %v1605
      %vm1607 = vcmask 1048512
      %v1608 = vsel %vm1607, %v1606, %v1601
      %v1609 = vlaneseq
      %v1610 = vshrl.u32 %v1609, 7
      %v1611 = vsub.s32 %v1399, %v1610
      %v1612 = vrot.slane %v1160, %v1611
      %v1613 = vlaneseq
      %v1614 = vshrl.u32 %v1613, 7
      %v1615 = vsub.s32 %v1504, %v1614
      %v1616 = vrot.slane %v1163, %v1615
      %v1617 = vsel %vm1509, %v1616, %v1612
      %v1618 = vlaneseq
      %v1619 = vshrl.u32 %v1618, 7
      %v1620 = vsub.s32 %v1511, %v1619
      %v1621 = vrot.slane %v1166, %v1620
      %v1622 = vsel %vm1516, %v1621, %v1617
      %v1623 = vlaneseq
      %v1624 = vshrl.u32 %v1623, 7
      %v1625 = vsub.s32 %v1518, %v1624
      %v1626 = vrot.slane %v1169, %v1625
      %v1627 = vsel %vm1523, %v1626, %v1622
      %v1628 = vlaneseq
      %v1629 = vshrl.u32 %v1628, 7
      %v1630 = vsub.s32 %v1525, %v1629
      %v1631 = vrot.slane %v1172, %v1630
      %v1632 = vsel %vm1530, %v1631, %v1627
      %v1633 = vlaneseq
      %v1634 = vshrl.u32 %v1633, 7
      %v1635 = vsub.s32 %v1532, %v1634
      %v1636 = vrot.slane %v1175, %v1635
      %v1637 = vsel %vm1537, %v1636, %v1632
      %v1638 = vlaneseq
      %v1639 = vshrl.u32 %v1638, 7
      %v1640 = vsub.s32 %v1539, %v1639
      %v1641 = vrot.slane %v1178, %v1640
      %v1642 = vsel %vm1544, %v1641, %v1637
      %v1643 = vlaneseq
      %v1644 = vshrl.u32 %v1643, 7
      %v1645 = vsub.s32 %v1546, %v1644
      %v1646 = vrot.slane %v1181, %v1645
      %v1647 = vsel %vm1551, %v1646, %v1642
      %v1648 = vlaneseq
      %v1649 = vshrl.u32 %v1648, 7
      %v1650 = vsub.s32 %v1553, %v1649
      %v1651 = vrot.slane %v1184, %v1650
      %v1652 = vsel %vm1558, %v1651, %v1647
      %v1653 = vlaneseq
      %v1654 = vshrl.u32 %v1653, 7
      %v1655 = vsub.s32 %v1560, %v1654
      %v1656 = vrot.slane %v1187, %v1655
      %v1657 = vsel %vm1565, %v1656, %v1652
      %v1658 = vlaneseq
      %v1659 = vshrl.u32 %v1658, 7
      %v1660 = vsub.s32 %v1567, %v1659
      %v1661 = vrot.slane %v1190, %v1660
      %v1662 = vsel %vm1572, %v1661, %v1657
      %v1663 = vlaneseq
      %v1664 = vshrl.u32 %v1663, 7
      %v1665 = vsub.s32 %v1574, %v1664
      %v1666 = vrot.slane %v1193, %v1665
      %v1667 = vsel %vm1579, %v1666, %v1662
      %v1668 = vlaneseq
      %v1669 = vshrl.u32 %v1668, 7
      %v1670 = vsub.s32 %v1581, %v1669
      %v1671 = vrot.slane %v1196, %v1670
      %v1672 = vsel %vm1586, %v1671, %v1667
      %v1673 = vlaneseq
      %v1674 = vshrl.u32 %v1673, 7
      %v1675 = vsub.s32 %v1588, %v1674
      %v1676 = vrot.slane %v1199, %v1675
      %v1677 = vsel %vm1593, %v1676, %v1672
      %v1678 = vlaneseq
      %v1679 = vshrl.u32 %v1678, 7
      %v1680 = vsub.s32 %v1595, %v1679
      %v1681 = vrot.slane %v1202, %v1680
      %v1682 = vsel %vm1600, %v1681, %v1677
      %v1683 = vlaneseq
      %v1684 = vshrl.u32 %v1683, 7
      %v1685 = vsub.s32 %v1602, %v1684
      %v1686 = vrot.slane %v1205, %v1685
      %v1687 = vsel %vm1607, %v1686, %v1682
      %v1688 = vlaneseq
      %v1689 = vshrl.u32 %v1688, 7
      %v1690 = vsub.s32 %v1399, %v1689
      %v1691 = vrot.slane %v1208, %v1690
      %v1692 = vlaneseq
      %v1693 = vshrl.u32 %v1692, 7
      %v1694 = vsub.s32 %v1504, %v1693
      %v1695 = vrot.slane %v1211, %v1694
      %v1696 = vsel %vm1509, %v1695, %v1691
      %v1697 = vlaneseq
      %v1698 = vshrl.u32 %v1697, 7
      %v1699 = vsub.s32 %v1511, %v1698
      %v1700 = vrot.slane %v1214, %v1699
      %v1701 = vsel %vm1516, %v1700, %v1696
      %v1702 = vlaneseq
      %v1703 = vshrl.u32 %v1702, 7
      %v1704 = vsub.s32 %v1518, %v1703
      %v1705 = vrot.slane %v1217, %v1704
      %v1706 = vsel %vm1523, %v1705, %v1701
      %v1707 = vlaneseq
      %v1708 = vshrl.u32 %v1707, 7
      %v1709 = vsub.s32 %v1525, %v1708
      %v1710 = vrot.slane %v1220, %v1709
      %v1711 = vsel %vm1530, %v1710, %v1706
      %v1712 = vlaneseq
      %v1713 = vshrl.u32 %v1712, 7
      %v1714 = vsub.s32 %v1532, %v1713
      %v1715 = vrot.slane %v1223, %v1714
      %v1716 = vsel %vm1537, %v1715, %v1711
      %v1717 = vlaneseq
      %v1718 = vshrl.u32 %v1717, 7
      %v1719 = vsub.s32 %v1539, %v1718
      %v1720 = vrot.slane %v1226, %v1719
      %v1721 = vsel %vm1544, %v1720, %v1716
      %v1722 = vlaneseq
      %v1723 = vshrl.u32 %v1722, 7
      %v1724 = vsub.s32 %v1546, %v1723
      %v1725 = vrot.slane %v1229, %v1724
      %v1726 = vsel %vm1551, %v1725, %v1721
      %v1727 = vlaneseq
      %v1728 = vshrl.u32 %v1727, 7
      %v1729 = vsub.s32 %v1553, %v1728
      %v1730 = vrot.slane %v1232, %v1729
      %v1731 = vsel %vm1558, %v1730, %v1726
      %v1732 = vlaneseq
      %v1733 = vshrl.u32 %v1732, 7
      %v1734 = vsub.s32 %v1560, %v1733
      %v1735 = vrot.slane %v1235, %v1734
      %v1736 = vsel %vm1565, %v1735, %v1731
      %v1737 = vlaneseq
      %v1738 = vshrl.u32 %v1737, 7
      %v1739 = vsub.s32 %v1567, %v1738
      %v1740 = vrot.slane %v1238, %v1739
      %v1741 = vsel %vm1572, %v1740, %v1736
      %v1742 = vlaneseq
      %v1743 = vshrl.u32 %v1742, 7
      %v1744 = vsub.s32 %v1574, %v1743
      %v1745 = vrot.slane %v1241, %v1744
      %v1746 = vsel %vm1579, %v1745, %v1741
      %v1747 = vlaneseq
      %v1748 = vshrl.u32 %v1747, 7
      %v1749 = vsub.s32 %v1581, %v1748
      %v1750 = vrot.slane %v1244, %v1749
      %v1751 = vsel %vm1586, %v1750, %v1746
      %v1752 = vlaneseq
      %v1753 = vshrl.u32 %v1752, 7
      %v1754 = vsub.s32 %v1588, %v1753
      %v1755 = vrot.slane %v1247, %v1754
      %v1756 = vsel %vm1593, %v1755, %v1751
      %v1757 = vlaneseq
      %v1758 = vshrl.u32 %v1757, 7
      %v1759 = vsub.s32 %v1595, %v1758
      %v1760 = vrot.slane %v1250, %v1759
      %v1761 = vsel %vm1600, %v1760, %v1756
      %v1762 = vlaneseq
      %v1763 = vshrl.u32 %v1762, 7
      %v1764 = vsub.s32 %v1602, %v1763
      %v1765 = vrot.slane %v1253, %v1764
      %v1766 = vsel %vm1607, %v1765, %v1761
      %v1767 = vlaneseq
      %v1768 = vshrl.u32 %v1767, 7
      %v1769 = vsub.s32 %v1399, %v1768
      %v1770 = vrot.slane %v1256, %v1769
      %v1771 = vlaneseq
      %v1772 = vshrl.u32 %v1771, 7
      %v1773 = vsub.s32 %v1504, %v1772
      %v1774 = vrot.slane %v1259, %v1773
      %v1775 = vsel %vm1509, %v1774, %v1770
      %v1776 = vlaneseq
      %v1777 = vshrl.u32 %v1776, 7
      %v1778 = vsub.s32 %v1511, %v1777
      %v1779 = vrot.slane %v1262, %v1778
      %v1780 = vsel %vm1516, %v1779, %v1775
      %v1781 = vlaneseq
      %v1782 = vshrl.u32 %v1781, 7
      %v1783 = vsub.s32 %v1518, %v1782
      %v1784 = vrot.slane %v1265, %v1783
      %v1785 = vsel %vm1523, %v1784, %v1780
      %v1786 = vlaneseq
      %v1787 = vshrl.u32 %v1786, 7
      %v1788 = vsub.s32 %v1525, %v1787
      %v1789 = vrot.slane %v1268, %v1788
      %v1790 = vsel %vm1530, %v1789, %v1785
      %v1791 = vlaneseq
      %v1792 = vshrl.u32 %v1791, 7
      %v1793 = vsub.s32 %v1532, %v1792
      %v1794 = vrot.slane %v1271, %v1793
      %v1795 = vsel %vm1537, %v1794, %v1790
      %v1796 = vlaneseq
      %v1797 = vshrl.u32 %v1796, 7
      %v1798 = vsub.s32 %v1539, %v1797
      %v1799 = vrot.slane %v1274, %v1798
      %v1800 = vsel %vm1544, %v1799, %v1795
      %v1801 = vlaneseq
      %v1802 = vshrl.u32 %v1801, 7
      %v1803 = vsub.s32 %v1546, %v1802
      %v1804 = vrot.slane %v1277, %v1803
      %v1805 = vsel %vm1551, %v1804, %v1800
      %v1806 = vlaneseq
      %v1807 = vshrl.u32 %v1806, 7
      %v1808 = vsub.s32 %v1553, %v1807
      %v1809 = vrot.slane %v1280, %v1808
      %v1810 = vsel %vm1558, %v1809, %v1805
      %v1811 = vlaneseq
      %v1812 = vshrl.u32 %v1811, 7
      %v1813 = vsub.s32 %v1560, %v1812
      %v1814 = vrot.slane %v1283, %v1813
      %v1815 = vsel %vm1565, %v1814, %v1810
      %v1816 = vlaneseq
      %v1817 = vshrl.u32 %v1816, 7
      %v1818 = vsub.s32 %v1567, %v1817
      %v1819 = vrot.slane %v1286, %v1818
      %v1820 = vsel %vm1572, %v1819, %v1815
      %v1821 = vlaneseq
      %v1822 = vshrl.u32 %v1821, 7
      %v1823 = vsub.s32 %v1574, %v1822
      %v1824 = vrot.slane %v1289, %v1823
      %v1825 = vsel %vm1579, %v1824, %v1820
      %v1826 = vlaneseq
      %v1827 = vshrl.u32 %v1826, 7
      %v1828 = vsub.s32 %v1581, %v1827
      %v1829 = vrot.slane %v1292, %v1828
      %v1830 = vsel %vm1586, %v1829, %v1825
      %v1831 = vlaneseq
      %v1832 = vshrl.u32 %v1831, 7
      %v1833 = vsub.s32 %v1588, %v1832
      %v1834 = vrot.slane %v1295, %v1833
      %v1835 = vsel %vm1593, %v1834, %v1830
      %v1836 = vlaneseq
      %v1837 = vshrl.u32 %v1836, 7
      %v1838 = vsub.s32 %v1595, %v1837
      %v1839 = vrot.slane %v1298, %v1838
      %v1840 = vsel %vm1600, %v1839, %v1835
      %v1841 = vlaneseq
      %v1842 = vshrl.u32 %v1841, 7
      %v1843 = vsub.s32 %v1602, %v1842
      %v1844 = vrot.slane %v1301, %v1843
      %v1845 = vsel %vm1607, %v1844, %v1840
      %v1846 = vlaneseq
      %v1847 = vshrl.u32 %v1846, 7
      %v1848 = vsub.s32 %v1399, %v1847
      %v1849 = vrot.slane %v1304, %v1848
      %v1850 = vlaneseq
      %v1851 = vshrl.u32 %v1850, 7
      %v1852 = vsub.s32 %v1504, %v1851
      %v1853 = vrot.slane %v1307, %v1852
      %v1854 = vsel %vm1509, %v1853, %v1849
      %v1855 = vlaneseq
      %v1856 = vshrl.u32 %v1855, 7
      %v1857 = vsub.s32 %v1511, %v1856
      %v1858 = vrot.slane %v1310, %v1857
      %v1859 = vsel %vm1516, %v1858, %v1854
      %v1860 = vlaneseq
      %v1861 = vshrl.u32 %v1860, 7
      %v1862 = vsub.s32 %v1518, %v1861
      %v1863 = vrot.slane %v1313, %v1862
      %v1864 = vsel %vm1523, %v1863, %v1859
      %v1865 = vlaneseq
      %v1866 = vshrl.u32 %v1865, 7
      %v1867 = vsub.s32 %v1525, %v1866
      %v1868 = vrot.slane %v1316, %v1867
      %v1869 = vsel %vm1530, %v1868, %v1864
      %v1870 = vlaneseq
      %v1871 = vshrl.u32 %v1870, 7
      %v1872 = vsub.s32 %v1532, %v1871
      %v1873 = vrot.slane %v1319, %v1872
      %v1874 = vsel %vm1537, %v1873, %v1869
      %v1875 = vlaneseq
      %v1876 = vshrl.u32 %v1875, 7
      %v1877 = vsub.s32 %v1539, %v1876
      %v1878 = vrot.slane %v1322, %v1877
      %v1879 = vsel %vm1544, %v1878, %v1874
      %v1880 = vlaneseq
      %v1881 = vshrl.u32 %v1880, 7
      %v1882 = vsub.s32 %v1546, %v1881
      %v1883 = vrot.slane %v1325, %v1882
      %v1884 = vsel %vm1551, %v1883, %v1879
      %v1885 = vlaneseq
      %v1886 = vshrl.u32 %v1885, 7
      %v1887 = vsub.s32 %v1553, %v1886
      %v1888 = vrot.slane %v1328, %v1887
      %v1889 = vsel %vm1558, %v1888, %v1884
      %v1890 = vlaneseq
      %v1891 = vshrl.u32 %v1890, 7
      %v1892 = vsub.s32 %v1560, %v1891
      %v1893 = vrot.slane %v1331, %v1892
      %v1894 = vsel %vm1565, %v1893, %v1889
      %v1895 = vlaneseq
      %v1896 = vshrl.u32 %v1895, 7
      %v1897 = vsub.s32 %v1567, %v1896
      %v1898 = vrot.slane %v1334, %v1897
      %v1899 = vsel %vm1572, %v1898, %v1894
      %v1900 = vlaneseq
      %v1901 = vshrl.u32 %v1900, 7
      %v1902 = vsub.s32 %v1574, %v1901
      %v1903 = vrot.slane %v1337, %v1902
      %v1904 = vsel %vm1579, %v1903, %v1899
      %v1905 = vlaneseq
      %v1906 = vshrl.u32 %v1905, 7
      %v1907 = vsub.s32 %v1581, %v1906
      %v1908 = vrot.slane %v1340, %v1907
      %v1909 = vsel %vm1586, %v1908, %v1904
      %v1910 = vlaneseq
      %v1911 = vshrl.u32 %v1910, 7
      %v1912 = vsub.s32 %v1588, %v1911
      %v1913 = vrot.slane %v1343, %v1912
      %v1914 = vsel %vm1593, %v1913, %v1909
      %v1915 = vlaneseq
      %v1916 = vshrl.u32 %v1915, 7
      %v1917 = vsub.s32 %v1595, %v1916
      %v1918 = vrot.slane %v1346, %v1917
      %v1919 = vsel %vm1600, %v1918, %v1914
      %v1920 = vlaneseq
      %v1921 = vshrl.u32 %v1920, 7
      %v1922 = vsub.s32 %v1602, %v1921
      %v1923 = vrot.slane %v1349, %v1922
      %v1924 = vsel %vm1607, %v1923, %v1919
      %v1925 = vlaneseq
      %v1926 = vshrl.u32 %v1925, 7
      %v1927 = vsub.s32 %v1399, %v1926
      %v1928 = vrot.slane %v1352, %v1927
      %v1929 = vlaneseq
      %v1930 = vshrl.u32 %v1929, 7
      %v1931 = vsub.s32 %v1504, %v1930
      %v1932 = vrot.slane %v1355, %v1931
      %v1933 = vsel %vm1509, %v1932, %v1928
      %v1934 = vlaneseq
      %v1935 = vshrl.u32 %v1934, 7
      %v1936 = vsub.s32 %v1511, %v1935
      %v1937 = vrot.slane %v1358, %v1936
      %v1938 = vsel %vm1516, %v1937, %v1933
      %v1939 = vlaneseq
      %v1940 = vshrl.u32 %v1939, 7
      %v1941 = vsub.s32 %v1518, %v1940
      %v1942 = vrot.slane %v1361, %v1941
      %v1943 = vsel %vm1523, %v1942, %v1938
      %v1944 = vlaneseq
      %v1945 = vshrl.u32 %v1944, 7
      %v1946 = vsub.s32 %v1525, %v1945
      %v1947 = vrot.slane %v1364, %v1946
      %v1948 = vsel %vm1530, %v1947, %v1943
      %v1949 = vlaneseq
      %v1950 = vshrl.u32 %v1949, 7
      %v1951 = vsub.s32 %v1532, %v1950
      %v1952 = vrot.slane %v1367, %v1951
      %v1953 = vsel %vm1537, %v1952, %v1948
      %v1954 = vlaneseq
      %v1955 = vshrl.u32 %v1954, 7
      %v1956 = vsub.s32 %v1539, %v1955
      %v1957 = vrot.slane %v1370, %v1956
      %v1958 = vsel %vm1544, %v1957, %v1953
      %v1959 = vlaneseq
      %v1960 = vshrl.u32 %v1959, 7
      %v1961 = vsub.s32 %v1546, %v1960
      %v1962 = vrot.slane %v1373, %v1961
      %v1963 = vsel %vm1551, %v1962, %v1958
      %v1964 = vlaneseq
      %v1965 = vshrl.u32 %v1964, 7
      %v1966 = vsub.s32 %v1553, %v1965
      %v1967 = vrot.slane %v1376, %v1966
      %v1968 = vsel %vm1558, %v1967, %v1963
      %v1969 = vlaneseq
      %v1970 = vshrl.u32 %v1969, 7
      %v1971 = vsub.s32 %v1560, %v1970
      %v1972 = vrot.slane %v1379, %v1971
      %v1973 = vsel %vm1565, %v1972, %v1968
      %v1974 = vlaneseq
      %v1975 = vshrl.u32 %v1974, 7
      %v1976 = vsub.s32 %v1567, %v1975
      %v1977 = vrot.slane %v1382, %v1976
      %v1978 = vsel %vm1572, %v1977, %v1973
      %v1979 = vlaneseq
      %v1980 = vshrl.u32 %v1979, 7
      %v1981 = vsub.s32 %v1574, %v1980
      %v1982 = vrot.slane %v1385, %v1981
      %v1983 = vsel %vm1579, %v1982, %v1978
      %v1984 = vlaneseq
      %v1985 = vshrl.u32 %v1984, 7
      %v1986 = vsub.s32 %v1581, %v1985
      %v1987 = vrot.slane %v1388, %v1986
      %v1988 = vsel %vm1586, %v1987, %v1983
      %v1989 = vlaneseq
      %v1990 = vshrl.u32 %v1989, 7
      %v1991 = vsub.s32 %v1588, %v1990
      %v1992 = vrot.slane %v1391, %v1991
      %v1993 = vsel %vm1593, %v1992, %v1988
      %v1994 = vlaneseq
      %v1995 = vshrl.u32 %v1994, 7
      %v1996 = vsub.s32 %v1595, %v1995
      %v1997 = vrot.slane %v1394, %v1996
      %v1998 = vsel %vm1600, %v1997, %v1993
      %v1999 = vlaneseq
      %v2000 = vshrl.u32 %v1999, 7
      %v2001 = vsub.s32 %v1602, %v2000
      %v2002 = vrot.slane %v1397, %v2001
      %v2003 = vsel %vm1607, %v2002, %v1998
      %vm2004 = vcmask 1041409
      %v2005 = vsel %vm2004, %v1687, %v1608
      %vm2006 = vcmask 1042434
      %v2007 = vsel %vm2006, %v1766, %v2005
      %vm2008 = vcmask 1043459
      %v2009 = vsel %vm2008, %v1845, %v2007
      %vm2010 = vcmask 1044484
      %v2011 = vsel %vm2010, %v1924, %v2009
      %vm2012 = vcmask 1045509
      %v2013 = vsel %vm2012, %v2003, %v2011
      %v2015 = vsel %vm1403, %v2013, -1e+18
      %vm2016 = vcmask 1045504
      %v2017 = vsel %vm2016, %v2015, -inf
      %2018 = vmax.xlane.f32.xlu0 %v2017
      %v2019 = vpop.xlane.xlu0 %2018
      %v2020 = vmax.f32 %v2019, -1e+30
      %v2021 = vsub.f32 -1e+30, %v2020
      %v2022 = vmul.f32 %v2021, 1.442695
      %v2023 = vpow.pop %v2022
      %v2024 = vsub.f32 %v2015, %v2020
      %v2025 = vmul.f32 %v2024, 1.442695
      %v2026 = vpow.pop %v2025
      %v2027 = vmul.f32 %v2023, 0.0
      %v2028 = vsel %vm2016, %v2026, 0.0
      %2029 = vadd.xlane.f32.xlu0 %v2028
      %v2030 = vpop.xlane.xlu0 %2029
      %v2031 = vadd.f32 %v2027, %v2030
      %v2032 = vpack.c.bf16 %v2026, %v2026
      %v2033 = vpack.c.bf16 %v679, %v676
      %v2034 = vpack.c.bf16 %v687, %v684
      %v2035 = vpack.c.bf16 %v695, %v692
      %v2036 = vpack.c.bf16 %v703, %v700
      %v2037 = vpack.c.bf16 %v711, %v708
      %v2038 = vpack.c.bf16 %v719, %v716
      %v2039 = vpack.c.bf16 %v727, %v724
      %v2040 = vpack.c.bf16 %v735, %v732
      %2041 = vmatprep.subr.bf16.mxu0 0
      %2042 = vmatpush1.bf16.msra.mxu0 %v2040
      %2043 = vmatprep.subr.bf16.mxu0 0
      %2044 = vmatpush1.bf16.msra.mxu0 %v2039
      %2045 = vmatprep.subr.bf16.mxu0 0
      %2046 = vmatpush1.bf16.msra.mxu0 %v2038
      %2047 = vmatprep.subr.bf16.mxu0 0
      %2048 = vmatpush1.bf16.msra.mxu0 %v2037
      %2049 = vmatprep.subr.bf16.mxu0 0
      %2050 = vmatpush1.bf16.msra.mxu0 %v2036
      %2051 = vmatprep.subr.bf16.mxu0 0
      %2052 = vmatpush1.bf16.msra.mxu0 %v2035
      %2053 = vmatprep.subr.bf16.mxu0 0
      %2054 = vmatpush1.bf16.msra.mxu0 %v2034
      %2055 = vmatprep.subr.bf16.mxu0 0
      %2056 = vmatpush1.bf16.msra.mxu0 %v2033
      %2057 = vmatprep.subr.bf16.mxu0 0
      %2058 = vmatpush2.bf16.msra.mxu0 0
      %2059 = vmatprep.subr.bf16.mxu0 0
      %2060 = vmatpush2.bf16.msra.mxu0 0
      %2061 = vmatprep.subr.bf16.mxu0 0
      %2062 = vmatpush2.bf16.msra.mxu0 0
      %2063 = vmatprep.subr.bf16.mxu0 0
      %2064 = vmatpush2.bf16.msra.mxu0 0
      %2065 = vmatprep.subr.bf16.mxu0 0
      %2066 = vmatpush2.bf16.msra.mxu0 0
      %2067 = vmatprep.subr.bf16.mxu0 0
      %2068 = vmatpush2.bf16.msra.mxu0 0
      %2069 = vmatprep.subr.bf16.mxu0 0
      %2070 = vmatpush2.bf16.msra.mxu0 0
      %2071 = vmatprep.subr.bf16.mxu0 0
      %2072 = vmatpush2.bf16.msra.mxu0 0
      %2073 = vmatprep.mubr.bf16.mxu0 0
      %2074 = vmatmul.mubr.bf16.gmra.mxu0 %v2032
      %v2075 = vpop.f32.mrf.mxu0
      %v2076 = vadd.f32 0.0, %v2075
      %v2077 = vpop.f32.mrf.mxu0
      %v2078 = vpop.f32.mrf.mxu0
      %v2079 = vpop.f32.mrf.mxu0
      %2080 = vdwg.mxu0
      %v2081 = vadd.f32 %v2027, %v2076
      %v2082 = vrcp.pop %v2031
      %v2083 = vmul.f32 %v2081, %v2082
      %v2084 = vld [vmem:[%s10] sm:$0x1]
      %s2085 = sld [smem:[#allocation4 + %s36]]
      %v2086 = vpack.c.bf16 %v2083, %v2083
      %v2087 = vld [vmem:[%s9] sm:$0xf]
      %v2088 = vld [vmem:[%s9 + $0x4] sm:$0xf]
      %v2089 = vld [vmem:[%s9 + $0x8] sm:$0xf]
      %v2090 = vld [vmem:[%s9 + $0xc] sm:$0xf]
      %v2095 = vunpack.c.l.b16 %v2087
      %v2096 = vunpack.c.l.b16 %v2088
      %v2097 = vunpack.c.l.b16 %v2089
      %v2098 = vunpack.c.l.b16 %v2090
      %v2099 = vpack.c.b16 %v2096, %v2095
      %v2100 = vpack.c.b16 %v2098, %v2097
      %v2104 = vsel %vm508, %v2086, 0
      %2106 = vmatprep.subr.bf16.mxu0 0
      %2107 = vmatpush1.bf16.msra.mxu0 0
      %2108 = vmatprep.subr.bf16.mxu0 0
      %2109 = vmatpush1.bf16.msra.mxu0 0
      %2110 = vmatprep.subr.bf16.mxu0 0
      %2111 = vmatpush1.bf16.msra.mxu0 0
      %2112 = vmatprep.subr.bf16.mxu0 0
      %2113 = vmatpush1.bf16.msra.mxu0 0
      %2114 = vmatprep.subr.bf16.mxu0 0
      %2115 = vmatpush1.bf16.msra.mxu0 0
      %2116 = vmatprep.subr.bf16.mxu0 0
      %2117 = vmatpush1.bf16.msra.mxu0 0
      %2118 = vmatprep.subr.bf16.mxu0 0
      %2119 = vmatpush1.bf16.msra.mxu0 %v2100
      %2120 = vmatprep.subr.bf16.mxu0 0
      %2121 = vmatpush1.bf16.msra.mxu0 %v2099
      %2122 = vmatprep.subr.bf16.mxu0 0
      %2123 = vmatpush2.bf16.msra.mxu0 0
      %2124 = vmatprep.subr.bf16.mxu0 0
      %2125 = vmatpush2.bf16.msra.mxu0 0
      %2126 = vmatprep.subr.bf16.mxu0 0
      %2127 = vmatpush2.bf16.msra.mxu0 0
      %2128 = vmatprep.subr.bf16.mxu0 0
      %2129 = vmatpush2.bf16.msra.mxu0 0
      %2130 = vmatprep.subr.bf16.mxu0 0
      %2131 = vmatpush2.bf16.msra.mxu0 0
      %2132 = vmatprep.subr.bf16.mxu0 0
      %2133 = vmatpush2.bf16.msra.mxu0 0
      %2134 = vmatprep.subr.bf16.mxu0 0
      %2135 = vmatpush2.bf16.msra.mxu0 0
      %2136 = vmatprep.subr.bf16.mxu0 0
      %2137 = vmatpush2.bf16.msra.mxu0 0
      %2138 = vmatprep.mubr.bf16.mxu0 0
      %2139 = vmatmul.mubr.bf16.gmra.mxu0 %v2104
      %v2140 = vpop.f32.mrf.mxu0
      %v2141 = vadd.f32 0.0, %v2140
      %v2142 = vpop.f32.mrf.mxu0
      %v2143 = vpop.f32.mrf.mxu0
      %v2144 = vpop.f32.mrf.mxu0
      %2145 = vdwg.mxu0
      %v2146 = vld [vmem:[%s479] sm:$0xf]
      %v2147 = vld [vmem:[%s479 + $0x4] sm:$0xf]
      %v2148 = vld [vmem:[%s479 + $0x8] sm:$0xf]
      %v2149 = vld [vmem:[%s479 + $0xc] sm:$0xf]
      %v2150 = vld [vmem:[%s479 + $0x10] sm:$0xf]
      %v2151 = vld [vmem:[%s479 + $0x14] sm:$0xf]
      %v2152 = vld [vmem:[%s479 + $0x18] sm:$0xf]
      %v2153 = vld [vmem:[%s479 + $0x1c] sm:$0xf]
      %v2154 = vld [vmem:[%s479 + $0x20] sm:$0xf]
      %v2155 = vld [vmem:[%s479 + $0x24] sm:$0xf]
      %v2156 = vld [vmem:[%s479 + $0x28] sm:$0xf]
      %v2157 = vld [vmem:[%s479 + $0x2c] sm:$0xf]
      %v2158 = vld [vmem:[%s479 + $0x30] sm:$0xf]
      %v2159 = vld [vmem:[%s479 + $0x34] sm:$0xf]
      %v2160 = vld [vmem:[%s479 + $0x38] sm:$0xf]
      %v2161 = vld [vmem:[%s479 + $0x3c] sm:$0xf]
      %v2162 = vld [vmem:[%s8] sm:$0xf]
      %v2163 = vld [vmem:[%s8 + $0x4] sm:$0xf]
      %v2164 = vld [vmem:[%s8 + $0x8] sm:$0xf]
      %v2181 = vunpack.c.l.b16 %v2146
      %v2182 = vunpack.c.l.b16 %v2147
      %v2183 = vunpack.c.l.b16 %v2148
      %v2184 = vunpack.c.l.b16 %v2149
      %v2185 = vunpack.c.l.b16 %v2150
      %v2186 = vunpack.c.l.b16 %v2151
      %v2187 = vunpack.c.l.b16 %v2152
      %v2188 = vunpack.c.l.b16 %v2153
      %v2189 = vunpack.c.l.b16 %v2154
      %v2190 = vunpack.c.l.b16 %v2155
      %v2191 = vunpack.c.l.b16 %v2156
      %v2192 = vunpack.c.l.b16 %v2157
      %v2193 = vunpack.c.l.b16 %v2158
      %v2194 = vunpack.c.l.b16 %v2159
      %v2195 = vunpack.c.l.b16 %v2160
      %v2196 = vunpack.c.l.b16 %v2161
      %v2197 = vpack.c.b16 %v2182, %v2181
      %v2198 = vpack.c.b16 %v2184, %v2183
      %v2199 = vpack.c.b16 %v2186, %v2185
      %v2200 = vpack.c.b16 %v2188, %v2187
      %v2201 = vpack.c.b16 %v2190, %v2189
      %v2202 = vpack.c.b16 %v2192, %v2191
      %v2203 = vpack.c.b16 %v2194, %v2193
      %v2204 = vpack.c.b16 %v2196, %v2195
      %v2208 = vunpack.c.l.b16 %v2162
      %v2209 = vunpack.c.l.b16 %v2163
      %v2210 = vunpack.c.l.b16 %v2164
      %v2211 = vpack.c.b16 %v2209, %v2208
      %v2212 = vpack.c.b16 %v2210, %v2210
      %vm2214 = vcmask 195584
      %v2216 = vsel %vm2214, %v2197, 0
      %v2219 = vsel %vm2214, %v2198, 0
      %v2222 = vsel %vm2214, %v2199, 0
      %v2225 = vsel %vm2214, %v2200, 0
      %v2228 = vsel %vm2214, %v2201, 0
      %v2231 = vsel %vm2214, %v2202, 0
      %v2234 = vsel %vm2214, %v2203, 0
      %v2237 = vsel %vm2214, %v2204, 0
      %vm2239 = vcmask 1043456
      %v2241 = vsel %vm2239, %v2212, 0
      %2243 = vmatprep.subr.bf16.mxu0 0
      %2244 = vmatpush1.bf16.msra.mxu0 0
      %2245 = vmatprep.subr.bf16.mxu0 0
      %2246 = vmatpush1.bf16.msra.mxu0 0
      %2247 = vmatprep.subr.bf16.mxu0 0
      %2248 = vmatpush1.bf16.msra.mxu0 0
      %2249 = vmatprep.subr.bf16.mxu0 0
      %2250 = vmatpush1.bf16.msra.mxu0 0
      %2251 = vmatprep.subr.bf16.mxu0 0
      %2252 = vmatpush1.bf16.msra.mxu0 0
      %2253 = vmatprep.subr.bf16.mxu0 0
      %2254 = vmatpush1.bf16.msra.mxu0 0
      %2255 = vmatprep.subr.bf16.mxu0 0
      %2256 = vmatpush1.bf16.msra.mxu0 %v2241
      %2257 = vmatprep.subr.bf16.mxu0 0
      %2258 = vmatpush1.bf16.msra.mxu0 %v2211
      %2259 = vmatprep.subr.bf16.mxu0 0
      %2260 = vmatpush2.bf16.msra.mxu0 0
      %2261 = vmatprep.subr.bf16.mxu0 0
      %2262 = vmatpush2.bf16.msra.mxu0 0
      %2263 = vmatprep.subr.bf16.mxu0 0
      %2264 = vmatpush2.bf16.msra.mxu0 0
      %2265 = vmatprep.subr.bf16.mxu0 0
      %2266 = vmatpush2.bf16.msra.mxu0 0
      %2267 = vmatprep.subr.bf16.mxu0 0
      %2268 = vmatpush2.bf16.msra.mxu0 0
      %2269 = vmatprep.subr.bf16.mxu0 0
      %2270 = vmatpush2.bf16.msra.mxu0 0
      %2271 = vmatprep.subr.bf16.mxu0 0
      %2272 = vmatpush2.bf16.msra.mxu0 0
      %2273 = vmatprep.subr.bf16.mxu0 0
      %2274 = vmatpush2.bf16.msra.mxu0 0
      %2275 = vmatprep.mubr.bf16.mxu0 0
      %2276 = vmatmul.mubr.bf16.gmra.mxu0 %v2216
      %v2277 = vpop.f32.mrf.mxu0
      %v2278 = vadd.f32 0.0, %v2277
      %v2279 = vpop.f32.mrf.mxu0
      %v2280 = vpop.f32.mrf.mxu0
      %v2281 = vadd.f32 0.0, %v2280
      %v2282 = vpop.f32.mrf.mxu0
      %2283 = vmatprep.mubr.bf16.mxu0 0
      %2284 = vmatmul.mubr.bf16.gmra.mxu0 %v2219
      %v2285 = vpop.f32.mrf.mxu0
      %v2286 = vadd.f32 0.0, %v2285
      %v2287 = vpop.f32.mrf.mxu0
      %v2288 = vpop.f32.mrf.mxu0
      %v2289 = vadd.f32 0.0, %v2288
      %v2290 = vpop.f32.mrf.mxu0
      %2291 = vmatprep.mubr.bf16.mxu0 0
      %2292 = vmatmul.mubr.bf16.gmra.mxu0 %v2222
      %v2293 = vpop.f32.mrf.mxu0
      %v2294 = vadd.f32 0.0, %v2293
      %v2295 = vpop.f32.mrf.mxu0
      %v2296 = vpop.f32.mrf.mxu0
      %v2297 = vadd.f32 0.0, %v2296
      %v2298 = vpop.f32.mrf.mxu0
      %2299 = vmatprep.mubr.bf16.mxu0 0
      %2300 = vmatmul.mubr.bf16.gmra.mxu0 %v2225
      %v2301 = vpop.f32.mrf.mxu0
      %v2302 = vadd.f32 0.0, %v2301
      %v2303 = vpop.f32.mrf.mxu0
      %v2304 = vpop.f32.mrf.mxu0
      %v2305 = vadd.f32 0.0, %v2304
      %v2306 = vpop.f32.mrf.mxu0
      %2307 = vmatprep.mubr.bf16.mxu0 0
      %2308 = vmatmul.mubr.bf16.gmra.mxu0 %v2228
      %v2309 = vpop.f32.mrf.mxu0
      %v2310 = vadd.f32 0.0, %v2309
      %v2311 = vpop.f32.mrf.mxu0
      %v2312 = vpop.f32.mrf.mxu0
      %v2313 = vadd.f32 0.0, %v2312
      %v2314 = vpop.f32.mrf.mxu0
      %2315 = vmatprep.mubr.bf16.mxu0 0
      %2316 = vmatmul.mubr.bf16.gmra.mxu0 %v2231
      %v2317 = vpop.f32.mrf.mxu0
      %v2318 = vadd.f32 0.0, %v2317
      %v2319 = vpop.f32.mrf.mxu0
      %v2320 = vpop.f32.mrf.mxu0
      %v2321 = vadd.f32 0.0, %v2320
      %v2322 = vpop.f32.mrf.mxu0
      %2323 = vmatprep.mubr.bf16.mxu0 0
      %2324 = vmatmul.mubr.bf16.gmra.mxu0 %v2234
      %v2325 = vpop.f32.mrf.mxu0
      %v2326 = vadd.f32 0.0, %v2325
      %v2327 = vpop.f32.mrf.mxu0
      %v2328 = vpop.f32.mrf.mxu0
      %v2329 = vadd.f32 0.0, %v2328
      %v2330 = vpop.f32.mrf.mxu0
      %2331 = vmatprep.mubr.bf16.mxu0 0
      %2332 = vmatmul.mubr.bf16.gmra.mxu0 %v2237
      %v2333 = vpop.f32.mrf.mxu0
      %v2334 = vadd.f32 0.0, %v2333
      %v2335 = vpop.f32.mrf.mxu0
      %v2336 = vpop.f32.mrf.mxu0
      %v2337 = vadd.f32 0.0, %v2336
      %v2338 = vpop.f32.mrf.mxu0
      %2339 = vdwg.mxu0
      %v2341 = vcombine.high %v2141, %v2141
      %v2343 = vunpack.c.l.s4 1966171168
      %v2344 = vunpack.c.0.s8 %v2343
      %v2345 = vlaneseq
      %v2346 = vshrl.u32 %v2345, 7
      %v2347 = vsub.s32 %v2344, %v2346
      %v2348 = vrot.slane %v2141, %v2347
      %v2350 = vunpack.c.l.s4 1966171168
      %v2351 = vunpack.c.0.s8 %v2350
      %v2352 = vlaneseq
      %v2353 = vshrl.u32 %v2352, 7
      %v2354 = vsub.s32 %v2351, %v2353
      %v2355 = vrot.slane %v2341, %v2354
      %v2356 = vcombine.high %v2348, %v2348
      %v2357 = vcombine.high %v2355, %v2355
      %v2359 = vunpack.c.l.s4 1966171168
      %v2360 = vunpack.c.0.s8 %v2359
      %v2361 = vlaneseq
      %v2362 = vshrl.u32 %v2361, 7
      %v2363 = vsub.s32 %v2360, %v2362
      %v2364 = vrot.slane %v2348, %v2363
      %v2366 = vunpack.c.l.s4 1966171168
      %v2367 = vunpack.c.0.s8 %v2366
      %v2368 = vlaneseq
      %v2369 = vshrl.u32 %v2368, 7
      %v2370 = vsub.s32 %v2367, %v2369
      %v2371 = vrot.slane %v2355, %v2370
      %v2373 = vunpack.c.l.s4 1966171168
      %v2374 = vunpack.c.0.s8 %v2373
      %v2375 = vlaneseq
      %v2376 = vshrl.u32 %v2375, 7
      %v2377 = vsub.s32 %v2374, %v2376
      %v2378 = vrot.slane %v2356, %v2377
      %v2380 = vunpack.c.l.s4 1966171168
      %v2381 = vunpack.c.0.s8 %v2380
      %v2382 = vlaneseq
      %v2383 = vshrl.u32 %v2382, 7
      %v2384 = vsub.s32 %v2381, %v2383
      %v2385 = vrot.slane %v2357, %v2384
      %v2386 = vcombine.high %v2364, %v2364
      %v2387 = vcombine.high %v2378, %v2378
      %v2388 = vlaneseq
      %v2389 = vshrl.u32 %v2388, 7
      %v2390 = vsub.s32 0, %v2389
      %v2391 = vrot.slane %v2364, %v2390
      %v2392 = vlaneseq
      %v2393 = vshrl.u32 %v2392, 7
      %v2394 = vsub.s32 0, %v2393
      %v2395 = vrot.slane %v2378, %v2394
      %v2396 = vlaneseq
      %v2397 = vshrl.u32 %v2396, 7
      %v2398 = vsub.s32 0, %v2397
      %v2399 = vrot.slane %v2386, %v2398
      %v2400 = vlaneseq
      %v2401 = vshrl.u32 %v2400, 7
      %v2402 = vsub.s32 0, %v2401
      %v2403 = vrot.slane %v2387, %v2402
      %v2404 = vlaneseq
      %v2405 = vshrl.u32 %v2404, 7
      %v2406 = vsub.s32 0, %v2405
      %v2407 = vrot.slane %v2371, %v2406
      %v2408 = vlaneseq
      %v2409 = vshrl.u32 %v2408, 7
      %v2410 = vsub.s32 0, %v2409
      %v2411 = vrot.slane %v2385, %v2410
      %v2418 = vadd.f32 %v2278, %v2391
      %v2419 = vadd.f32 %v2281, %v2391
      %v2420 = vadd.f32 %v2286, %v2391
      %v2421 = vadd.f32 %v2289, %v2391
      %v2422 = vadd.f32 %v2294, %v2391
      %v2423 = vadd.f32 %v2297, %v2391
      %v2424 = vadd.f32 %v2302, %v2391
      %v2425 = vadd.f32 %v2305, %v2391
      %v2426 = vadd.f32 %v2310, %v2391
      %v2427 = vadd.f32 %v2313, %v2391
      %v2428 = vadd.f32 %v2318, %v2391
      %v2429 = vadd.f32 %v2321, %v2391
      %v2430 = vadd.f32 %v2326, %v2391
      %v2431 = vadd.f32 %v2329, %v2391
      %v2432 = vadd.f32 %v2334, %v2391
      %v2433 = vadd.f32 %v2337, %v2391
      %v2434 = vadd.f32 %v2278, %v2395
      %v2435 = vadd.f32 %v2281, %v2395
      %v2436 = vadd.f32 %v2286, %v2395
      %v2437 = vadd.f32 %v2289, %v2395
      %v2438 = vadd.f32 %v2294, %v2395
      %v2439 = vadd.f32 %v2297, %v2395
      %v2440 = vadd.f32 %v2302, %v2395
      %v2441 = vadd.f32 %v2305, %v2395
      %v2442 = vadd.f32 %v2310, %v2395
      %v2443 = vadd.f32 %v2313, %v2395
      %v2444 = vadd.f32 %v2318, %v2395
      %v2445 = vadd.f32 %v2321, %v2395
      %v2446 = vadd.f32 %v2326, %v2395
      %v2447 = vadd.f32 %v2329, %v2395
      %v2448 = vadd.f32 %v2334, %v2395
      %v2449 = vadd.f32 %v2337, %v2395
      %v2450 = vadd.f32 %v2278, %v2399
      %v2451 = vadd.f32 %v2281, %v2399
      %v2452 = vadd.f32 %v2286, %v2399
      %v2453 = vadd.f32 %v2289, %v2399
      %v2454 = vadd.f32 %v2294, %v2399
      %v2455 = vadd.f32 %v2297, %v2399
      %v2456 = vadd.f32 %v2302, %v2399
      %v2457 = vadd.f32 %v2305, %v2399
      %v2458 = vadd.f32 %v2310, %v2399
      %v2459 = vadd.f32 %v2313, %v2399
      %v2460 = vadd.f32 %v2318, %v2399
      %v2461 = vadd.f32 %v2321, %v2399
      %v2462 = vadd.f32 %v2326, %v2399
      %v2463 = vadd.f32 %v2329, %v2399
      %v2464 = vadd.f32 %v2334, %v2399
      %v2465 = vadd.f32 %v2337, %v2399
      %v2466 = vadd.f32 %v2278, %v2403
      %v2467 = vadd.f32 %v2281, %v2403
      %v2468 = vadd.f32 %v2286, %v2403
      %v2469 = vadd.f32 %v2289, %v2403
      %v2470 = vadd.f32 %v2294, %v2403
      %v2471 = vadd.f32 %v2297, %v2403
      %v2472 = vadd.f32 %v2302, %v2403
      %v2473 = vadd.f32 %v2305, %v2403
      %v2474 = vadd.f32 %v2310, %v2403
      %v2475 = vadd.f32 %v2313, %v2403
      %v2476 = vadd.f32 %v2318, %v2403
      %v2477 = vadd.f32 %v2321, %v2403
      %v2478 = vadd.f32 %v2326, %v2403
      %v2479 = vadd.f32 %v2329, %v2403
      %v2480 = vadd.f32 %v2334, %v2403
      %v2481 = vadd.f32 %v2337, %v2403
      %v2482 = vadd.f32 %v2278, %v2407
      %v2483 = vadd.f32 %v2281, %v2407
      %v2484 = vadd.f32 %v2286, %v2407
      %v2485 = vadd.f32 %v2289, %v2407
      %v2486 = vadd.f32 %v2294, %v2407
      %v2487 = vadd.f32 %v2297, %v2407
      %v2488 = vadd.f32 %v2302, %v2407
      %v2489 = vadd.f32 %v2305, %v2407
      %v2490 = vadd.f32 %v2310, %v2407
      %v2491 = vadd.f32 %v2313, %v2407
      %v2492 = vadd.f32 %v2318, %v2407
      %v2493 = vadd.f32 %v2321, %v2407
      %v2494 = vadd.f32 %v2326, %v2407
      %v2495 = vadd.f32 %v2329, %v2407
      %v2496 = vadd.f32 %v2334, %v2407
      %v2497 = vadd.f32 %v2337, %v2407
      %v2498 = vadd.f32 %v2278, %v2411
      %v2499 = vadd.f32 %v2281, %v2411
      %v2500 = vadd.f32 %v2286, %v2411
      %v2501 = vadd.f32 %v2289, %v2411
      %v2502 = vadd.f32 %v2294, %v2411
      %v2503 = vadd.f32 %v2297, %v2411
      %v2504 = vadd.f32 %v2302, %v2411
      %v2505 = vadd.f32 %v2305, %v2411
      %v2506 = vadd.f32 %v2310, %v2411
      %v2507 = vadd.f32 %v2313, %v2411
      %v2508 = vadd.f32 %v2318, %v2411
      %v2509 = vadd.f32 %v2321, %v2411
      %v2510 = vadd.f32 %v2326, %v2411
      %v2511 = vadd.f32 %v2329, %v2411
      %v2512 = vadd.f32 %v2334, %v2411
      %v2513 = vadd.f32 %v2337, %v2411
      %v2514 = vtanh.pop %v2418
      %v2515 = vtanh.pop %v2419
      %v2516 = vtanh.pop %v2420
      %v2517 = vtanh.pop %v2421
      %v2518 = vtanh.pop %v2422
      %v2519 = vtanh.pop %v2423
      %v2520 = vtanh.pop %v2424
      %v2521 = vtanh.pop %v2425
      %v2522 = vtanh.pop %v2426
      %v2523 = vtanh.pop %v2427
      %v2524 = vtanh.pop %v2428
      %v2525 = vtanh.pop %v2429
      %v2526 = vtanh.pop %v2430
      %v2527 = vtanh.pop %v2431
      %v2528 = vtanh.pop %v2432
      %v2529 = vtanh.pop %v2433
      %v2530 = vtanh.pop %v2434
      %v2531 = vtanh.pop %v2435
      %v2532 = vtanh.pop %v2436
      %v2533 = vtanh.pop %v2437
      %v2534 = vtanh.pop %v2438
      %v2535 = vtanh.pop %v2439
      %v2536 = vtanh.pop %v2440
      %v2537 = vtanh.pop %v2441
      %v2538 = vtanh.pop %v2442
      %v2539 = vtanh.pop %v2443
      %v2540 = vtanh.pop %v2444
      %v2541 = vtanh.pop %v2445
      %v2542 = vtanh.pop %v2446
      %v2543 = vtanh.pop %v2447
      %v2544 = vtanh.pop %v2448
      %v2545 = vtanh.pop %v2449
      %v2546 = vtanh.pop %v2450
      %v2547 = vtanh.pop %v2451
      %v2548 = vtanh.pop %v2452
      %v2549 = vtanh.pop %v2453
      %v2550 = vtanh.pop %v2454
      %v2551 = vtanh.pop %v2455
      %v2552 = vtanh.pop %v2456
      %v2553 = vtanh.pop %v2457
      %v2554 = vtanh.pop %v2458
      %v2555 = vtanh.pop %v2459
      %v2556 = vtanh.pop %v2460
      %v2557 = vtanh.pop %v2461
      %v2558 = vtanh.pop %v2462
      %v2559 = vtanh.pop %v2463
      %v2560 = vtanh.pop %v2464
      %v2561 = vtanh.pop %v2465
      %v2562 = vtanh.pop %v2466
      %v2563 = vtanh.pop %v2467
      %v2564 = vtanh.pop %v2468
      %v2565 = vtanh.pop %v2469
      %v2566 = vtanh.pop %v2470
      %v2567 = vtanh.pop %v2471
      %v2568 = vtanh.pop %v2472
      %v2569 = vtanh.pop %v2473
      %v2570 = vtanh.pop %v2474
      %v2571 = vtanh.pop %v2475
      %v2572 = vtanh.pop %v2476
      %v2573 = vtanh.pop %v2477
      %v2574 = vtanh.pop %v2478
      %v2575 = vtanh.pop %v2479
      %v2576 = vtanh.pop %v2480
      %v2577 = vtanh.pop %v2481
      %v2578 = vtanh.pop %v2482
      %v2579 = vtanh.pop %v2483
      %v2580 = vtanh.pop %v2484
      %v2581 = vtanh.pop %v2485
      %v2582 = vtanh.pop %v2486
      %v2583 = vtanh.pop %v2487
      %v2584 = vtanh.pop %v2488
      %v2585 = vtanh.pop %v2489
      %v2586 = vtanh.pop %v2490
      %v2587 = vtanh.pop %v2491
      %v2588 = vtanh.pop %v2492
      %v2589 = vtanh.pop %v2493
      %v2590 = vtanh.pop %v2494
      %v2591 = vtanh.pop %v2495
      %v2592 = vtanh.pop %v2496
      %v2593 = vtanh.pop %v2497
      %v2594 = vtanh.pop %v2498
      %v2595 = vtanh.pop %v2499
      %v2596 = vtanh.pop %v2500
      %v2597 = vtanh.pop %v2501
      %v2598 = vtanh.pop %v2502
      %v2599 = vtanh.pop %v2503
      %v2600 = vtanh.pop %v2504
      %v2601 = vtanh.pop %v2505
      %v2602 = vtanh.pop %v2506
      %v2603 = vtanh.pop %v2507
      %v2604 = vtanh.pop %v2508
      %v2605 = vtanh.pop %v2509
      %v2606 = vtanh.pop %v2510
      %v2607 = vtanh.pop %v2511
      %v2608 = vtanh.pop %v2512
      %v2609 = vtanh.pop %v2513
      %v2611 = vlaneseq
      %v2612 = vshrl.u32 %v2611, 7
      %v2613 = vsub.s32 0, %v2612
      %v2614 = vrot.slane %v2084, %v2613
      %v2616 = vmul.f32 %v2514, %v2614
      %v2617 = vmul.f32 %v2515, %v2614
      %v2618 = vmul.f32 %v2516, %v2614
      %v2619 = vmul.f32 %v2517, %v2614
      %v2620 = vmul.f32 %v2518, %v2614
      %v2621 = vmul.f32 %v2519, %v2614
      %v2622 = vmul.f32 %v2520, %v2614
      %v2623 = vmul.f32 %v2521, %v2614
      %v2624 = vmul.f32 %v2522, %v2614
      %v2625 = vmul.f32 %v2523, %v2614
      %v2626 = vmul.f32 %v2524, %v2614
      %v2627 = vmul.f32 %v2525, %v2614
      %v2628 = vmul.f32 %v2526, %v2614
      %v2629 = vmul.f32 %v2527, %v2614
      %v2630 = vmul.f32 %v2528, %v2614
      %v2631 = vmul.f32 %v2529, %v2614
      %v2632 = vmul.f32 %v2530, %v2614
      %v2633 = vmul.f32 %v2531, %v2614
      %v2634 = vmul.f32 %v2532, %v2614
      %v2635 = vmul.f32 %v2533, %v2614
      %v2636 = vmul.f32 %v2534, %v2614
      %v2637 = vmul.f32 %v2535, %v2614
      %v2638 = vmul.f32 %v2536, %v2614
      %v2639 = vmul.f32 %v2537, %v2614
      %v2640 = vmul.f32 %v2538, %v2614
      %v2641 = vmul.f32 %v2539, %v2614
      %v2642 = vmul.f32 %v2540, %v2614
      %v2643 = vmul.f32 %v2541, %v2614
      %v2644 = vmul.f32 %v2542, %v2614
      %v2645 = vmul.f32 %v2543, %v2614
      %v2646 = vmul.f32 %v2544, %v2614
      %v2647 = vmul.f32 %v2545, %v2614
      %v2648 = vmul.f32 %v2546, %v2614
      %v2649 = vmul.f32 %v2547, %v2614
      %v2650 = vmul.f32 %v2548, %v2614
      %v2651 = vmul.f32 %v2549, %v2614
      %v2652 = vmul.f32 %v2550, %v2614
      %v2653 = vmul.f32 %v2551, %v2614
      %v2654 = vmul.f32 %v2552, %v2614
      %v2655 = vmul.f32 %v2553, %v2614
      %v2656 = vmul.f32 %v2554, %v2614
      %v2657 = vmul.f32 %v2555, %v2614
      %v2658 = vmul.f32 %v2556, %v2614
      %v2659 = vmul.f32 %v2557, %v2614
      %v2660 = vmul.f32 %v2558, %v2614
      %v2661 = vmul.f32 %v2559, %v2614
      %v2662 = vmul.f32 %v2560, %v2614
      %v2663 = vmul.f32 %v2561, %v2614
      %v2664 = vmul.f32 %v2562, %v2614
      %v2665 = vmul.f32 %v2563, %v2614
      %v2666 = vmul.f32 %v2564, %v2614
      %v2667 = vmul.f32 %v2565, %v2614
      %v2668 = vmul.f32 %v2566, %v2614
      %v2669 = vmul.f32 %v2567, %v2614
      %v2670 = vmul.f32 %v2568, %v2614
      %v2671 = vmul.f32 %v2569, %v2614
      %v2672 = vmul.f32 %v2570, %v2614
      %v2673 = vmul.f32 %v2571, %v2614
      %v2674 = vmul.f32 %v2572, %v2614
      %v2675 = vmul.f32 %v2573, %v2614
      %v2676 = vmul.f32 %v2574, %v2614
      %v2677 = vmul.f32 %v2575, %v2614
      %v2678 = vmul.f32 %v2576, %v2614
      %v2679 = vmul.f32 %v2577, %v2614
      %v2680 = vmul.f32 %v2578, %v2614
      %v2681 = vmul.f32 %v2579, %v2614
      %v2682 = vmul.f32 %v2580, %v2614
      %v2683 = vmul.f32 %v2581, %v2614
      %v2684 = vmul.f32 %v2582, %v2614
      %v2685 = vmul.f32 %v2583, %v2614
      %v2686 = vmul.f32 %v2584, %v2614
      %v2687 = vmul.f32 %v2585, %v2614
      %v2688 = vmul.f32 %v2586, %v2614
      %v2689 = vmul.f32 %v2587, %v2614
      %v2690 = vmul.f32 %v2588, %v2614
      %v2691 = vmul.f32 %v2589, %v2614
      %v2692 = vmul.f32 %v2590, %v2614
      %v2693 = vmul.f32 %v2591, %v2614
      %v2694 = vmul.f32 %v2592, %v2614
      %v2695 = vmul.f32 %v2593, %v2614
      %v2696 = vmul.f32 %v2594, %v2614
      %v2697 = vmul.f32 %v2595, %v2614
      %v2698 = vmul.f32 %v2596, %v2614
      %v2699 = vmul.f32 %v2597, %v2614
      %v2700 = vmul.f32 %v2598, %v2614
      %v2701 = vmul.f32 %v2599, %v2614
      %v2702 = vmul.f32 %v2600, %v2614
      %v2703 = vmul.f32 %v2601, %v2614
      %v2704 = vmul.f32 %v2602, %v2614
      %v2705 = vmul.f32 %v2603, %v2614
      %v2706 = vmul.f32 %v2604, %v2614
      %v2707 = vmul.f32 %v2605, %v2614
      %v2708 = vmul.f32 %v2606, %v2614
      %v2709 = vmul.f32 %v2607, %v2614
      %v2710 = vmul.f32 %v2608, %v2614
      %v2711 = vmul.f32 %v2609, %v2614
      %v2712 = vsel %vm508, %v2616, 0.0
      %2713 = vadd.xlane.f32.xlu0 %v2712
      %v2714 = vpop.xlane.xlu0 %2713
      %v2715 = vsel %vm508, %v2617, 0.0
      %2716 = vadd.xlane.f32.xlu0 %v2715
      %v2717 = vpop.xlane.xlu0 %2716
      %v2718 = vsel %vm508, %v2618, 0.0
      %2719 = vadd.xlane.f32.xlu0 %v2718
      %v2720 = vpop.xlane.xlu0 %2719
      %v2721 = vsel %vm508, %v2619, 0.0
      %2722 = vadd.xlane.f32.xlu0 %v2721
      %v2723 = vpop.xlane.xlu0 %2722
      %v2724 = vsel %vm508, %v2620, 0.0
      %2725 = vadd.xlane.f32.xlu0 %v2724
      %v2726 = vpop.xlane.xlu0 %2725
      %v2727 = vsel %vm508, %v2621, 0.0
      %2728 = vadd.xlane.f32.xlu0 %v2727
      %v2729 = vpop.xlane.xlu0 %2728
      %v2730 = vsel %vm508, %v2622, 0.0
      %2731 = vadd.xlane.f32.xlu0 %v2730
      %v2732 = vpop.xlane.xlu0 %2731
      %v2733 = vsel %vm508, %v2623, 0.0
      %2734 = vadd.xlane.f32.xlu0 %v2733
      %v2735 = vpop.xlane.xlu0 %2734
      %v2736 = vsel %vm508, %v2624, 0.0
      %2737 = vadd.xlane.f32.xlu0 %v2736
      %v2738 = vpop.xlane.xlu0 %2737
      %v2739 = vsel %vm508, %v2625, 0.0
      %2740 = vadd.xlane.f32.xlu0 %v2739
      %v2741 = vpop.xlane.xlu0 %2740
      %v2742 = vsel %vm508, %v2626, 0.0
      %2743 = vadd.xlane.f32.xlu0 %v2742
      %v2744 = vpop.xlane.xlu0 %2743
      %v2745 = vsel %vm508, %v2627, 0.0
      %2746 = vadd.xlane.f32.xlu0 %v2745
      %v2747 = vpop.xlane.xlu0 %2746
      %v2748 = vsel %vm508, %v2628, 0.0
      %2749 = vadd.xlane.f32.xlu0 %v2748
      %v2750 = vpop.xlane.xlu0 %2749
      %v2751 = vsel %vm508, %v2629, 0.0
      %2752 = vadd.xlane.f32.xlu0 %v2751
      %v2753 = vpop.xlane.xlu0 %2752
      %v2754 = vsel %vm508, %v2630, 0.0
      %2755 = vadd.xlane.f32.xlu0 %v2754
      %v2756 = vpop.xlane.xlu0 %2755
      %v2757 = vsel %vm508, %v2631, 0.0
      %2758 = vadd.xlane.f32.xlu0 %v2757
      %v2759 = vpop.xlane.xlu0 %2758
      %v2760 = vsel %vm508, %v2632, 0.0
      %2761 = vadd.xlane.f32.xlu0 %v2760
      %v2762 = vpop.xlane.xlu0 %2761
      %v2763 = vsel %vm508, %v2633, 0.0
      %2764 = vadd.xlane.f32.xlu0 %v2763
      %v2765 = vpop.xlane.xlu0 %2764
      %v2766 = vsel %vm508, %v2634, 0.0
      %2767 = vadd.xlane.f32.xlu0 %v2766
      %v2768 = vpop.xlane.xlu0 %2767
      %v2769 = vsel %vm508, %v2635, 0.0
      %2770 = vadd.xlane.f32.xlu0 %v2769
      %v2771 = vpop.xlane.xlu0 %2770
      %v2772 = vsel %vm508, %v2636, 0.0
      %2773 = vadd.xlane.f32.xlu0 %v2772
      %v2774 = vpop.xlane.xlu0 %2773
      %v2775 = vsel %vm508, %v2637, 0.0
      %2776 = vadd.xlane.f32.xlu0 %v2775
      %v2777 = vpop.xlane.xlu0 %2776
      %v2778 = vsel %vm508, %v2638, 0.0
      %2779 = vadd.xlane.f32.xlu0 %v2778
      %v2780 = vpop.xlane.xlu0 %2779
      %v2781 = vsel %vm508, %v2639, 0.0
      %2782 = vadd.xlane.f32.xlu0 %v2781
      %v2783 = vpop.xlane.xlu0 %2782
      %v2784 = vsel %vm508, %v2640, 0.0
      %2785 = vadd.xlane.f32.xlu0 %v2784
      %v2786 = vpop.xlane.xlu0 %2785
      %v2787 = vsel %vm508, %v2641, 0.0
      %2788 = vadd.xlane.f32.xlu0 %v2787
      %v2789 = vpop.xlane.xlu0 %2788
      %v2790 = vsel %vm508, %v2642, 0.0
      %2791 = vadd.xlane.f32.xlu0 %v2790
      %v2792 = vpop.xlane.xlu0 %2791
      %v2793 = vsel %vm508, %v2643, 0.0
      %2794 = vadd.xlane.f32.xlu0 %v2793
      %v2795 = vpop.xlane.xlu0 %2794
      %v2796 = vsel %vm508, %v2644, 0.0
      %2797 = vadd.xlane.f32.xlu0 %v2796
      %v2798 = vpop.xlane.xlu0 %2797
      %v2799 = vsel %vm508, %v2645, 0.0
      %2800 = vadd.xlane.f32.xlu0 %v2799
      %v2801 = vpop.xlane.xlu0 %2800
      %v2802 = vsel %vm508, %v2646, 0.0
      %2803 = vadd.xlane.f32.xlu0 %v2802
      %v2804 = vpop.xlane.xlu0 %2803
      %v2805 = vsel %vm508, %v2647, 0.0
      %2806 = vadd.xlane.f32.xlu0 %v2805
      %v2807 = vpop.xlane.xlu0 %2806
      %v2808 = vsel %vm508, %v2648, 0.0
      %2809 = vadd.xlane.f32.xlu0 %v2808
      %v2810 = vpop.xlane.xlu0 %2809
      %v2811 = vsel %vm508, %v2649, 0.0
      %2812 = vadd.xlane.f32.xlu0 %v2811
      %v2813 = vpop.xlane.xlu0 %2812
      %v2814 = vsel %vm508, %v2650, 0.0
      %2815 = vadd.xlane.f32.xlu0 %v2814
      %v2816 = vpop.xlane.xlu0 %2815
      %v2817 = vsel %vm508, %v2651, 0.0
      %2818 = vadd.xlane.f32.xlu0 %v2817
      %v2819 = vpop.xlane.xlu0 %2818
      %v2820 = vsel %vm508, %v2652, 0.0
      %2821 = vadd.xlane.f32.xlu0 %v2820
      %v2822 = vpop.xlane.xlu0 %2821
      %v2823 = vsel %vm508, %v2653, 0.0
      %2824 = vadd.xlane.f32.xlu0 %v2823
      %v2825 = vpop.xlane.xlu0 %2824
      %v2826 = vsel %vm508, %v2654, 0.0
      %2827 = vadd.xlane.f32.xlu0 %v2826
      %v2828 = vpop.xlane.xlu0 %2827
      %v2829 = vsel %vm508, %v2655, 0.0
      %2830 = vadd.xlane.f32.xlu0 %v2829
      %v2831 = vpop.xlane.xlu0 %2830
      %v2832 = vsel %vm508, %v2656, 0.0
      %2833 = vadd.xlane.f32.xlu0 %v2832
      %v2834 = vpop.xlane.xlu0 %2833
      %v2835 = vsel %vm508, %v2657, 0.0
      %2836 = vadd.xlane.f32.xlu0 %v2835
      %v2837 = vpop.xlane.xlu0 %2836
      %v2838 = vsel %vm508, %v2658, 0.0
      %2839 = vadd.xlane.f32.xlu0 %v2838
      %v2840 = vpop.xlane.xlu0 %2839
      %v2841 = vsel %vm508, %v2659, 0.0
      %2842 = vadd.xlane.f32.xlu0 %v2841
      %v2843 = vpop.xlane.xlu0 %2842
      %v2844 = vsel %vm508, %v2660, 0.0
      %2845 = vadd.xlane.f32.xlu0 %v2844
      %v2846 = vpop.xlane.xlu0 %2845
      %v2847 = vsel %vm508, %v2661, 0.0
      %2848 = vadd.xlane.f32.xlu0 %v2847
      %v2849 = vpop.xlane.xlu0 %2848
      %v2850 = vsel %vm508, %v2662, 0.0
      %2851 = vadd.xlane.f32.xlu0 %v2850
      %v2852 = vpop.xlane.xlu0 %2851
      %v2853 = vsel %vm508, %v2663, 0.0
      %2854 = vadd.xlane.f32.xlu0 %v2853
      %v2855 = vpop.xlane.xlu0 %2854
      %v2856 = vsel %vm508, %v2664, 0.0
      %2857 = vadd.xlane.f32.xlu0 %v2856
      %v2858 = vpop.xlane.xlu0 %2857
      %v2859 = vsel %vm508, %v2665, 0.0
      %2860 = vadd.xlane.f32.xlu0 %v2859
      %v2861 = vpop.xlane.xlu0 %2860
      %v2862 = vsel %vm508, %v2666, 0.0
      %2863 = vadd.xlane.f32.xlu0 %v2862
      %v2864 = vpop.xlane.xlu0 %2863
      %v2865 = vsel %vm508, %v2667, 0.0
      %2866 = vadd.xlane.f32.xlu0 %v2865
      %v2867 = vpop.xlane.xlu0 %2866
      %v2868 = vsel %vm508, %v2668, 0.0
      %2869 = vadd.xlane.f32.xlu0 %v2868
      %v2870 = vpop.xlane.xlu0 %2869
      %v2871 = vsel %vm508, %v2669, 0.0
      %2872 = vadd.xlane.f32.xlu0 %v2871
      %v2873 = vpop.xlane.xlu0 %2872
      %v2874 = vsel %vm508, %v2670, 0.0
      %2875 = vadd.xlane.f32.xlu0 %v2874
      %v2876 = vpop.xlane.xlu0 %2875
      %v2877 = vsel %vm508, %v2671, 0.0
      %2878 = vadd.xlane.f32.xlu0 %v2877
      %v2879 = vpop.xlane.xlu0 %2878
      %v2880 = vsel %vm508, %v2672, 0.0
      %2881 = vadd.xlane.f32.xlu0 %v2880
      %v2882 = vpop.xlane.xlu0 %2881
      %v2883 = vsel %vm508, %v2673, 0.0
      %2884 = vadd.xlane.f32.xlu0 %v2883
      %v2885 = vpop.xlane.xlu0 %2884
      %v2886 = vsel %vm508, %v2674, 0.0
      %2887 = vadd.xlane.f32.xlu0 %v2886
      %v2888 = vpop.xlane.xlu0 %2887
      %v2889 = vsel %vm508, %v2675, 0.0
      %2890 = vadd.xlane.f32.xlu0 %v2889
      %v2891 = vpop.xlane.xlu0 %2890
      %v2892 = vsel %vm508, %v2676, 0.0
      %2893 = vadd.xlane.f32.xlu0 %v2892
      %v2894 = vpop.xlane.xlu0 %2893
      %v2895 = vsel %vm508, %v2677, 0.0
      %2896 = vadd.xlane.f32.xlu0 %v2895
      %v2897 = vpop.xlane.xlu0 %2896
      %v2898 = vsel %vm508, %v2678, 0.0
      %2899 = vadd.xlane.f32.xlu0 %v2898
      %v2900 = vpop.xlane.xlu0 %2899
      %v2901 = vsel %vm508, %v2679, 0.0
      %2902 = vadd.xlane.f32.xlu0 %v2901
      %v2903 = vpop.xlane.xlu0 %2902
      %v2904 = vsel %vm508, %v2680, 0.0
      %2905 = vadd.xlane.f32.xlu0 %v2904
      %v2906 = vpop.xlane.xlu0 %2905
      %v2907 = vsel %vm508, %v2681, 0.0
      %2908 = vadd.xlane.f32.xlu0 %v2907
      %v2909 = vpop.xlane.xlu0 %2908
      %v2910 = vsel %vm508, %v2682, 0.0
      %2911 = vadd.xlane.f32.xlu0 %v2910
      %v2912 = vpop.xlane.xlu0 %2911
      %v2913 = vsel %vm508, %v2683, 0.0
      %2914 = vadd.xlane.f32.xlu0 %v2913
      %v2915 = vpop.xlane.xlu0 %2914
      %v2916 = vsel %vm508, %v2684, 0.0
      %2917 = vadd.xlane.f32.xlu0 %v2916
      %v2918 = vpop.xlane.xlu0 %2917
      %v2919 = vsel %vm508, %v2685, 0.0
      %2920 = vadd.xlane.f32.xlu0 %v2919
      %v2921 = vpop.xlane.xlu0 %2920
      %v2922 = vsel %vm508, %v2686, 0.0
      %2923 = vadd.xlane.f32.xlu0 %v2922
      %v2924 = vpop.xlane.xlu0 %2923
      %v2925 = vsel %vm508, %v2687, 0.0
      %2926 = vadd.xlane.f32.xlu0 %v2925
      %v2927 = vpop.xlane.xlu0 %2926
      %v2928 = vsel %vm508, %v2688, 0.0
      %2929 = vadd.xlane.f32.xlu0 %v2928
      %v2930 = vpop.xlane.xlu0 %2929
      %v2931 = vsel %vm508, %v2689, 0.0
      %2932 = vadd.xlane.f32.xlu0 %v2931
      %v2933 = vpop.xlane.xlu0 %2932
      %v2934 = vsel %vm508, %v2690, 0.0
      %2935 = vadd.xlane.f32.xlu0 %v2934
      %v2936 = vpop.xlane.xlu0 %2935
      %v2937 = vsel %vm508, %v2691, 0.0
      %2938 = vadd.xlane.f32.xlu0 %v2937
      %v2939 = vpop.xlane.xlu0 %2938
      %v2940 = vsel %vm508, %v2692, 0.0
      %2941 = vadd.xlane.f32.xlu0 %v2940
      %v2942 = vpop.xlane.xlu0 %2941
      %v2943 = vsel %vm508, %v2693, 0.0
      %2944 = vadd.xlane.f32.xlu0 %v2943
      %v2945 = vpop.xlane.xlu0 %2944
      %v2946 = vsel %vm508, %v2694, 0.0
      %2947 = vadd.xlane.f32.xlu0 %v2946
      %v2948 = vpop.xlane.xlu0 %2947
      %v2949 = vsel %vm508, %v2695, 0.0
      %2950 = vadd.xlane.f32.xlu0 %v2949
      %v2951 = vpop.xlane.xlu0 %2950
      %v2952 = vsel %vm508, %v2696, 0.0
      %2953 = vadd.xlane.f32.xlu0 %v2952
      %v2954 = vpop.xlane.xlu0 %2953
      %v2955 = vsel %vm508, %v2697, 0.0
      %2956 = vadd.xlane.f32.xlu0 %v2955
      %v2957 = vpop.xlane.xlu0 %2956
      %v2958 = vsel %vm508, %v2698, 0.0
      %2959 = vadd.xlane.f32.xlu0 %v2958
      %v2960 = vpop.xlane.xlu0 %2959
      %v2961 = vsel %vm508, %v2699, 0.0
      %2962 = vadd.xlane.f32.xlu0 %v2961
      %v2963 = vpop.xlane.xlu0 %2962
      %v2964 = vsel %vm508, %v2700, 0.0
      %2965 = vadd.xlane.f32.xlu0 %v2964
      %v2966 = vpop.xlane.xlu0 %2965
      %v2967 = vsel %vm508, %v2701, 0.0
      %2968 = vadd.xlane.f32.xlu0 %v2967
      %v2969 = vpop.xlane.xlu0 %2968
      %v2970 = vsel %vm508, %v2702, 0.0
      %2971 = vadd.xlane.f32.xlu0 %v2970
      %v2972 = vpop.xlane.xlu0 %2971
      %v2973 = vsel %vm508, %v2703, 0.0
      %2974 = vadd.xlane.f32.xlu0 %v2973
      %v2975 = vpop.xlane.xlu0 %2974
      %v2976 = vsel %vm508, %v2704, 0.0
      %2977 = vadd.xlane.f32.xlu0 %v2976
      %v2978 = vpop.xlane.xlu0 %2977
      %v2979 = vsel %vm508, %v2705, 0.0
      %2980 = vadd.xlane.f32.xlu0 %v2979
      %v2981 = vpop.xlane.xlu0 %2980
      %v2982 = vsel %vm508, %v2706, 0.0
      %2983 = vadd.xlane.f32.xlu0 %v2982
      %v2984 = vpop.xlane.xlu0 %2983
      %v2985 = vsel %vm508, %v2707, 0.0
      %2986 = vadd.xlane.f32.xlu0 %v2985
      %v2987 = vpop.xlane.xlu0 %2986
      %v2988 = vsel %vm508, %v2708, 0.0
      %2989 = vadd.xlane.f32.xlu0 %v2988
      %v2990 = vpop.xlane.xlu0 %2989
      %v2991 = vsel %vm508, %v2709, 0.0
      %2992 = vadd.xlane.f32.xlu0 %v2991
      %v2993 = vpop.xlane.xlu0 %2992
      %v2994 = vsel %vm508, %v2710, 0.0
      %2995 = vadd.xlane.f32.xlu0 %v2994
      %v2996 = vpop.xlane.xlu0 %2995
      %v2997 = vsel %vm508, %v2711, 0.0
      %2998 = vadd.xlane.f32.xlu0 %v2997
      %v2999 = vpop.xlane.xlu0 %2998
      %v3000 = vstv %s2085
      %vm3001 = vcmp.lt.s32.totalorder %v1399, %v3000
      %v3002 = vsel %vm3001, 1, 0
      %vm3003 = vcmp.eq.s32.totalorder %v3002, 1
      %v3100 = vlaneseq
      %v3101 = vshrl.u32 %v3100, 7
      %v3102 = vsub.s32 %v1399, %v3101
      %v3103 = vrot.slane %v2714, %v3102
      %v3104 = vlaneseq
      %v3105 = vshrl.u32 %v3104, 7
      %v3106 = vsub.s32 %v1504, %v3105
      %v3107 = vrot.slane %v2717, %v3106
      %v3108 = vsel %vm1509, %v3107, %v3103
      %v3109 = vlaneseq
      %v3110 = vshrl.u32 %v3109, 7
      %v3111 = vsub.s32 %v1511, %v3110
      %v3112 = vrot.slane %v2720, %v3111
      %v3113 = vsel %vm1516, %v3112, %v3108
      %v3114 = vlaneseq
      %v3115 = vshrl.u32 %v3114, 7
      %v3116 = vsub.s32 %v1518, %v3115
      %v3117 = vrot.slane %v2723, %v3116
      %v3118 = vsel %vm1523, %v3117, %v3113
      %v3119 = vlaneseq
      %v3120 = vshrl.u32 %v3119, 7
      %v3121 = vsub.s32 %v1525, %v3120
      %v3122 = vrot.slane %v2726, %v3121
      %v3123 = vsel %vm1530, %v3122, %v3118
      %v3124 = vlaneseq
      %v3125 = vshrl.u32 %v3124, 7
      %v3126 = vsub.s32 %v1532, %v3125
      %v3127 = vrot.slane %v2729, %v3126
      %v3128 = vsel %vm1537, %v3127, %v3123
      %v3129 = vlaneseq
      %v3130 = vshrl.u32 %v3129, 7
      %v3131 = vsub.s32 %v1539, %v3130
      %v3132 = vrot.slane %v2732, %v3131
      %v3133 = vsel %vm1544, %v3132, %v3128
      %v3134 = vlaneseq
      %v3135 = vshrl.u32 %v3134, 7
      %v3136 = vsub.s32 %v1546, %v3135
      %v3137 = vrot.slane %v2735, %v3136
      %v3138 = vsel %vm1551, %v3137, %v3133
      %v3139 = vlaneseq
      %v3140 = vshrl.u32 %v3139, 7
      %v3141 = vsub.s32 %v1553, %v3140
      %v3142 = vrot.slane %v2738, %v3141
      %v3143 = vsel %vm1558, %v3142, %v3138
      %v3144 = vlaneseq
      %v3145 = vshrl.u32 %v3144, 7
      %v3146 = vsub.s32 %v1560, %v3145
      %v3147 = vrot.slane %v2741, %v3146
      %v3148 = vsel %vm1565, %v3147, %v3143
      %v3149 = vlaneseq
      %v3150 = vshrl.u32 %v3149, 7
      %v3151 = vsub.s32 %v1567, %v3150
      %v3152 = vrot.slane %v2744, %v3151
      %v3153 = vsel %vm1572, %v3152, %v3148
      %v3154 = vlaneseq
      %v3155 = vshrl.u32 %v3154, 7
      %v3156 = vsub.s32 %v1574, %v3155
      %v3157 = vrot.slane %v2747, %v3156
      %v3158 = vsel %vm1579, %v3157, %v3153
      %v3159 = vlaneseq
      %v3160 = vshrl.u32 %v3159, 7
      %v3161 = vsub.s32 %v1581, %v3160
      %v3162 = vrot.slane %v2750, %v3161
      %v3163 = vsel %vm1586, %v3162, %v3158
      %v3164 = vlaneseq
      %v3165 = vshrl.u32 %v3164, 7
      %v3166 = vsub.s32 %v1588, %v3165
      %v3167 = vrot.slane %v2753, %v3166
      %v3168 = vsel %vm1593, %v3167, %v3163
      %v3169 = vlaneseq
      %v3170 = vshrl.u32 %v3169, 7
      %v3171 = vsub.s32 %v1595, %v3170
      %v3172 = vrot.slane %v2756, %v3171
      %v3173 = vsel %vm1600, %v3172, %v3168
      %v3174 = vlaneseq
      %v3175 = vshrl.u32 %v3174, 7
      %v3176 = vsub.s32 %v1602, %v3175
      %v3177 = vrot.slane %v2759, %v3176
      %v3178 = vsel %vm1607, %v3177, %v3173
      %v3179 = vlaneseq
      %v3180 = vshrl.u32 %v3179, 7
      %v3181 = vsub.s32 %v1399, %v3180
      %v3182 = vrot.slane %v2762, %v3181
      %v3183 = vlaneseq
      %v3184 = vshrl.u32 %v3183, 7
      %v3185 = vsub.s32 %v1504, %v3184
      %v3186 = vrot.slane %v2765, %v3185
      %v3187 = vsel %vm1509, %v3186, %v3182
      %v3188 = vlaneseq
      %v3189 = vshrl.u32 %v3188, 7
      %v3190 = vsub.s32 %v1511, %v3189
      %v3191 = vrot.slane %v2768, %v3190
      %v3192 = vsel %vm1516, %v3191, %v3187
      %v3193 = vlaneseq
      %v3194 = vshrl.u32 %v3193, 7
      %v3195 = vsub.s32 %v1518, %v3194
      %v3196 = vrot.slane %v2771, %v3195
      %v3197 = vsel %vm1523, %v3196, %v3192
      %v3198 = vlaneseq
      %v3199 = vshrl.u32 %v3198, 7
      %v3200 = vsub.s32 %v1525, %v3199
      %v3201 = vrot.slane %v2774, %v3200
      %v3202 = vsel %vm1530, %v3201, %v3197
      %v3203 = vlaneseq
      %v3204 = vshrl.u32 %v3203, 7
      %v3205 = vsub.s32 %v1532, %v3204
      %v3206 = vrot.slane %v2777, %v3205
      %v3207 = vsel %vm1537, %v3206, %v3202
      %v3208 = vlaneseq
      %v3209 = vshrl.u32 %v3208, 7
      %v3210 = vsub.s32 %v1539, %v3209
      %v3211 = vrot.slane %v2780, %v3210
      %v3212 = vsel %vm1544, %v3211, %v3207
      %v3213 = vlaneseq
      %v3214 = vshrl.u32 %v3213, 7
      %v3215 = vsub.s32 %v1546, %v3214
      %v3216 = vrot.slane %v2783, %v3215
      %v3217 = vsel %vm1551, %v3216, %v3212
      %v3218 = vlaneseq
      %v3219 = vshrl.u32 %v3218, 7
      %v3220 = vsub.s32 %v1553, %v3219
      %v3221 = vrot.slane %v2786, %v3220
      %v3222 = vsel %vm1558, %v3221, %v3217
      %v3223 = vlaneseq
      %v3224 = vshrl.u32 %v3223, 7
      %v3225 = vsub.s32 %v1560, %v3224
      %v3226 = vrot.slane %v2789, %v3225
      %v3227 = vsel %vm1565, %v3226, %v3222
      %v3228 = vlaneseq
      %v3229 = vshrl.u32 %v3228, 7
      %v3230 = vsub.s32 %v1567, %v3229
      %v3231 = vrot.slane %v2792, %v3230
      %v3232 = vsel %vm1572, %v3231, %v3227
      %v3233 = vlaneseq
      %v3234 = vshrl.u32 %v3233, 7
      %v3235 = vsub.s32 %v1574, %v3234
      %v3236 = vrot.slane %v2795, %v3235
      %v3237 = vsel %vm1579, %v3236, %v3232
      %v3238 = vlaneseq
      %v3239 = vshrl.u32 %v3238, 7
      %v3240 = vsub.s32 %v1581, %v3239
      %v3241 = vrot.slane %v2798, %v3240
      %v3242 = vsel %vm1586, %v3241, %v3237
      %v3243 = vlaneseq
      %v3244 = vshrl.u32 %v3243, 7
      %v3245 = vsub.s32 %v1588, %v3244
      %v3246 = vrot.slane %v2801, %v3245
      %v3247 = vsel %vm1593, %v3246, %v3242
      %v3248 = vlaneseq
      %v3249 = vshrl.u32 %v3248, 7
      %v3250 = vsub.s32 %v1595, %v3249
      %v3251 = vrot.slane %v2804, %v3250
      %v3252 = vsel %vm1600, %v3251, %v3247
      %v3253 = vlaneseq
      %v3254 = vshrl.u32 %v3253, 7
      %v3255 = vsub.s32 %v1602, %v3254
      %v3256 = vrot.slane %v2807, %v3255
      %v3257 = vsel %vm1607, %v3256, %v3252
      %v3258 = vlaneseq
      %v3259 = vshrl.u32 %v3258, 7
      %v3260 = vsub.s32 %v1399, %v3259
      %v3261 = vrot.slane %v2810, %v3260
      %v3262 = vlaneseq
      %v3263 = vshrl.u32 %v3262, 7
      %v3264 = vsub.s32 %v1504, %v3263
      %v3265 = vrot.slane %v2813, %v3264
      %v3266 = vsel %vm1509, %v3265, %v3261
      %v3267 = vlaneseq
      %v3268 = vshrl.u32 %v3267, 7
      %v3269 = vsub.s32 %v1511, %v3268
      %v3270 = vrot.slane %v2816, %v3269
      %v3271 = vsel %vm1516, %v3270, %v3266
      %v3272 = vlaneseq
      %v3273 = vshrl.u32 %v3272, 7
      %v3274 = vsub.s32 %v1518, %v3273
      %v3275 = vrot.slane %v2819, %v3274
      %v3276 = vsel %vm1523, %v3275, %v3271
      %v3277 = vlaneseq
      %v3278 = vshrl.u32 %v3277, 7
      %v3279 = vsub.s32 %v1525, %v3278
      %v3280 = vrot.slane %v2822, %v3279
      %v3281 = vsel %vm1530, %v3280, %v3276
      %v3282 = vlaneseq
      %v3283 = vshrl.u32 %v3282, 7
      %v3284 = vsub.s32 %v1532, %v3283
      %v3285 = vrot.slane %v2825, %v3284
      %v3286 = vsel %vm1537, %v3285, %v3281
      %v3287 = vlaneseq
      %v3288 = vshrl.u32 %v3287, 7
      %v3289 = vsub.s32 %v1539, %v3288
      %v3290 = vrot.slane %v2828, %v3289
      %v3291 = vsel %vm1544, %v3290, %v3286
      %v3292 = vlaneseq
      %v3293 = vshrl.u32 %v3292, 7
      %v3294 = vsub.s32 %v1546, %v3293
      %v3295 = vrot.slane %v2831, %v3294
      %v3296 = vsel %vm1551, %v3295, %v3291
      %v3297 = vlaneseq
      %v3298 = vshrl.u32 %v3297, 7
      %v3299 = vsub.s32 %v1553, %v3298
      %v3300 = vrot.slane %v2834, %v3299
      %v3301 = vsel %vm1558, %v3300, %v3296
      %v3302 = vlaneseq
      %v3303 = vshrl.u32 %v3302, 7
      %v3304 = vsub.s32 %v1560, %v3303
      %v3305 = vrot.slane %v2837, %v3304
      %v3306 = vsel %vm1565, %v3305, %v3301
      %v3307 = vlaneseq
      %v3308 = vshrl.u32 %v3307, 7
      %v3309 = vsub.s32 %v1567, %v3308
      %v3310 = vrot.slane %v2840, %v3309
      %v3311 = vsel %vm1572, %v3310, %v3306
      %v3312 = vlaneseq
      %v3313 = vshrl.u32 %v3312, 7
      %v3314 = vsub.s32 %v1574, %v3313
      %v3315 = vrot.slane %v2843, %v3314
      %v3316 = vsel %vm1579, %v3315, %v3311
      %v3317 = vlaneseq
      %v3318 = vshrl.u32 %v3317, 7
      %v3319 = vsub.s32 %v1581, %v3318
      %v3320 = vrot.slane %v2846, %v3319
      %v3321 = vsel %vm1586, %v3320, %v3316
      %v3322 = vlaneseq
      %v3323 = vshrl.u32 %v3322, 7
      %v3324 = vsub.s32 %v1588, %v3323
      %v3325 = vrot.slane %v2849, %v3324
      %v3326 = vsel %vm1593, %v3325, %v3321
      %v3327 = vlaneseq
      %v3328 = vshrl.u32 %v3327, 7
      %v3329 = vsub.s32 %v1595, %v3328
      %v3330 = vrot.slane %v2852, %v3329
      %v3331 = vsel %vm1600, %v3330, %v3326
      %v3332 = vlaneseq
      %v3333 = vshrl.u32 %v3332, 7
      %v3334 = vsub.s32 %v1602, %v3333
      %v3335 = vrot.slane %v2855, %v3334
      %v3336 = vsel %vm1607, %v3335, %v3331
      %v3337 = vlaneseq
      %v3338 = vshrl.u32 %v3337, 7
      %v3339 = vsub.s32 %v1399, %v3338
      %v3340 = vrot.slane %v2858, %v3339
      %v3341 = vlaneseq
      %v3342 = vshrl.u32 %v3341, 7
      %v3343 = vsub.s32 %v1504, %v3342
      %v3344 = vrot.slane %v2861, %v3343
      %v3345 = vsel %vm1509, %v3344, %v3340
      %v3346 = vlaneseq
      %v3347 = vshrl.u32 %v3346, 7
      %v3348 = vsub.s32 %v1511, %v3347
      %v3349 = vrot.slane %v2864, %v3348
      %v3350 = vsel %vm1516, %v3349, %v3345
      %v3351 = vlaneseq
      %v3352 = vshrl.u32 %v3351, 7
      %v3353 = vsub.s32 %v1518, %v3352
      %v3354 = vrot.slane %v2867, %v3353
      %v3355 = vsel %vm1523, %v3354, %v3350
      %v3356 = vlaneseq
      %v3357 = vshrl.u32 %v3356, 7
      %v3358 = vsub.s32 %v1525, %v3357
      %v3359 = vrot.slane %v2870, %v3358
      %v3360 = vsel %vm1530, %v3359, %v3355
      %v3361 = vlaneseq
      %v3362 = vshrl.u32 %v3361, 7
      %v3363 = vsub.s32 %v1532, %v3362
      %v3364 = vrot.slane %v2873, %v3363
      %v3365 = vsel %vm1537, %v3364, %v3360
      %v3366 = vlaneseq
      %v3367 = vshrl.u32 %v3366, 7
      %v3368 = vsub.s32 %v1539, %v3367
      %v3369 = vrot.slane %v2876, %v3368
      %v3370 = vsel %vm1544, %v3369, %v3365
      %v3371 = vlaneseq
      %v3372 = vshrl.u32 %v3371, 7
      %v3373 = vsub.s32 %v1546, %v3372
      %v3374 = vrot.slane %v2879, %v3373
      %v3375 = vsel %vm1551, %v3374, %v3370
      %v3376 = vlaneseq
      %v3377 = vshrl.u32 %v3376, 7
      %v3378 = vsub.s32 %v1553, %v3377
      %v3379 = vrot.slane %v2882, %v3378
      %v3380 = vsel %vm1558, %v3379, %v3375
      %v3381 = vlaneseq
      %v3382 = vshrl.u32 %v3381, 7
      %v3383 = vsub.s32 %v1560, %v3382
      %v3384 = vrot.slane %v2885, %v3383
      %v3385 = vsel %vm1565, %v3384, %v3380
      %v3386 = vlaneseq
      %v3387 = vshrl.u32 %v3386, 7
      %v3388 = vsub.s32 %v1567, %v3387
      %v3389 = vrot.slane %v2888, %v3388
      %v3390 = vsel %vm1572, %v3389, %v3385
      %v3391 = vlaneseq
      %v3392 = vshrl.u32 %v3391, 7
      %v3393 = vsub.s32 %v1574, %v3392
      %v3394 = vrot.slane %v2891, %v3393
      %v3395 = vsel %vm1579, %v3394, %v3390
      %v3396 = vlaneseq
      %v3397 = vshrl.u32 %v3396, 7
      %v3398 = vsub.s32 %v1581, %v3397
      %v3399 = vrot.slane %v2894, %v3398
      %v3400 = vsel %vm1586, %v3399, %v3395
      %v3401 = vlaneseq
      %v3402 = vshrl.u32 %v3401, 7
      %v3403 = vsub.s32 %v1588, %v3402
      %v3404 = vrot.slane %v2897, %v3403
      %v3405 = vsel %vm1593, %v3404, %v3400
      %v3406 = vlaneseq
      %v3407 = vshrl.u32 %v3406, 7
      %v3408 = vsub.s32 %v1595, %v3407
      %v3409 = vrot.slane %v2900, %v3408
      %v3410 = vsel %vm1600, %v3409, %v3405
      %v3411 = vlaneseq
      %v3412 = vshrl.u32 %v3411, 7
      %v3413 = vsub.s32 %v1602, %v3412
      %v3414 = vrot.slane %v2903, %v3413
      %v3415 = vsel %vm1607, %v3414, %v3410
      %v3416 = vlaneseq
      %v3417 = vshrl.u32 %v3416, 7
      %v3418 = vsub.s32 %v1399, %v3417
      %v3419 = vrot.slane %v2906, %v3418
      %v3420 = vlaneseq
      %v3421 = vshrl.u32 %v3420, 7
      %v3422 = vsub.s32 %v1504, %v3421
      %v3423 = vrot.slane %v2909, %v3422
      %v3424 = vsel %vm1509, %v3423, %v3419
      %v3425 = vlaneseq
      %v3426 = vshrl.u32 %v3425, 7
      %v3427 = vsub.s32 %v1511, %v3426
      %v3428 = vrot.slane %v2912, %v3427
      %v3429 = vsel %vm1516, %v3428, %v3424
      %v3430 = vlaneseq
      %v3431 = vshrl.u32 %v3430, 7
      %v3432 = vsub.s32 %v1518, %v3431
      %v3433 = vrot.slane %v2915, %v3432
      %v3434 = vsel %vm1523, %v3433, %v3429
      %v3435 = vlaneseq
      %v3436 = vshrl.u32 %v3435, 7
      %v3437 = vsub.s32 %v1525, %v3436
      %v3438 = vrot.slane %v2918, %v3437
      %v3439 = vsel %vm1530, %v3438, %v3434
      %v3440 = vlaneseq
      %v3441 = vshrl.u32 %v3440, 7
      %v3442 = vsub.s32 %v1532, %v3441
      %v3443 = vrot.slane %v2921, %v3442
      %v3444 = vsel %vm1537, %v3443, %v3439
      %v3445 = vlaneseq
      %v3446 = vshrl.u32 %v3445, 7
      %v3447 = vsub.s32 %v1539, %v3446
      %v3448 = vrot.slane %v2924, %v3447
      %v3449 = vsel %vm1544, %v3448, %v3444
      %v3450 = vlaneseq
      %v3451 = vshrl.u32 %v3450, 7
      %v3452 = vsub.s32 %v1546, %v3451
      %v3453 = vrot.slane %v2927, %v3452
      %v3454 = vsel %vm1551, %v3453, %v3449
      %v3455 = vlaneseq
      %v3456 = vshrl.u32 %v3455, 7
      %v3457 = vsub.s32 %v1553, %v3456
      %v3458 = vrot.slane %v2930, %v3457
      %v3459 = vsel %vm1558, %v3458, %v3454
      %v3460 = vlaneseq
      %v3461 = vshrl.u32 %v3460, 7
      %v3462 = vsub.s32 %v1560, %v3461
      %v3463 = vrot.slane %v2933, %v3462
      %v3464 = vsel %vm1565, %v3463, %v3459
      %v3465 = vlaneseq
      %v3466 = vshrl.u32 %v3465, 7
      %v3467 = vsub.s32 %v1567, %v3466
      %v3468 = vrot.slane %v2936, %v3467
      %v3469 = vsel %vm1572, %v3468, %v3464
      %v3470 = vlaneseq
      %v3471 = vshrl.u32 %v3470, 7
      %v3472 = vsub.s32 %v1574, %v3471
      %v3473 = vrot.slane %v2939, %v3472
      %v3474 = vsel %vm1579, %v3473, %v3469
      %v3475 = vlaneseq
      %v3476 = vshrl.u32 %v3475, 7
      %v3477 = vsub.s32 %v1581, %v3476
      %v3478 = vrot.slane %v2942, %v3477
      %v3479 = vsel %vm1586, %v3478, %v3474
      %v3480 = vlaneseq
      %v3481 = vshrl.u32 %v3480, 7
      %v3482 = vsub.s32 %v1588, %v3481
      %v3483 = vrot.slane %v2945, %v3482
      %v3484 = vsel %vm1593, %v3483, %v3479
      %v3485 = vlaneseq
      %v3486 = vshrl.u32 %v3485, 7
      %v3487 = vsub.s32 %v1595, %v3486
      %v3488 = vrot.slane %v2948, %v3487
      %v3489 = vsel %vm1600, %v3488, %v3484
      %v3490 = vlaneseq
      %v3491 = vshrl.u32 %v3490, 7
      %v3492 = vsub.s32 %v1602, %v3491
      %v3493 = vrot.slane %v2951, %v3492
      %v3494 = vsel %vm1607, %v3493, %v3489
      %v3495 = vlaneseq
      %v3496 = vshrl.u32 %v3495, 7
      %v3497 = vsub.s32 %v1399, %v3496
      %v3498 = vrot.slane %v2954, %v3497
      %v3499 = vlaneseq
      %v3500 = vshrl.u32 %v3499, 7
      %v3501 = vsub.s32 %v1504, %v3500
      %v3502 = vrot.slane %v2957, %v3501
      %v3503 = vsel %vm1509, %v3502, %v3498
      %v3504 = vlaneseq
      %v3505 = vshrl.u32 %v3504, 7
      %v3506 = vsub.s32 %v1511, %v3505
      %v3507 = vrot.slane %v2960, %v3506
      %v3508 = vsel %vm1516, %v3507, %v3503
      %v3509 = vlaneseq
      %v3510 = vshrl.u32 %v3509, 7
      %v3511 = vsub.s32 %v1518, %v3510
      %v3512 = vrot.slane %v2963, %v3511
      %v3513 = vsel %vm1523, %v3512, %v3508
      %v3514 = vlaneseq
      %v3515 = vshrl.u32 %v3514, 7
      %v3516 = vsub.s32 %v1525, %v3515
      %v3517 = vrot.slane %v2966, %v3516
      %v3518 = vsel %vm1530, %v3517, %v3513
      %v3519 = vlaneseq
      %v3520 = vshrl.u32 %v3519, 7
      %v3521 = vsub.s32 %v1532, %v3520
      %v3522 = vrot.slane %v2969, %v3521
      %v3523 = vsel %vm1537, %v3522, %v3518
      %v3524 = vlaneseq
      %v3525 = vshrl.u32 %v3524, 7
      %v3526 = vsub.s32 %v1539, %v3525
      %v3527 = vrot.slane %v2972, %v3526
      %v3528 = vsel %vm1544, %v3527, %v3523
      %v3529 = vlaneseq
      %v3530 = vshrl.u32 %v3529, 7
      %v3531 = vsub.s32 %v1546, %v3530
      %v3532 = vrot.slane %v2975, %v3531
      %v3533 = vsel %vm1551, %v3532, %v3528
      %v3534 = vlaneseq
      %v3535 = vshrl.u32 %v3534, 7
      %v3536 = vsub.s32 %v1553, %v3535
      %v3537 = vrot.slane %v2978, %v3536
      %v3538 = vsel %vm1558, %v3537, %v3533
      %v3539 = vlaneseq
      %v3540 = vshrl.u32 %v3539, 7
      %v3541 = vsub.s32 %v1560, %v3540
      %v3542 = vrot.slane %v2981, %v3541
      %v3543 = vsel %vm1565, %v3542, %v3538
      %v3544 = vlaneseq
      %v3545 = vshrl.u32 %v3544, 7
      %v3546 = vsub.s32 %v1567, %v3545
      %v3547 = vrot.slane %v2984, %v3546
      %v3548 = vsel %vm1572, %v3547, %v3543
      %v3549 = vlaneseq
      %v3550 = vshrl.u32 %v3549, 7
      %v3551 = vsub.s32 %v1574, %v3550
      %v3552 = vrot.slane %v2987, %v3551
      %v3553 = vsel %vm1579, %v3552, %v3548
      %v3554 = vlaneseq
      %v3555 = vshrl.u32 %v3554, 7
      %v3556 = vsub.s32 %v1581, %v3555
      %v3557 = vrot.slane %v2990, %v3556
      %v3558 = vsel %vm1586, %v3557, %v3553
      %v3559 = vlaneseq
      %v3560 = vshrl.u32 %v3559, 7
      %v3561 = vsub.s32 %v1588, %v3560
      %v3562 = vrot.slane %v2993, %v3561
      %v3563 = vsel %vm1593, %v3562, %v3558
      %v3564 = vlaneseq
      %v3565 = vshrl.u32 %v3564, 7
      %v3566 = vsub.s32 %v1595, %v3565
      %v3567 = vrot.slane %v2996, %v3566
      %v3568 = vsel %vm1600, %v3567, %v3563
      %v3569 = vlaneseq
      %v3570 = vshrl.u32 %v3569, 7
      %v3571 = vsub.s32 %v1602, %v3570
      %v3572 = vrot.slane %v2999, %v3571
      %v3573 = vsel %vm1607, %v3572, %v3568
      %v3574 = vsel %vm2004, %v3257, %v3178
      %v3575 = vsel %vm2006, %v3336, %v3574
      %v3576 = vsel %vm2008, %v3415, %v3575
      %v3577 = vsel %vm2010, %v3494, %v3576
      %v3578 = vsel %vm2012, %v3573, %v3577
      %v3580 = vsel %vm3003, %v3578, -1e+18
      %v3581 = vsel %vm2016, %v3580, -inf
      %3582 = vmax.xlane.f32.xlu0 %v3581
      %v3583 = vpop.xlane.xlu0 %3582
      %v3584 = vmax.f32 %v3583, -1e+30
      %v3585 = vsub.f32 -1e+30, %v3584
      %v3586 = vmul.f32 %v3585, 1.442695
      %v3587 = vpow.pop %v3586
      %v3588 = vsub.f32 %v3580, %v3584
      %v3589 = vmul.f32 %v3588, 1.442695
      %v3590 = vpow.pop %v3589
      %v3591 = vmul.f32 %v3587, 0.0
      %v3592 = vsel %vm2016, %v3590, 0.0
      %3593 = vadd.xlane.f32.xlu0 %v3592
      %v3594 = vpop.xlane.xlu0 %3593
      %v3595 = vadd.f32 %v3591, %v3594
      %v3596 = vpack.c.bf16 %v3590, %v3590
      %v3597 = vpack.c.bf16 %v2281, %v2278
      %v3598 = vpack.c.bf16 %v2289, %v2286
      %v3599 = vpack.c.bf16 %v2297, %v2294
      %v3600 = vpack.c.bf16 %v2305, %v2302
      %v3601 = vpack.c.bf16 %v2313, %v2310
      %v3602 = vpack.c.bf16 %v2321, %v2318
      %v3603 = vpack.c.bf16 %v2329, %v2326
      %v3604 = vpack.c.bf16 %v2337, %v2334
      %3605 = vmatprep.subr.bf16.mxu0 0
      %3606 = vmatpush1.bf16.msra.mxu0 %v3604
      %3607 = vmatprep.subr.bf16.mxu0 0
      %3608 = vmatpush1.bf16.msra.mxu0 %v3603
      %3609 = vmatprep.subr.bf16.mxu0 0
      %3610 = vmatpush1.bf16.msra.mxu0 %v3602
      %3611 = vmatprep.subr.bf16.mxu0 0
      %3612 = vmatpush1.bf16.msra.mxu0 %v3601
      %3613 = vmatprep.subr.bf16.mxu0 0
      %3614 = vmatpush1.bf16.msra.mxu0 %v3600
      %3615 = vmatprep.subr.bf16.mxu0 0
      %3616 = vmatpush1.bf16.msra.mxu0 %v3599
      %3617 = vmatprep.subr.bf16.mxu0 0
      %3618 = vmatpush1.bf16.msra.mxu0 %v3598
      %3619 = vmatprep.subr.bf16.mxu0 0
      %3620 = vmatpush1.bf16.msra.mxu0 %v3597
      %3621 = vmatprep.subr.bf16.mxu0 0
      %3622 = vmatpush2.bf16.msra.mxu0 0
      %3623 = vmatprep.subr.bf16.mxu0 0
      %3624 = vmatpush2.bf16.msra.mxu0 0
      %3625 = vmatprep.subr.bf16.mxu0 0
      %3626 = vmatpush2.bf16.msra.mxu0 0
      %3627 = vmatprep.subr.bf16.mxu0 0
      %3628 = vmatpush2.bf16.msra.mxu0 0
      %3629 = vmatprep.subr.bf16.mxu0 0
      %3630 = vmatpush2.bf16.msra.mxu0 0
      %3631 = vmatprep.subr.bf16.mxu0 0
      %3632 = vmatpush2.bf16.msra.mxu0 0
      %3633 = vmatprep.subr.bf16.mxu0 0
      %3634 = vmatpush2.bf16.msra.mxu0 0
      %3635 = vmatprep.subr.bf16.mxu0 0
      %3636 = vmatpush2.bf16.msra.mxu0 0
      %3637 = vmatprep.mubr.bf16.mxu0 0
      %3638 = vmatmul.mubr.bf16.gmra.mxu0 %v3596
      %v3639 = vpop.f32.mrf.mxu0
      %v3640 = vadd.f32 0.0, %v3639
      %v3641 = vpop.f32.mrf.mxu0
      %v3642 = vpop.f32.mrf.mxu0
      %v3643 = vpop.f32.mrf.mxu0
      %3644 = vdwg.mxu0
      %v3645 = vadd.f32 %v3591, %v3640
      %v3646 = vrcp.pop %v3595
      %v3647 = vmul.f32 %v3645, %v3646
      %v3648 = vld [vmem:[%s12] sm:$0xf]
      %v3649 = vld [vmem:[%s12 + $0x4] sm:$0xf]
      %v3650 = vld [vmem:[%s12 + $0x8] sm:$0xf]
      %v3651 = vld [vmem:[%s12 + $0xc] sm:$0xf]
      %v3652 = vpack.c.bf16 %v3647, %v3647
      %v3653 = vld [vmem:[%s13] sm:$0xf]
      %v3654 = vld [vmem:[%s13 + $0x4] sm:$0xf]
      %v3655 = vld [vmem:[%s13 + $0x8] sm:$0xf]
      %v3656 = vld [vmem:[%s13 + $0xc] sm:$0xf]
      %v3661 = vunpack.c.l.b16 %v3653
      %v3662 = vunpack.c.l.b16 %v3654
      %v3663 = vunpack.c.l.b16 %v3655
      %v3664 = vunpack.c.l.b16 %v3656
      %v3665 = vpack.c.b16 %v3662, %v3661
      %v3666 = vpack.c.b16 %v3664, %v3663
      %v3670 = vsel %vm508, %v3652, 0
      %3672 = vmatprep.subr.bf16.mxu0 0
      %3673 = vmatpush1.bf16.msra.mxu0 0
      %3674 = vmatprep.subr.bf16.mxu0 0
      %3675 = vmatpush1.bf16.msra.mxu0 0
      %3676 = vmatprep.subr.bf16.mxu0 0
      %3677 = vmatpush1.bf16.msra.mxu0 0
      %3678 = vmatprep.subr.bf16.mxu0 0
      %3679 = vmatpush1.bf16.msra.mxu0 0
      %3680 = vmatprep.subr.bf16.mxu0 0
      %3681 = vmatpush1.bf16.msra.mxu0 0
      %3682 = vmatprep.subr.bf16.mxu0 0
      %3683 = vmatpush1.bf16.msra.mxu0 0
      %3684 = vmatprep.subr.bf16.mxu0 0
      %3685 = vmatpush1.bf16.msra.mxu0 %v3666
      %3686 = vmatprep.subr.bf16.mxu0 0
      %3687 = vmatpush1.bf16.msra.mxu0 %v3665
      %3688 = vmatprep.subr.bf16.mxu0 0
      %3689 = vmatpush2.bf16.msra.mxu0 0
      %3690 = vmatprep.subr.bf16.mxu0 0
      %3691 = vmatpush2.bf16.msra.mxu0 0
      %3692 = vmatprep.subr.bf16.mxu0 0
      %3693 = vmatpush2.bf16.msra.mxu0 0
      %3694 = vmatprep.subr.bf16.mxu0 0
      %3695 = vmatpush2.bf16.msra.mxu0 0
      %3696 = vmatprep.subr.bf16.mxu0 0
      %3697 = vmatpush2.bf16.msra.mxu0 0
      %3698 = vmatprep.subr.bf16.mxu0 0
      %3699 = vmatpush2.bf16.msra.mxu0 0
      %3700 = vmatprep.subr.bf16.mxu0 0
      %3701 = vmatpush2.bf16.msra.mxu0 0
      %3702 = vmatprep.subr.bf16.mxu0 0
      %3703 = vmatpush2.bf16.msra.mxu0 0
      %3704 = vmatprep.mubr.bf16.mxu0 0
      %3705 = vmatmul.mubr.bf16.gmra.mxu0 %v3670
      %v3706 = vpop.f32.mrf.mxu0
      %v3707 = vadd.f32 0.0, %v3706
      %v3708 = vpop.f32.mrf.mxu0
      %v3709 = vpop.f32.mrf.mxu0
      %v3710 = vpop.f32.mrf.mxu0
      %3711 = vdwg.mxu0
      %v3716 = vunpack.c.l.b16 %v3648
      %v3717 = vunpack.c.l.b16 %v3649
      %v3718 = vunpack.c.l.b16 %v3650
      %v3719 = vunpack.c.l.b16 %v3651
      %v3720 = vpack.c.b16 %v3717, %v3716
      %v3721 = vpack.c.b16 %v3719, %v3718
      %3724 = vmatprep.subr.bf16.mxu0 0
      %3725 = vmatpush1.bf16.msra.mxu0 0
      %3726 = vmatprep.subr.bf16.mxu0 0
      %3727 = vmatpush1.bf16.msra.mxu0 0
      %3728 = vmatprep.subr.bf16.mxu0 0
      %3729 = vmatpush1.bf16.msra.mxu0 0
      %3730 = vmatprep.subr.bf16.mxu0 0
      %3731 = vmatpush1.bf16.msra.mxu0 0
      %3732 = vmatprep.subr.bf16.mxu0 0
      %3733 = vmatpush1.bf16.msra.mxu0 0
      %3734 = vmatprep.subr.bf16.mxu0 0
      %3735 = vmatpush1.bf16.msra.mxu0 0
      %3736 = vmatprep.subr.bf16.mxu0 0
      %3737 = vmatpush1.bf16.msra.mxu0 %v3721
      %3738 = vmatprep.subr.bf16.mxu0 0
      %3739 = vmatpush1.bf16.msra.mxu0 %v3720
      %3740 = vmatprep.subr.bf16.mxu0 0
      %3741 = vmatpush2.bf16.msra.mxu0 0
      %3742 = vmatprep.subr.bf16.mxu0 0
      %3743 = vmatpush2.bf16.msra.mxu0 0
      %3744 = vmatprep.subr.bf16.mxu0 0
      %3745 = vmatpush2.bf16.msra.mxu0 0
      %3746 = vmatprep.subr.bf16.mxu0 0
      %3747 = vmatpush2.bf16.msra.mxu0 0
      %3748 = vmatprep.subr.bf16.mxu0 0
      %3749 = vmatpush2.bf16.msra.mxu0 0
      %3750 = vmatprep.subr.bf16.mxu0 0
      %3751 = vmatpush2.bf16.msra.mxu0 0
      %3752 = vmatprep.subr.bf16.mxu0 0
      %3753 = vmatpush2.bf16.msra.mxu0 0
      %3754 = vmatprep.subr.bf16.mxu0 0
      %3755 = vmatpush2.bf16.msra.mxu0 0
      %3756 = vmatprep.mubr.bf16.mxu0 0
      %3757 = vmatmul.mubr.bf16.gmra.mxu0 %v2104
      %v3758 = vpop.f32.mrf.mxu0
      %v3759 = vadd.f32 %v3707, %v3758
      %v3760 = vpop.f32.mrf.mxu0
      %v3761 = vpop.f32.mrf.mxu0
      %v3762 = vpop.f32.mrf.mxu0
      %3763 = vdwg.mxu0
      %v3764 = vld [vmem:[%s14] sm:$0x1]
      %v3765 = vld [vmem:[%s11] sm:$0xf]
      %v3766 = vld [vmem:[%s11 + $0x4] sm:$0xf]
      %v3769 = vunpack.c.l.b16 %v3765
      %v3770 = vunpack.c.l.b16 %v3766
      %v3771 = vpack.c.b16 %v3770, %v3769
      %3773 = vmatprep.subr.bf16.mxu0 0
      %3774 = vmatpush1.bf16.msra.mxu0 0
      %3775 = vmatprep.subr.bf16.mxu0 0
      %3776 = vmatpush1.bf16.msra.mxu0 0
      %3777 = vmatprep.subr.bf16.mxu0 0
      %3778 = vmatpush1.bf16.msra.mxu0 0
      %3779 = vmatprep.subr.bf16.mxu0 0
      %3780 = vmatpush1.bf16.msra.mxu0 0
      %3781 = vmatprep.subr.bf16.mxu0 0
      %3782 = vmatpush1.bf16.msra.mxu0 0
      %3783 = vmatprep.subr.bf16.mxu0 0
      %3784 = vmatpush1.bf16.msra.mxu0 0
      %3785 = vmatprep.subr.bf16.mxu0 0
      %3786 = vmatpush1.bf16.msra.mxu0 0
      %3787 = vmatprep.subr.bf16.mxu0 0
      %3788 = vmatpush1.bf16.msra.mxu0 %v3771
      %3789 = vmatprep.subr.bf16.mxu0 0
      %3790 = vmatpush2.bf16.msra.mxu0 0
      %3791 = vmatprep.subr.bf16.mxu0 0
      %3792 = vmatpush2.bf16.msra.mxu0 0
      %3793 = vmatprep.subr.bf16.mxu0 0
      %3794 = vmatpush2.bf16.msra.mxu0 0
      %3795 = vmatprep.subr.bf16.mxu0 0
      %3796 = vmatpush2.bf16.msra.mxu0 0
      %3797 = vmatprep.subr.bf16.mxu0 0
      %3798 = vmatpush2.bf16.msra.mxu0 0
      %3799 = vmatprep.subr.bf16.mxu0 0
      %3800 = vmatpush2.bf16.msra.mxu0 0
      %3801 = vmatprep.subr.bf16.mxu0 0
      %3802 = vmatpush2.bf16.msra.mxu0 0
      %3803 = vmatprep.subr.bf16.mxu0 0
      %3804 = vmatpush2.bf16.msra.mxu0 0
      %3805 = vmatprep.mubr.bf16.mxu0 0
      %3806 = vmatmul.mubr.bf16.gmra.mxu0 %v618
      %v3807 = vpop.f32.mrf.mxu0
      %v3808 = vadd.f32 0.0, %v3807
      %v3809 = vpop.f32.mrf.mxu0
      %v3810 = vpop.f32.mrf.mxu0
      %v3811 = vadd.f32 0.0, %v3810
      %v3812 = vpop.f32.mrf.mxu0
      %3813 = vmatprep.mubr.bf16.mxu0 0
      %3814 = vmatmul.mubr.bf16.gmra.mxu0 %v621
      %v3815 = vpop.f32.mrf.mxu0
      %v3816 = vadd.f32 0.0, %v3815
      %v3817 = vpop.f32.mrf.mxu0
      %v3818 = vpop.f32.mrf.mxu0
      %v3819 = vadd.f32 0.0, %v3818
      %v3820 = vpop.f32.mrf.mxu0
      %3821 = vmatprep.mubr.bf16.mxu0 0
      %3822 = vmatmul.mubr.bf16.gmra.mxu0 %v624
      %v3823 = vpop.f32.mrf.mxu0
      %v3824 = vadd.f32 0.0, %v3823
      %v3825 = vpop.f32.mrf.mxu0
      %v3826 = vpop.f32.mrf.mxu0
      %v3827 = vadd.f32 0.0, %v3826
      %v3828 = vpop.f32.mrf.mxu0
      %3829 = vmatprep.mubr.bf16.mxu0 0
      %3830 = vmatmul.mubr.bf16.gmra.mxu0 %v627
      %v3831 = vpop.f32.mrf.mxu0
      %v3832 = vadd.f32 0.0, %v3831
      %v3833 = vpop.f32.mrf.mxu0
      %v3834 = vpop.f32.mrf.mxu0
      %v3835 = vadd.f32 0.0, %v3834
      %v3836 = vpop.f32.mrf.mxu0
      %3837 = vmatprep.mubr.bf16.mxu0 0
      %3838 = vmatmul.mubr.bf16.gmra.mxu0 %v630
      %v3839 = vpop.f32.mrf.mxu0
      %v3840 = vadd.f32 0.0, %v3839
      %v3841 = vpop.f32.mrf.mxu0
      %v3842 = vpop.f32.mrf.mxu0
      %v3843 = vadd.f32 0.0, %v3842
      %v3844 = vpop.f32.mrf.mxu0
      %3845 = vmatprep.mubr.bf16.mxu0 0
      %3846 = vmatmul.mubr.bf16.gmra.mxu0 %v633
      %v3847 = vpop.f32.mrf.mxu0
      %v3848 = vadd.f32 0.0, %v3847
      %v3849 = vpop.f32.mrf.mxu0
      %v3850 = vpop.f32.mrf.mxu0
      %v3851 = vadd.f32 0.0, %v3850
      %v3852 = vpop.f32.mrf.mxu0
      %3853 = vmatprep.mubr.bf16.mxu0 0
      %3854 = vmatmul.mubr.bf16.gmra.mxu0 %v636
      %v3855 = vpop.f32.mrf.mxu0
      %v3856 = vadd.f32 0.0, %v3855
      %v3857 = vpop.f32.mrf.mxu0
      %v3858 = vpop.f32.mrf.mxu0
      %v3859 = vadd.f32 0.0, %v3858
      %v3860 = vpop.f32.mrf.mxu0
      %3861 = vmatprep.mubr.bf16.mxu0 0
      %3862 = vmatmul.mubr.bf16.gmra.mxu0 %v639
      %v3863 = vpop.f32.mrf.mxu0
      %v3864 = vadd.f32 0.0, %v3863
      %v3865 = vpop.f32.mrf.mxu0
      %v3866 = vpop.f32.mrf.mxu0
      %v3867 = vadd.f32 0.0, %v3866
      %v3868 = vpop.f32.mrf.mxu0
      %3869 = vdwg.mxu0
      %v3871 = vcombine.high %v3759, %v3759
      %v3873 = vunpack.c.l.s4 1966171168
      %v3874 = vunpack.c.0.s8 %v3873
      %v3875 = vlaneseq
      %v3876 = vshrl.u32 %v3875, 7
      %v3877 = vsub.s32 %v3874, %v3876
      %v3878 = vrot.slane %v3759, %v3877
      %v3880 = vunpack.c.l.s4 1966171168
      %v3881 = vunpack.c.0.s8 %v3880
      %v3882 = vlaneseq
      %v3883 = vshrl.u32 %v3882, 7
      %v3884 = vsub.s32 %v3881, %v3883
      %v3885 = vrot.slane %v3871, %v3884
      %v3886 = vcombine.high %v3878, %v3878
      %v3887 = vcombine.high %v3885, %v3885
      %v3889 = vunpack.c.l.s4 1966171168
      %v3890 = vunpack.c.0.s8 %v3889
      %v3891 = vlaneseq
      %v3892 = vshrl.u32 %v3891, 7
      %v3893 = vsub.s32 %v3890, %v3892
      %v3894 = vrot.slane %v3878, %v3893
      %v3896 = vunpack.c.l.s4 1966171168
      %v3897 = vunpack.c.0.s8 %v3896
      %v3898 = vlaneseq
      %v3899 = vshrl.u32 %v3898, 7
      %v3900 = vsub.s32 %v3897, %v3899
      %v3901 = vrot.slane %v3885, %v3900
      %v3903 = vunpack.c.l.s4 1966171168
      %v3904 = vunpack.c.0.s8 %v3903
      %v3905 = vlaneseq
      %v3906 = vshrl.u32 %v3905, 7
      %v3907 = vsub.s32 %v3904, %v3906
      %v3908 = vrot.slane %v3886, %v3907
      %v3910 = vunpack.c.l.s4 1966171168
      %v3911 = vunpack.c.0.s8 %v3910
      %v3912 = vlaneseq
      %v3913 = vshrl.u32 %v3912, 7
      %v3914 = vsub.s32 %v3911, %v3913
      %v3915 = vrot.slane %v3887, %v3914
      %v3916 = vcombine.high %v3894, %v3894
      %v3917 = vcombine.high %v3908, %v3908
      %v3918 = vlaneseq
      %v3919 = vshrl.u32 %v3918, 7
      %v3920 = vsub.s32 0, %v3919
      %v3921 = vrot.slane %v3894, %v3920
      %v3922 = vlaneseq
      %v3923 = vshrl.u32 %v3922, 7
      %v3924 = vsub.s32 0, %v3923
      %v3925 = vrot.slane %v3908, %v3924
      %v3926 = vlaneseq
      %v3927 = vshrl.u32 %v3926, 7
      %v3928 = vsub.s32 0, %v3927
      %v3929 = vrot.slane %v3916, %v3928
      %v3930 = vlaneseq
      %v3931 = vshrl.u32 %v3930, 7
      %v3932 = vsub.s32 0, %v3931
      %v3933 = vrot.slane %v3917, %v3932
      %v3934 = vlaneseq
      %v3935 = vshrl.u32 %v3934, 7
      %v3936 = vsub.s32 0, %v3935
      %v3937 = vrot.slane %v3901, %v3936
      %v3938 = vlaneseq
      %v3939 = vshrl.u32 %v3938, 7
      %v3940 = vsub.s32 0, %v3939
      %v3941 = vrot.slane %v3915, %v3940
      %v3948 = vadd.f32 %v3808, %v3921
      %v3949 = vadd.f32 %v3811, %v3921
      %v3950 = vadd.f32 %v3816, %v3921
      %v3951 = vadd.f32 %v3819, %v3921
      %v3952 = vadd.f32 %v3824, %v3921
      %v3953 = vadd.f32 %v3827, %v3921
      %v3954 = vadd.f32 %v3832, %v3921
      %v3955 = vadd.f32 %v3835, %v3921
      %v3956 = vadd.f32 %v3840, %v3921
      %v3957 = vadd.f32 %v3843, %v3921
      %v3958 = vadd.f32 %v3848, %v3921
      %v3959 = vadd.f32 %v3851, %v3921
      %v3960 = vadd.f32 %v3856, %v3921
      %v3961 = vadd.f32 %v3859, %v3921
      %v3962 = vadd.f32 %v3864, %v3921
      %v3963 = vadd.f32 %v3867, %v3921
      %v3964 = vadd.f32 %v3808, %v3925
      %v3965 = vadd.f32 %v3811, %v3925
      %v3966 = vadd.f32 %v3816, %v3925
      %v3967 = vadd.f32 %v3819, %v3925
      %v3968 = vadd.f32 %v3824, %v3925
      %v3969 = vadd.f32 %v3827, %v3925
      %v3970 = vadd.f32 %v3832, %v3925
      %v3971 = vadd.f32 %v3835, %v3925
      %v3972 = vadd.f32 %v3840, %v3925
      %v3973 = vadd.f32 %v3843, %v3925
      %v3974 = vadd.f32 %v3848, %v3925
      %v3975 = vadd.f32 %v3851, %v3925
      %v3976 = vadd.f32 %v3856, %v3925
      %v3977 = vadd.f32 %v3859, %v3925
      %v3978 = vadd.f32 %v3864, %v3925
      %v3979 = vadd.f32 %v3867, %v3925
      %v3980 = vadd.f32 %v3808, %v3929
      %v3981 = vadd.f32 %v3811, %v3929
      %v3982 = vadd.f32 %v3816, %v3929
      %v3983 = vadd.f32 %v3819, %v3929
      %v3984 = vadd.f32 %v3824, %v3929
      %v3985 = vadd.f32 %v3827, %v3929
      %v3986 = vadd.f32 %v3832, %v3929
      %v3987 = vadd.f32 %v3835, %v3929
      %v3988 = vadd.f32 %v3840, %v3929
      %v3989 = vadd.f32 %v3843, %v3929
      %v3990 = vadd.f32 %v3848, %v3929
      %v3991 = vadd.f32 %v3851, %v3929
      %v3992 = vadd.f32 %v3856, %v3929
      %v3993 = vadd.f32 %v3859, %v3929
      %v3994 = vadd.f32 %v3864, %v3929
      %v3995 = vadd.f32 %v3867, %v3929
      %v3996 = vadd.f32 %v3808, %v3933
      %v3997 = vadd.f32 %v3811, %v3933
      %v3998 = vadd.f32 %v3816, %v3933
      %v3999 = vadd.f32 %v3819, %v3933
      %v4000 = vadd.f32 %v3824, %v3933
      %v4001 = vadd.f32 %v3827, %v3933
      %v4002 = vadd.f32 %v3832, %v3933
      %v4003 = vadd.f32 %v3835, %v3933
      %v4004 = vadd.f32 %v3840, %v3933
      %v4005 = vadd.f32 %v3843, %v3933
      %v4006 = vadd.f32 %v3848, %v3933
      %v4007 = vadd.f32 %v3851, %v3933
      %v4008 = vadd.f32 %v3856, %v3933
      %v4009 = vadd.f32 %v3859, %v3933
      %v4010 = vadd.f32 %v3864, %v3933
      %v4011 = vadd.f32 %v3867, %v3933
      %v4012 = vadd.f32 %v3808, %v3937
      %v4013 = vadd.f32 %v3811, %v3937
      %v4014 = vadd.f32 %v3816, %v3937
      %v4015 = vadd.f32 %v3819, %v3937
      %v4016 = vadd.f32 %v3824, %v3937
      %v4017 = vadd.f32 %v3827, %v3937
      %v4018 = vadd.f32 %v3832, %v3937
      %v4019 = vadd.f32 %v3835, %v3937
      %v4020 = vadd.f32 %v3840, %v3937
      %v4021 = vadd.f32 %v3843, %v3937
      %v4022 = vadd.f32 %v3848, %v3937
      %v4023 = vadd.f32 %v3851, %v3937
      %v4024 = vadd.f32 %v3856, %v3937
      %v4025 = vadd.f32 %v3859, %v3937
      %v4026 = vadd.f32 %v3864, %v3937
      %v4027 = vadd.f32 %v3867, %v3937
      %v4028 = vadd.f32 %v3808, %v3941
      %v4029 = vadd.f32 %v3811, %v3941
      %v4030 = vadd.f32 %v3816, %v3941
      %v4031 = vadd.f32 %v3819, %v3941
      %v4032 = vadd.f32 %v3824, %v3941
      %v4033 = vadd.f32 %v3827, %v3941
      %v4034 = vadd.f32 %v3832, %v3941
      %v4035 = vadd.f32 %v3835, %v3941
      %v4036 = vadd.f32 %v3840, %v3941
      %v4037 = vadd.f32 %v3843, %v3941
      %v4038 = vadd.f32 %v3848, %v3941
      %v4039 = vadd.f32 %v3851, %v3941
      %v4040 = vadd.f32 %v3856, %v3941
      %v4041 = vadd.f32 %v3859, %v3941
      %v4042 = vadd.f32 %v3864, %v3941
      %v4043 = vadd.f32 %v3867, %v3941
      %v4044 = vtanh.pop %v3948
      %v4045 = vtanh.pop %v3949
      %v4046 = vtanh.pop %v3950
      %v4047 = vtanh.pop %v3951
      %v4048 = vtanh.pop %v3952
      %v4049 = vtanh.pop %v3953
      %v4050 = vtanh.pop %v3954
      %v4051 = vtanh.pop %v3955
      %v4052 = vtanh.pop %v3956
      %v4053 = vtanh.pop %v3957
      %v4054 = vtanh.pop %v3958
      %v4055 = vtanh.pop %v3959
      %v4056 = vtanh.pop %v3960
      %v4057 = vtanh.pop %v3961
      %v4058 = vtanh.pop %v3962
      %v4059 = vtanh.pop %v3963
      %v4060 = vtanh.pop %v3964
      %v4061 = vtanh.pop %v3965
      %v4062 = vtanh.pop %v3966
      %v4063 = vtanh.pop %v3967
      %v4064 = vtanh.pop %v3968
      %v4065 = vtanh.pop %v3969
      %v4066 = vtanh.pop %v3970
      %v4067 = vtanh.pop %v3971
      %v4068 = vtanh.pop %v3972
      %v4069 = vtanh.pop %v3973
      %v4070 = vtanh.pop %v3974
      %v4071 = vtanh.pop %v3975
      %v4072 = vtanh.pop %v3976
      %v4073 = vtanh.pop %v3977
      %v4074 = vtanh.pop %v3978
      %v4075 = vtanh.pop %v3979
      %v4076 = vtanh.pop %v3980
      %v4077 = vtanh.pop %v3981
      %v4078 = vtanh.pop %v3982
      %v4079 = vtanh.pop %v3983
      %v4080 = vtanh.pop %v3984
      %v4081 = vtanh.pop %v3985
      %v4082 = vtanh.pop %v3986
      %v4083 = vtanh.pop %v3987
      %v4084 = vtanh.pop %v3988
      %v4085 = vtanh.pop %v3989
      %v4086 = vtanh.pop %v3990
      %v4087 = vtanh.pop %v3991
      %v4088 = vtanh.pop %v3992
      %v4089 = vtanh.pop %v3993
      %v4090 = vtanh.pop %v3994
      %v4091 = vtanh.pop %v3995
      %v4092 = vtanh.pop %v3996
      %v4093 = vtanh.pop %v3997
      %v4094 = vtanh.pop %v3998
      %v4095 = vtanh.pop %v3999
      %v4096 = vtanh.pop %v4000
      %v4097 = vtanh.pop %v4001
      %v4098 = vtanh.pop %v4002
      %v4099 = vtanh.pop %v4003
      %v4100 = vtanh.pop %v4004
      %v4101 = vtanh.pop %v4005
      %v4102 = vtanh.pop %v4006
      %v4103 = vtanh.pop %v4007
      %v4104 = vtanh.pop %v4008
      %v4105 = vtanh.pop %v4009
      %v4106 = vtanh.pop %v4010
      %v4107 = vtanh.pop %v4011
      %v4108 = vtanh.pop %v4012
      %v4109 = vtanh.pop %v4013
      %v4110 = vtanh.pop %v4014
      %v4111 = vtanh.pop %v4015
      %v4112 = vtanh.pop %v4016
      %v4113 = vtanh.pop %v4017
      %v4114 = vtanh.pop %v4018
      %v4115 = vtanh.pop %v4019
      %v4116 = vtanh.pop %v4020
      %v4117 = vtanh.pop %v4021
      %v4118 = vtanh.pop %v4022
      %v4119 = vtanh.pop %v4023
      %v4120 = vtanh.pop %v4024
      %v4121 = vtanh.pop %v4025
      %v4122 = vtanh.pop %v4026
      %v4123 = vtanh.pop %v4027
      %v4124 = vtanh.pop %v4028
      %v4125 = vtanh.pop %v4029
      %v4126 = vtanh.pop %v4030
      %v4127 = vtanh.pop %v4031
      %v4128 = vtanh.pop %v4032
      %v4129 = vtanh.pop %v4033
      %v4130 = vtanh.pop %v4034
      %v4131 = vtanh.pop %v4035
      %v4132 = vtanh.pop %v4036
      %v4133 = vtanh.pop %v4037
      %v4134 = vtanh.pop %v4038
      %v4135 = vtanh.pop %v4039
      %v4136 = vtanh.pop %v4040
      %v4137 = vtanh.pop %v4041
      %v4138 = vtanh.pop %v4042
      %v4139 = vtanh.pop %v4043
      %v4141 = vlaneseq
      %v4142 = vshrl.u32 %v4141, 7
      %v4143 = vsub.s32 0, %v4142
      %v4144 = vrot.slane %v3764, %v4143
      %v4146 = vmul.f32 %v4044, %v4144
      %v4147 = vmul.f32 %v4045, %v4144
      %v4148 = vmul.f32 %v4046, %v4144
      %v4149 = vmul.f32 %v4047, %v4144
      %v4150 = vmul.f32 %v4048, %v4144
      %v4151 = vmul.f32 %v4049, %v4144
      %v4152 = vmul.f32 %v4050, %v4144
      %v4153 = vmul.f32 %v4051, %v4144
      %v4154 = vmul.f32 %v4052, %v4144
      %v4155 = vmul.f32 %v4053, %v4144
      %v4156 = vmul.f32 %v4054, %v4144
      %v4157 = vmul.f32 %v4055, %v4144
      %v4158 = vmul.f32 %v4056, %v4144
      %v4159 = vmul.f32 %v4057, %v4144
      %v4160 = vmul.f32 %v4058, %v4144
      %v4161 = vmul.f32 %v4059, %v4144
      %v4162 = vmul.f32 %v4060, %v4144
      %v4163 = vmul.f32 %v4061, %v4144
      %v4164 = vmul.f32 %v4062, %v4144
      %v4165 = vmul.f32 %v4063, %v4144
      %v4166 = vmul.f32 %v4064, %v4144
      %v4167 = vmul.f32 %v4065, %v4144
      %v4168 = vmul.f32 %v4066, %v4144
      %v4169 = vmul.f32 %v4067, %v4144
      %v4170 = vmul.f32 %v4068, %v4144
      %v4171 = vmul.f32 %v4069, %v4144
      %v4172 = vmul.f32 %v4070, %v4144
      %v4173 = vmul.f32 %v4071, %v4144
      %v4174 = vmul.f32 %v4072, %v4144
      %v4175 = vmul.f32 %v4073, %v4144
      %v4176 = vmul.f32 %v4074, %v4144
      %v4177 = vmul.f32 %v4075, %v4144
      %v4178 = vmul.f32 %v4076, %v4144
      %v4179 = vmul.f32 %v4077, %v4144
      %v4180 = vmul.f32 %v4078, %v4144
      %v4181 = vmul.f32 %v4079, %v4144
      %v4182 = vmul.f32 %v4080, %v4144
      %v4183 = vmul.f32 %v4081, %v4144
      %v4184 = vmul.f32 %v4082, %v4144
      %v4185 = vmul.f32 %v4083, %v4144
      %v4186 = vmul.f32 %v4084, %v4144
      %v4187 = vmul.f32 %v4085, %v4144
      %v4188 = vmul.f32 %v4086, %v4144
      %v4189 = vmul.f32 %v4087, %v4144
      %v4190 = vmul.f32 %v4088, %v4144
      %v4191 = vmul.f32 %v4089, %v4144
      %v4192 = vmul.f32 %v4090, %v4144
      %v4193 = vmul.f32 %v4091, %v4144
      %v4194 = vmul.f32 %v4092, %v4144
      %v4195 = vmul.f32 %v4093, %v4144
      %v4196 = vmul.f32 %v4094, %v4144
      %v4197 = vmul.f32 %v4095, %v4144
      %v4198 = vmul.f32 %v4096, %v4144
      %v4199 = vmul.f32 %v4097, %v4144
      %v4200 = vmul.f32 %v4098, %v4144
      %v4201 = vmul.f32 %v4099, %v4144
      %v4202 = vmul.f32 %v4100, %v4144
      %v4203 = vmul.f32 %v4101, %v4144
      %v4204 = vmul.f32 %v4102, %v4144
      %v4205 = vmul.f32 %v4103, %v4144
      %v4206 = vmul.f32 %v4104, %v4144
      %v4207 = vmul.f32 %v4105, %v4144
      %v4208 = vmul.f32 %v4106, %v4144
      %v4209 = vmul.f32 %v4107, %v4144
      %v4210 = vmul.f32 %v4108, %v4144
      %v4211 = vmul.f32 %v4109, %v4144
      %v4212 = vmul.f32 %v4110, %v4144
      %v4213 = vmul.f32 %v4111, %v4144
      %v4214 = vmul.f32 %v4112, %v4144
      %v4215 = vmul.f32 %v4113, %v4144
      %v4216 = vmul.f32 %v4114, %v4144
      %v4217 = vmul.f32 %v4115, %v4144
      %v4218 = vmul.f32 %v4116, %v4144
      %v4219 = vmul.f32 %v4117, %v4144
      %v4220 = vmul.f32 %v4118, %v4144
      %v4221 = vmul.f32 %v4119, %v4144
      %v4222 = vmul.f32 %v4120, %v4144
      %v4223 = vmul.f32 %v4121, %v4144
      %v4224 = vmul.f32 %v4122, %v4144
      %v4225 = vmul.f32 %v4123, %v4144
      %v4226 = vmul.f32 %v4124, %v4144
      %v4227 = vmul.f32 %v4125, %v4144
      %v4228 = vmul.f32 %v4126, %v4144
      %v4229 = vmul.f32 %v4127, %v4144
      %v4230 = vmul.f32 %v4128, %v4144
      %v4231 = vmul.f32 %v4129, %v4144
      %v4232 = vmul.f32 %v4130, %v4144
      %v4233 = vmul.f32 %v4131, %v4144
      %v4234 = vmul.f32 %v4132, %v4144
      %v4235 = vmul.f32 %v4133, %v4144
      %v4236 = vmul.f32 %v4134, %v4144
      %v4237 = vmul.f32 %v4135, %v4144
      %v4238 = vmul.f32 %v4136, %v4144
      %v4239 = vmul.f32 %v4137, %v4144
      %v4240 = vmul.f32 %v4138, %v4144
      %v4241 = vmul.f32 %v4139, %v4144
      %v4242 = vsel %vm508, %v4146, 0.0
      %4243 = vadd.xlane.f32.xlu0 %v4242
      %v4244 = vpop.xlane.xlu0 %4243
      %v4245 = vsel %vm508, %v4147, 0.0
      %4246 = vadd.xlane.f32.xlu0 %v4245
      %v4247 = vpop.xlane.xlu0 %4246
      %v4248 = vsel %vm508, %v4148, 0.0
      %4249 = vadd.xlane.f32.xlu0 %v4248
      %v4250 = vpop.xlane.xlu0 %4249
      %v4251 = vsel %vm508, %v4149, 0.0
      %4252 = vadd.xlane.f32.xlu0 %v4251
      %v4253 = vpop.xlane.xlu0 %4252
      %v4254 = vsel %vm508, %v4150, 0.0
      %4255 = vadd.xlane.f32.xlu0 %v4254
      %v4256 = vpop.xlane.xlu0 %4255
      %v4257 = vsel %vm508, %v4151, 0.0
      %4258 = vadd.xlane.f32.xlu0 %v4257
      %v4259 = vpop.xlane.xlu0 %4258
      %v4260 = vsel %vm508, %v4152, 0.0
      %4261 = vadd.xlane.f32.xlu0 %v4260
      %v4262 = vpop.xlane.xlu0 %4261
      %v4263 = vsel %vm508, %v4153, 0.0
      %4264 = vadd.xlane.f32.xlu0 %v4263
      %v4265 = vpop.xlane.xlu0 %4264
      %v4266 = vsel %vm508, %v4154, 0.0
      %4267 = vadd.xlane.f32.xlu0 %v4266
      %v4268 = vpop.xlane.xlu0 %4267
      %v4269 = vsel %vm508, %v4155, 0.0
      %4270 = vadd.xlane.f32.xlu0 %v4269
      %v4271 = vpop.xlane.xlu0 %4270
      %v4272 = vsel %vm508, %v4156, 0.0
      %4273 = vadd.xlane.f32.xlu0 %v4272
      %v4274 = vpop.xlane.xlu0 %4273
      %v4275 = vsel %vm508, %v4157, 0.0
      %4276 = vadd.xlane.f32.xlu0 %v4275
      %v4277 = vpop.xlane.xlu0 %4276
      %v4278 = vsel %vm508, %v4158, 0.0
      %4279 = vadd.xlane.f32.xlu0 %v4278
      %v4280 = vpop.xlane.xlu0 %4279
      %v4281 = vsel %vm508, %v4159, 0.0
      %4282 = vadd.xlane.f32.xlu0 %v4281
      %v4283 = vpop.xlane.xlu0 %4282
      %v4284 = vsel %vm508, %v4160, 0.0
      %4285 = vadd.xlane.f32.xlu0 %v4284
      %v4286 = vpop.xlane.xlu0 %4285
      %v4287 = vsel %vm508, %v4161, 0.0
      %4288 = vadd.xlane.f32.xlu0 %v4287
      %v4289 = vpop.xlane.xlu0 %4288
      %v4290 = vsel %vm508, %v4162, 0.0
      %4291 = vadd.xlane.f32.xlu0 %v4290
      %v4292 = vpop.xlane.xlu0 %4291
      %v4293 = vsel %vm508, %v4163, 0.0
      %4294 = vadd.xlane.f32.xlu0 %v4293
      %v4295 = vpop.xlane.xlu0 %4294
      %v4296 = vsel %vm508, %v4164, 0.0
      %4297 = vadd.xlane.f32.xlu0 %v4296
      %v4298 = vpop.xlane.xlu0 %4297
      %v4299 = vsel %vm508, %v4165, 0.0
      %4300 = vadd.xlane.f32.xlu0 %v4299
      %v4301 = vpop.xlane.xlu0 %4300
      %v4302 = vsel %vm508, %v4166, 0.0
      %4303 = vadd.xlane.f32.xlu0 %v4302
      %v4304 = vpop.xlane.xlu0 %4303
      %v4305 = vsel %vm508, %v4167, 0.0
      %4306 = vadd.xlane.f32.xlu0 %v4305
      %v4307 = vpop.xlane.xlu0 %4306
      %v4308 = vsel %vm508, %v4168, 0.0
      %4309 = vadd.xlane.f32.xlu0 %v4308
      %v4310 = vpop.xlane.xlu0 %4309
      %v4311 = vsel %vm508, %v4169, 0.0
      %4312 = vadd.xlane.f32.xlu0 %v4311
      %v4313 = vpop.xlane.xlu0 %4312
      %v4314 = vsel %vm508, %v4170, 0.0
      %4315 = vadd.xlane.f32.xlu0 %v4314
      %v4316 = vpop.xlane.xlu0 %4315
      %v4317 = vsel %vm508, %v4171, 0.0
      %4318 = vadd.xlane.f32.xlu0 %v4317
      %v4319 = vpop.xlane.xlu0 %4318
      %v4320 = vsel %vm508, %v4172, 0.0
      %4321 = vadd.xlane.f32.xlu0 %v4320
      %v4322 = vpop.xlane.xlu0 %4321
      %v4323 = vsel %vm508, %v4173, 0.0
      %4324 = vadd.xlane.f32.xlu0 %v4323
      %v4325 = vpop.xlane.xlu0 %4324
      %v4326 = vsel %vm508, %v4174, 0.0
      %4327 = vadd.xlane.f32.xlu0 %v4326
      %v4328 = vpop.xlane.xlu0 %4327
      %v4329 = vsel %vm508, %v4175, 0.0
      %4330 = vadd.xlane.f32.xlu0 %v4329
      %v4331 = vpop.xlane.xlu0 %4330
      %v4332 = vsel %vm508, %v4176, 0.0
      %4333 = vadd.xlane.f32.xlu0 %v4332
      %v4334 = vpop.xlane.xlu0 %4333
      %v4335 = vsel %vm508, %v4177, 0.0
      %4336 = vadd.xlane.f32.xlu0 %v4335
      %v4337 = vpop.xlane.xlu0 %4336
      %v4338 = vsel %vm508, %v4178, 0.0
      %4339 = vadd.xlane.f32.xlu0 %v4338
      %v4340 = vpop.xlane.xlu0 %4339
      %v4341 = vsel %vm508, %v4179, 0.0
      %4342 = vadd.xlane.f32.xlu0 %v4341
      %v4343 = vpop.xlane.xlu0 %4342
      %v4344 = vsel %vm508, %v4180, 0.0
      %4345 = vadd.xlane.f32.xlu0 %v4344
      %v4346 = vpop.xlane.xlu0 %4345
      %v4347 = vsel %vm508, %v4181, 0.0
      %4348 = vadd.xlane.f32.xlu0 %v4347
      %v4349 = vpop.xlane.xlu0 %4348
      %v4350 = vsel %vm508, %v4182, 0.0
      %4351 = vadd.xlane.f32.xlu0 %v4350
      %v4352 = vpop.xlane.xlu0 %4351
      %v4353 = vsel %vm508, %v4183, 0.0
      %4354 = vadd.xlane.f32.xlu0 %v4353
      %v4355 = vpop.xlane.xlu0 %4354
      %v4356 = vsel %vm508, %v4184, 0.0
      %4357 = vadd.xlane.f32.xlu0 %v4356
      %v4358 = vpop.xlane.xlu0 %4357
      %v4359 = vsel %vm508, %v4185, 0.0
      %4360 = vadd.xlane.f32.xlu0 %v4359
      %v4361 = vpop.xlane.xlu0 %4360
      %v4362 = vsel %vm508, %v4186, 0.0
      %4363 = vadd.xlane.f32.xlu0 %v4362
      %v4364 = vpop.xlane.xlu0 %4363
      %v4365 = vsel %vm508, %v4187, 0.0
      %4366 = vadd.xlane.f32.xlu0 %v4365
      %v4367 = vpop.xlane.xlu0 %4366
      %v4368 = vsel %vm508, %v4188, 0.0
      %4369 = vadd.xlane.f32.xlu0 %v4368
      %v4370 = vpop.xlane.xlu0 %4369
      %v4371 = vsel %vm508, %v4189, 0.0
      %4372 = vadd.xlane.f32.xlu0 %v4371
      %v4373 = vpop.xlane.xlu0 %4372
      %v4374 = vsel %vm508, %v4190, 0.0
      %4375 = vadd.xlane.f32.xlu0 %v4374
      %v4376 = vpop.xlane.xlu0 %4375
      %v4377 = vsel %vm508, %v4191, 0.0
      %4378 = vadd.xlane.f32.xlu0 %v4377
      %v4379 = vpop.xlane.xlu0 %4378
      %v4380 = vsel %vm508, %v4192, 0.0
      %4381 = vadd.xlane.f32.xlu0 %v4380
      %v4382 = vpop.xlane.xlu0 %4381
      %v4383 = vsel %vm508, %v4193, 0.0
      %4384 = vadd.xlane.f32.xlu0 %v4383
      %v4385 = vpop.xlane.xlu0 %4384
      %v4386 = vsel %vm508, %v4194, 0.0
      %4387 = vadd.xlane.f32.xlu0 %v4386
      %v4388 = vpop.xlane.xlu0 %4387
      %v4389 = vsel %vm508, %v4195, 0.0
      %4390 = vadd.xlane.f32.xlu0 %v4389
      %v4391 = vpop.xlane.xlu0 %4390
      %v4392 = vsel %vm508, %v4196, 0.0
      %4393 = vadd.xlane.f32.xlu0 %v4392
      %v4394 = vpop.xlane.xlu0 %4393
      %v4395 = vsel %vm508, %v4197, 0.0
      %4396 = vadd.xlane.f32.xlu0 %v4395
      %v4397 = vpop.xlane.xlu0 %4396
      %v4398 = vsel %vm508, %v4198, 0.0
      %4399 = vadd.xlane.f32.xlu0 %v4398
      %v4400 = vpop.xlane.xlu0 %4399
      %v4401 = vsel %vm508, %v4199, 0.0
      %4402 = vadd.xlane.f32.xlu0 %v4401
      %v4403 = vpop.xlane.xlu0 %4402
      %v4404 = vsel %vm508, %v4200, 0.0
      %4405 = vadd.xlane.f32.xlu0 %v4404
      %v4406 = vpop.xlane.xlu0 %4405
      %v4407 = vsel %vm508, %v4201, 0.0
      %4408 = vadd.xlane.f32.xlu0 %v4407
      %v4409 = vpop.xlane.xlu0 %4408
      %v4410 = vsel %vm508, %v4202, 0.0
      %4411 = vadd.xlane.f32.xlu0 %v4410
      %v4412 = vpop.xlane.xlu0 %4411
      %v4413 = vsel %vm508, %v4203, 0.0
      %4414 = vadd.xlane.f32.xlu0 %v4413
      %v4415 = vpop.xlane.xlu0 %4414
      %v4416 = vsel %vm508, %v4204, 0.0
      %4417 = vadd.xlane.f32.xlu0 %v4416
      %v4418 = vpop.xlane.xlu0 %4417
      %v4419 = vsel %vm508, %v4205, 0.0
      %4420 = vadd.xlane.f32.xlu0 %v4419
      %v4421 = vpop.xlane.xlu0 %4420
      %v4422 = vsel %vm508, %v4206, 0.0
      %4423 = vadd.xlane.f32.xlu0 %v4422
      %v4424 = vpop.xlane.xlu0 %4423
      %v4425 = vsel %vm508, %v4207, 0.0
      %4426 = vadd.xlane.f32.xlu0 %v4425
      %v4427 = vpop.xlane.xlu0 %4426
      %v4428 = vsel %vm508, %v4208, 0.0
      %4429 = vadd.xlane.f32.xlu0 %v4428
      %v4430 = vpop.xlane.xlu0 %4429
      %v4431 = vsel %vm508, %v4209, 0.0
      %4432 = vadd.xlane.f32.xlu0 %v4431
      %v4433 = vpop.xlane.xlu0 %4432
      %v4434 = vsel %vm508, %v4210, 0.0
      %4435 = vadd.xlane.f32.xlu0 %v4434
      %v4436 = vpop.xlane.xlu0 %4435
      %v4437 = vsel %vm508, %v4211, 0.0
      %4438 = vadd.xlane.f32.xlu0 %v4437
      %v4439 = vpop.xlane.xlu0 %4438
      %v4440 = vsel %vm508, %v4212, 0.0
      %4441 = vadd.xlane.f32.xlu0 %v4440
      %v4442 = vpop.xlane.xlu0 %4441
      %v4443 = vsel %vm508, %v4213, 0.0
      %4444 = vadd.xlane.f32.xlu0 %v4443
      %v4445 = vpop.xlane.xlu0 %4444
      %v4446 = vsel %vm508, %v4214, 0.0
      %4447 = vadd.xlane.f32.xlu0 %v4446
      %v4448 = vpop.xlane.xlu0 %4447
      %v4449 = vsel %vm508, %v4215, 0.0
      %4450 = vadd.xlane.f32.xlu0 %v4449
      %v4451 = vpop.xlane.xlu0 %4450
      %v4452 = vsel %vm508, %v4216, 0.0
      %4453 = vadd.xlane.f32.xlu0 %v4452
      %v4454 = vpop.xlane.xlu0 %4453
      %v4455 = vsel %vm508, %v4217, 0.0
      %4456 = vadd.xlane.f32.xlu0 %v4455
      %v4457 = vpop.xlane.xlu0 %4456
      %v4458 = vsel %vm508, %v4218, 0.0
      %4459 = vadd.xlane.f32.xlu0 %v4458
      %v4460 = vpop.xlane.xlu0 %4459
      %v4461 = vsel %vm508, %v4219, 0.0
      %4462 = vadd.xlane.f32.xlu0 %v4461
      %v4463 = vpop.xlane.xlu0 %4462
      %v4464 = vsel %vm508, %v4220, 0.0
      %4465 = vadd.xlane.f32.xlu0 %v4464
      %v4466 = vpop.xlane.xlu0 %4465
      %v4467 = vsel %vm508, %v4221, 0.0
      %4468 = vadd.xlane.f32.xlu0 %v4467
      %v4469 = vpop.xlane.xlu0 %4468
      %v4470 = vsel %vm508, %v4222, 0.0
      %4471 = vadd.xlane.f32.xlu0 %v4470
      %v4472 = vpop.xlane.xlu0 %4471
      %v4473 = vsel %vm508, %v4223, 0.0
      %4474 = vadd.xlane.f32.xlu0 %v4473
      %v4475 = vpop.xlane.xlu0 %4474
      %v4476 = vsel %vm508, %v4224, 0.0
      %4477 = vadd.xlane.f32.xlu0 %v4476
      %v4478 = vpop.xlane.xlu0 %4477
      %v4479 = vsel %vm508, %v4225, 0.0
      %4480 = vadd.xlane.f32.xlu0 %v4479
      %v4481 = vpop.xlane.xlu0 %4480
      %v4482 = vsel %vm508, %v4226, 0.0
      %4483 = vadd.xlane.f32.xlu0 %v4482
      %v4484 = vpop.xlane.xlu0 %4483
      %v4485 = vsel %vm508, %v4227, 0.0
      %4486 = vadd.xlane.f32.xlu0 %v4485
      %v4487 = vpop.xlane.xlu0 %4486
      %v4488 = vsel %vm508, %v4228, 0.0
      %4489 = vadd.xlane.f32.xlu0 %v4488
      %v4490 = vpop.xlane.xlu0 %4489
      %v4491 = vsel %vm508, %v4229, 0.0
      %4492 = vadd.xlane.f32.xlu0 %v4491
      %v4493 = vpop.xlane.xlu0 %4492
      %v4494 = vsel %vm508, %v4230, 0.0
      %4495 = vadd.xlane.f32.xlu0 %v4494
      %v4496 = vpop.xlane.xlu0 %4495
      %v4497 = vsel %vm508, %v4231, 0.0
      %4498 = vadd.xlane.f32.xlu0 %v4497
      %v4499 = vpop.xlane.xlu0 %4498
      %v4500 = vsel %vm508, %v4232, 0.0
      %4501 = vadd.xlane.f32.xlu0 %v4500
      %v4502 = vpop.xlane.xlu0 %4501
      %v4503 = vsel %vm508, %v4233, 0.0
      %4504 = vadd.xlane.f32.xlu0 %v4503
      %v4505 = vpop.xlane.xlu0 %4504
      %v4506 = vsel %vm508, %v4234, 0.0
      %4507 = vadd.xlane.f32.xlu0 %v4506
      %v4508 = vpop.xlane.xlu0 %4507
      %v4509 = vsel %vm508, %v4235, 0.0
      %4510 = vadd.xlane.f32.xlu0 %v4509
      %v4511 = vpop.xlane.xlu0 %4510
      %v4512 = vsel %vm508, %v4236, 0.0
      %4513 = vadd.xlane.f32.xlu0 %v4512
      %v4514 = vpop.xlane.xlu0 %4513
      %v4515 = vsel %vm508, %v4237, 0.0
      %4516 = vadd.xlane.f32.xlu0 %v4515
      %v4517 = vpop.xlane.xlu0 %4516
      %v4518 = vsel %vm508, %v4238, 0.0
      %4519 = vadd.xlane.f32.xlu0 %v4518
      %v4520 = vpop.xlane.xlu0 %4519
      %v4521 = vsel %vm508, %v4239, 0.0
      %4522 = vadd.xlane.f32.xlu0 %v4521
      %v4523 = vpop.xlane.xlu0 %4522
      %v4524 = vsel %vm508, %v4240, 0.0
      %4525 = vadd.xlane.f32.xlu0 %v4524
      %v4526 = vpop.xlane.xlu0 %4525
      %v4527 = vsel %vm508, %v4241, 0.0
      %4528 = vadd.xlane.f32.xlu0 %v4527
      %v4529 = vpop.xlane.xlu0 %4528
      %v4626 = vlaneseq
      %v4627 = vshrl.u32 %v4626, 7
      %v4628 = vsub.s32 %v1399, %v4627
      %v4629 = vrot.slane %v4244, %v4628
      %v4630 = vlaneseq
      %v4631 = vshrl.u32 %v4630, 7
      %v4632 = vsub.s32 %v1504, %v4631
      %v4633 = vrot.slane %v4247, %v4632
      %v4634 = vsel %vm1509, %v4633, %v4629
      %v4635 = vlaneseq
      %v4636 = vshrl.u32 %v4635, 7
      %v4637 = vsub.s32 %v1511, %v4636
      %v4638 = vrot.slane %v4250, %v4637
      %v4639 = vsel %vm1516, %v4638, %v4634
      %v4640 = vlaneseq
      %v4641 = vshrl.u32 %v4640, 7
      %v4642 = vsub.s32 %v1518, %v4641
      %v4643 = vrot.slane %v4253, %v4642
      %v4644 = vsel %vm1523, %v4643, %v4639
      %v4645 = vlaneseq
      %v4646 = vshrl.u32 %v4645, 7
      %v4647 = vsub.s32 %v1525, %v4646
      %v4648 = vrot.slane %v4256, %v4647
      %v4649 = vsel %vm1530, %v4648, %v4644
      %v4650 = vlaneseq
      %v4651 = vshrl.u32 %v4650, 7
      %v4652 = vsub.s32 %v1532, %v4651
      %v4653 = vrot.slane %v4259, %v4652
      %v4654 = vsel %vm1537, %v4653, %v4649
      %v4655 = vlaneseq
      %v4656 = vshrl.u32 %v4655, 7
      %v4657 = vsub.s32 %v1539, %v4656
      %v4658 = vrot.slane %v4262, %v4657
      %v4659 = vsel %vm1544, %v4658, %v4654
      %v4660 = vlaneseq
      %v4661 = vshrl.u32 %v4660, 7
      %v4662 = vsub.s32 %v1546, %v4661
      %v4663 = vrot.slane %v4265, %v4662
      %v4664 = vsel %vm1551, %v4663, %v4659
      %v4665 = vlaneseq
      %v4666 = vshrl.u32 %v4665, 7
      %v4667 = vsub.s32 %v1553, %v4666
      %v4668 = vrot.slane %v4268, %v4667
      %v4669 = vsel %vm1558, %v4668, %v4664
      %v4670 = vlaneseq
      %v4671 = vshrl.u32 %v4670, 7
      %v4672 = vsub.s32 %v1560, %v4671
      %v4673 = vrot.slane %v4271, %v4672
      %v4674 = vsel %vm1565, %v4673, %v4669
      %v4675 = vlaneseq
      %v4676 = vshrl.u32 %v4675, 7
      %v4677 = vsub.s32 %v1567, %v4676
      %v4678 = vrot.slane %v4274, %v4677
      %v4679 = vsel %vm1572, %v4678, %v4674
      %v4680 = vlaneseq
      %v4681 = vshrl.u32 %v4680, 7
      %v4682 = vsub.s32 %v1574, %v4681
      %v4683 = vrot.slane %v4277, %v4682
      %v4684 = vsel %vm1579, %v4683, %v4679
      %v4685 = vlaneseq
      %v4686 = vshrl.u32 %v4685, 7
      %v4687 = vsub.s32 %v1581, %v4686
      %v4688 = vrot.slane %v4280, %v4687
      %v4689 = vsel %vm1586, %v4688, %v4684
      %v4690 = vlaneseq
      %v4691 = vshrl.u32 %v4690, 7
      %v4692 = vsub.s32 %v1588, %v4691
      %v4693 = vrot.slane %v4283, %v4692
      %v4694 = vsel %vm1593, %v4693, %v4689
      %v4695 = vlaneseq
      %v4696 = vshrl.u32 %v4695, 7
      %v4697 = vsub.s32 %v1595, %v4696
      %v4698 = vrot.slane %v4286, %v4697
      %v4699 = vsel %vm1600, %v4698, %v4694
      %v4700 = vlaneseq
      %v4701 = vshrl.u32 %v4700, 7
      %v4702 = vsub.s32 %v1602, %v4701
      %v4703 = vrot.slane %v4289, %v4702
      %v4704 = vsel %vm1607, %v4703, %v4699
      %v4705 = vlaneseq
      %v4706 = vshrl.u32 %v4705, 7
      %v4707 = vsub.s32 %v1399, %v4706
      %v4708 = vrot.slane %v4292, %v4707
      %v4709 = vlaneseq
      %v4710 = vshrl.u32 %v4709, 7
      %v4711 = vsub.s32 %v1504, %v4710
      %v4712 = vrot.slane %v4295, %v4711
      %v4713 = vsel %vm1509, %v4712, %v4708
      %v4714 = vlaneseq
      %v4715 = vshrl.u32 %v4714, 7
      %v4716 = vsub.s32 %v1511, %v4715
      %v4717 = vrot.slane %v4298, %v4716
      %v4718 = vsel %vm1516, %v4717, %v4713
      %v4719 = vlaneseq
      %v4720 = vshrl.u32 %v4719, 7
      %v4721 = vsub.s32 %v1518, %v4720
      %v4722 = vrot.slane %v4301, %v4721
      %v4723 = vsel %vm1523, %v4722, %v4718
      %v4724 = vlaneseq
      %v4725 = vshrl.u32 %v4724, 7
      %v4726 = vsub.s32 %v1525, %v4725
      %v4727 = vrot.slane %v4304, %v4726
      %v4728 = vsel %vm1530, %v4727, %v4723
      %v4729 = vlaneseq
      %v4730 = vshrl.u32 %v4729, 7
      %v4731 = vsub.s32 %v1532, %v4730
      %v4732 = vrot.slane %v4307, %v4731
      %v4733 = vsel %vm1537, %v4732, %v4728
      %v4734 = vlaneseq
      %v4735 = vshrl.u32 %v4734, 7
      %v4736 = vsub.s32 %v1539, %v4735
      %v4737 = vrot.slane %v4310, %v4736
      %v4738 = vsel %vm1544, %v4737, %v4733
      %v4739 = vlaneseq
      %v4740 = vshrl.u32 %v4739, 7
      %v4741 = vsub.s32 %v1546, %v4740
      %v4742 = vrot.slane %v4313, %v4741
      %v4743 = vsel %vm1551, %v4742, %v4738
      %v4744 = vlaneseq
      %v4745 = vshrl.u32 %v4744, 7
      %v4746 = vsub.s32 %v1553, %v4745
      %v4747 = vrot.slane %v4316, %v4746
      %v4748 = vsel %vm1558, %v4747, %v4743
      %v4749 = vlaneseq
      %v4750 = vshrl.u32 %v4749, 7
      %v4751 = vsub.s32 %v1560, %v4750
      %v4752 = vrot.slane %v4319, %v4751
      %v4753 = vsel %vm1565, %v4752, %v4748
      %v4754 = vlaneseq
      %v4755 = vshrl.u32 %v4754, 7
      %v4756 = vsub.s32 %v1567, %v4755
      %v4757 = vrot.slane %v4322, %v4756
      %v4758 = vsel %vm1572, %v4757, %v4753
      %v4759 = vlaneseq
      %v4760 = vshrl.u32 %v4759, 7
      %v4761 = vsub.s32 %v1574, %v4760
      %v4762 = vrot.slane %v4325, %v4761
      %v4763 = vsel %vm1579, %v4762, %v4758
      %v4764 = vlaneseq
      %v4765 = vshrl.u32 %v4764, 7
      %v4766 = vsub.s32 %v1581, %v4765
      %v4767 = vrot.slane %v4328, %v4766
      %v4768 = vsel %vm1586, %v4767, %v4763
      %v4769 = vlaneseq
      %v4770 = vshrl.u32 %v4769, 7
      %v4771 = vsub.s32 %v1588, %v4770
      %v4772 = vrot.slane %v4331, %v4771
      %v4773 = vsel %vm1593, %v4772, %v4768
      %v4774 = vlaneseq
      %v4775 = vshrl.u32 %v4774, 7
      %v4776 = vsub.s32 %v1595, %v4775
      %v4777 = vrot.slane %v4334, %v4776
      %v4778 = vsel %vm1600, %v4777, %v4773
      %v4779 = vlaneseq
      %v4780 = vshrl.u32 %v4779, 7
      %v4781 = vsub.s32 %v1602, %v4780
      %v4782 = vrot.slane %v4337, %v4781
      %v4783 = vsel %vm1607, %v4782, %v4778
      %v4784 = vlaneseq
      %v4785 = vshrl.u32 %v4784, 7
      %v4786 = vsub.s32 %v1399, %v4785
      %v4787 = vrot.slane %v4340, %v4786
      %v4788 = vlaneseq
      %v4789 = vshrl.u32 %v4788, 7
      %v4790 = vsub.s32 %v1504, %v4789
      %v4791 = vrot.slane %v4343, %v4790
      %v4792 = vsel %vm1509, %v4791, %v4787
      %v4793 = vlaneseq
      %v4794 = vshrl.u32 %v4793, 7
      %v4795 = vsub.s32 %v1511, %v4794
      %v4796 = vrot.slane %v4346, %v4795
      %v4797 = vsel %vm1516, %v4796, %v4792
      %v4798 = vlaneseq
      %v4799 = vshrl.u32 %v4798, 7
      %v4800 = vsub.s32 %v1518, %v4799
      %v4801 = vrot.slane %v4349, %v4800
      %v4802 = vsel %vm1523, %v4801, %v4797
      %v4803 = vlaneseq
      %v4804 = vshrl.u32 %v4803, 7
      %v4805 = vsub.s32 %v1525, %v4804
      %v4806 = vrot.slane %v4352, %v4805
      %v4807 = vsel %vm1530, %v4806, %v4802
      %v4808 = vlaneseq
      %v4809 = vshrl.u32 %v4808, 7
      %v4810 = vsub.s32 %v1532, %v4809
      %v4811 = vrot.slane %v4355, %v4810
      %v4812 = vsel %vm1537, %v4811, %v4807
      %v4813 = vlaneseq
      %v4814 = vshrl.u32 %v4813, 7
      %v4815 = vsub.s32 %v1539, %v4814
      %v4816 = vrot.slane %v4358, %v4815
      %v4817 = vsel %vm1544, %v4816, %v4812
      %v4818 = vlaneseq
      %v4819 = vshrl.u32 %v4818, 7
      %v4820 = vsub.s32 %v1546, %v4819
      %v4821 = vrot.slane %v4361, %v4820
      %v4822 = vsel %vm1551, %v4821, %v4817
      %v4823 = vlaneseq
      %v4824 = vshrl.u32 %v4823, 7
      %v4825 = vsub.s32 %v1553, %v4824
      %v4826 = vrot.slane %v4364, %v4825
      %v4827 = vsel %vm1558, %v4826, %v4822
      %v4828 = vlaneseq
      %v4829 = vshrl.u32 %v4828, 7
      %v4830 = vsub.s32 %v1560, %v4829
      %v4831 = vrot.slane %v4367, %v4830
      %v4832 = vsel %vm1565, %v4831, %v4827
      %v4833 = vlaneseq
      %v4834 = vshrl.u32 %v4833, 7
      %v4835 = vsub.s32 %v1567, %v4834
      %v4836 = vrot.slane %v4370, %v4835
      %v4837 = vsel %vm1572, %v4836, %v4832
      %v4838 = vlaneseq
      %v4839 = vshrl.u32 %v4838, 7
      %v4840 = vsub.s32 %v1574, %v4839
      %v4841 = vrot.slane %v4373, %v4840
      %v4842 = vsel %vm1579, %v4841, %v4837
      %v4843 = vlaneseq
      %v4844 = vshrl.u32 %v4843, 7
      %v4845 = vsub.s32 %v1581, %v4844
      %v4846 = vrot.slane %v4376, %v4845
      %v4847 = vsel %vm1586, %v4846, %v4842
      %v4848 = vlaneseq
      %v4849 = vshrl.u32 %v4848, 7
      %v4850 = vsub.s32 %v1588, %v4849
      %v4851 = vrot.slane %v4379, %v4850
      %v4852 = vsel %vm1593, %v4851, %v4847
      %v4853 = vlaneseq
      %v4854 = vshrl.u32 %v4853, 7
      %v4855 = vsub.s32 %v1595, %v4854
      %v4856 = vrot.slane %v4382, %v4855
      %v4857 = vsel %vm1600, %v4856, %v4852
      %v4858 = vlaneseq
      %v4859 = vshrl.u32 %v4858, 7
      %v4860 = vsub.s32 %v1602, %v4859
      %v4861 = vrot.slane %v4385, %v4860
      %v4862 = vsel %vm1607, %v4861, %v4857
      %v4863 = vlaneseq
      %v4864 = vshrl.u32 %v4863, 7
      %v4865 = vsub.s32 %v1399, %v4864
      %v4866 = vrot.slane %v4388, %v4865
      %v4867 = vlaneseq
      %v4868 = vshrl.u32 %v4867, 7
      %v4869 = vsub.s32 %v1504, %v4868
      %v4870 = vrot.slane %v4391, %v4869
      %v4871 = vsel %vm1509, %v4870, %v4866
      %v4872 = vlaneseq
      %v4873 = vshrl.u32 %v4872, 7
      %v4874 = vsub.s32 %v1511, %v4873
      %v4875 = vrot.slane %v4394, %v4874
      %v4876 = vsel %vm1516, %v4875, %v4871
      %v4877 = vlaneseq
      %v4878 = vshrl.u32 %v4877, 7
      %v4879 = vsub.s32 %v1518, %v4878
      %v4880 = vrot.slane %v4397, %v4879
      %v4881 = vsel %vm1523, %v4880, %v4876
      %v4882 = vlaneseq
      %v4883 = vshrl.u32 %v4882, 7
      %v4884 = vsub.s32 %v1525, %v4883
      %v4885 = vrot.slane %v4400, %v4884
      %v4886 = vsel %vm1530, %v4885, %v4881
      %v4887 = vlaneseq
      %v4888 = vshrl.u32 %v4887, 7
      %v4889 = vsub.s32 %v1532, %v4888
      %v4890 = vrot.slane %v4403, %v4889
      %v4891 = vsel %vm1537, %v4890, %v4886
      %v4892 = vlaneseq
      %v4893 = vshrl.u32 %v4892, 7
      %v4894 = vsub.s32 %v1539, %v4893
      %v4895 = vrot.slane %v4406, %v4894
      %v4896 = vsel %vm1544, %v4895, %v4891
      %v4897 = vlaneseq
      %v4898 = vshrl.u32 %v4897, 7
      %v4899 = vsub.s32 %v1546, %v4898
      %v4900 = vrot.slane %v4409, %v4899
      %v4901 = vsel %vm1551, %v4900, %v4896
      %v4902 = vlaneseq
      %v4903 = vshrl.u32 %v4902, 7
      %v4904 = vsub.s32 %v1553, %v4903
      %v4905 = vrot.slane %v4412, %v4904
      %v4906 = vsel %vm1558, %v4905, %v4901
      %v4907 = vlaneseq
      %v4908 = vshrl.u32 %v4907, 7
      %v4909 = vsub.s32 %v1560, %v4908
      %v4910 = vrot.slane %v4415, %v4909
      %v4911 = vsel %vm1565, %v4910, %v4906
      %v4912 = vlaneseq
      %v4913 = vshrl.u32 %v4912, 7
      %v4914 = vsub.s32 %v1567, %v4913
      %v4915 = vrot.slane %v4418, %v4914
      %v4916 = vsel %vm1572, %v4915, %v4911
      %v4917 = vlaneseq
      %v4918 = vshrl.u32 %v4917, 7
      %v4919 = vsub.s32 %v1574, %v4918
      %v4920 = vrot.slane %v4421, %v4919
      %v4921 = vsel %vm1579, %v4920, %v4916
      %v4922 = vlaneseq
      %v4923 = vshrl.u32 %v4922, 7
      %v4924 = vsub.s32 %v1581, %v4923
      %v4925 = vrot.slane %v4424, %v4924
      %v4926 = vsel %vm1586, %v4925, %v4921
      %v4927 = vlaneseq
      %v4928 = vshrl.u32 %v4927, 7
      %v4929 = vsub.s32 %v1588, %v4928
      %v4930 = vrot.slane %v4427, %v4929
      %v4931 = vsel %vm1593, %v4930, %v4926
      %v4932 = vlaneseq
      %v4933 = vshrl.u32 %v4932, 7
      %v4934 = vsub.s32 %v1595, %v4933
      %v4935 = vrot.slane %v4430, %v4934
      %v4936 = vsel %vm1600, %v4935, %v4931
      %v4937 = vlaneseq
      %v4938 = vshrl.u32 %v4937, 7
      %v4939 = vsub.s32 %v1602, %v4938
      %v4940 = vrot.slane %v4433, %v4939
      %v4941 = vsel %vm1607, %v4940, %v4936
      %v4942 = vlaneseq
      %v4943 = vshrl.u32 %v4942, 7
      %v4944 = vsub.s32 %v1399, %v4943
      %v4945 = vrot.slane %v4436, %v4944
      %v4946 = vlaneseq
      %v4947 = vshrl.u32 %v4946, 7
      %v4948 = vsub.s32 %v1504, %v4947
      %v4949 = vrot.slane %v4439, %v4948
      %v4950 = vsel %vm1509, %v4949, %v4945
      %v4951 = vlaneseq
      %v4952 = vshrl.u32 %v4951, 7
      %v4953 = vsub.s32 %v1511, %v4952
      %v4954 = vrot.slane %v4442, %v4953
      %v4955 = vsel %vm1516, %v4954, %v4950
      %v4956 = vlaneseq
      %v4957 = vshrl.u32 %v4956, 7
      %v4958 = vsub.s32 %v1518, %v4957
      %v4959 = vrot.slane %v4445, %v4958
      %v4960 = vsel %vm1523, %v4959, %v4955
      %v4961 = vlaneseq
      %v4962 = vshrl.u32 %v4961, 7
      %v4963 = vsub.s32 %v1525, %v4962
      %v4964 = vrot.slane %v4448, %v4963
      %v4965 = vsel %vm1530, %v4964, %v4960
      %v4966 = vlaneseq
      %v4967 = vshrl.u32 %v4966, 7
      %v4968 = vsub.s32 %v1532, %v4967
      %v4969 = vrot.slane %v4451, %v4968
      %v4970 = vsel %vm1537, %v4969, %v4965
      %v4971 = vlaneseq
      %v4972 = vshrl.u32 %v4971, 7
      %v4973 = vsub.s32 %v1539, %v4972
      %v4974 = vrot.slane %v4454, %v4973
      %v4975 = vsel %vm1544, %v4974, %v4970
      %v4976 = vlaneseq
      %v4977 = vshrl.u32 %v4976, 7
      %v4978 = vsub.s32 %v1546, %v4977
      %v4979 = vrot.slane %v4457, %v4978
      %v4980 = vsel %vm1551, %v4979, %v4975
      %v4981 = vlaneseq
      %v4982 = vshrl.u32 %v4981, 7
      %v4983 = vsub.s32 %v1553, %v4982
      %v4984 = vrot.slane %v4460, %v4983
      %v4985 = vsel %vm1558, %v4984, %v4980
      %v4986 = vlaneseq
      %v4987 = vshrl.u32 %v4986, 7
      %v4988 = vsub.s32 %v1560, %v4987
      %v4989 = vrot.slane %v4463, %v4988
      %v4990 = vsel %vm1565, %v4989, %v4985
      %v4991 = vlaneseq
      %v4992 = vshrl.u32 %v4991, 7
      %v4993 = vsub.s32 %v1567, %v4992
      %v4994 = vrot.slane %v4466, %v4993
      %v4995 = vsel %vm1572, %v4994, %v4990
      %v4996 = vlaneseq
      %v4997 = vshrl.u32 %v4996, 7
      %v4998 = vsub.s32 %v1574, %v4997
      %v4999 = vrot.slane %v4469, %v4998
      %v5000 = vsel %vm1579, %v4999, %v4995
      %v5001 = vlaneseq
      %v5002 = vshrl.u32 %v5001, 7
      %v5003 = vsub.s32 %v1581, %v5002
      %v5004 = vrot.slane %v4472, %v5003
      %v5005 = vsel %vm1586, %v5004, %v5000
      %v5006 = vlaneseq
      %v5007 = vshrl.u32 %v5006, 7
      %v5008 = vsub.s32 %v1588, %v5007
      %v5009 = vrot.slane %v4475, %v5008
      %v5010 = vsel %vm1593, %v5009, %v5005
      %v5011 = vlaneseq
      %v5012 = vshrl.u32 %v5011, 7
      %v5013 = vsub.s32 %v1595, %v5012
      %v5014 = vrot.slane %v4478, %v5013
      %v5015 = vsel %vm1600, %v5014, %v5010
      %v5016 = vlaneseq
      %v5017 = vshrl.u32 %v5016, 7
      %v5018 = vsub.s32 %v1602, %v5017
      %v5019 = vrot.slane %v4481, %v5018
      %v5020 = vsel %vm1607, %v5019, %v5015
      %v5021 = vlaneseq
      %v5022 = vshrl.u32 %v5021, 7
      %v5023 = vsub.s32 %v1399, %v5022
      %v5024 = vrot.slane %v4484, %v5023
      %v5025 = vlaneseq
      %v5026 = vshrl.u32 %v5025, 7
      %v5027 = vsub.s32 %v1504, %v5026
      %v5028 = vrot.slane %v4487, %v5027
      %v5029 = vsel %vm1509, %v5028, %v5024
      %v5030 = vlaneseq
      %v5031 = vshrl.u32 %v5030, 7
      %v5032 = vsub.s32 %v1511, %v5031
      %v5033 = vrot.slane %v4490, %v5032
      %v5034 = vsel %vm1516, %v5033, %v5029
      %v5035 = vlaneseq
      %v5036 = vshrl.u32 %v5035, 7
      %v5037 = vsub.s32 %v1518, %v5036
      %v5038 = vrot.slane %v4493, %v5037
      %v5039 = vsel %vm1523, %v5038, %v5034
      %v5040 = vlaneseq
      %v5041 = vshrl.u32 %v5040, 7
      %v5042 = vsub.s32 %v1525, %v5041
      %v5043 = vrot.slane %v4496, %v5042
      %v5044 = vsel %vm1530, %v5043, %v5039
      %v5045 = vlaneseq
      %v5046 = vshrl.u32 %v5045, 7
      %v5047 = vsub.s32 %v1532, %v5046
      %v5048 = vrot.slane %v4499, %v5047
      %v5049 = vsel %vm1537, %v5048, %v5044
      %v5050 = vlaneseq
      %v5051 = vshrl.u32 %v5050, 7
      %v5052 = vsub.s32 %v1539, %v5051
      %v5053 = vrot.slane %v4502, %v5052
      %v5054 = vsel %vm1544, %v5053, %v5049
      %v5055 = vlaneseq
      %v5056 = vshrl.u32 %v5055, 7
      %v5057 = vsub.s32 %v1546, %v5056
      %v5058 = vrot.slane %v4505, %v5057
      %v5059 = vsel %vm1551, %v5058, %v5054
      %v5060 = vlaneseq
      %v5061 = vshrl.u32 %v5060, 7
      %v5062 = vsub.s32 %v1553, %v5061
      %v5063 = vrot.slane %v4508, %v5062
      %v5064 = vsel %vm1558, %v5063, %v5059
      %v5065 = vlaneseq
      %v5066 = vshrl.u32 %v5065, 7
      %v5067 = vsub.s32 %v1560, %v5066
      %v5068 = vrot.slane %v4511, %v5067
      %v5069 = vsel %vm1565, %v5068, %v5064
      %v5070 = vlaneseq
      %v5071 = vshrl.u32 %v5070, 7
      %v5072 = vsub.s32 %v1567, %v5071
      %v5073 = vrot.slane %v4514, %v5072
      %v5074 = vsel %vm1572, %v5073, %v5069
      %v5075 = vlaneseq
      %v5076 = vshrl.u32 %v5075, 7
      %v5077 = vsub.s32 %v1574, %v5076
      %v5078 = vrot.slane %v4517, %v5077
      %v5079 = vsel %vm1579, %v5078, %v5074
      %v5080 = vlaneseq
      %v5081 = vshrl.u32 %v5080, 7
      %v5082 = vsub.s32 %v1581, %v5081
      %v5083 = vrot.slane %v4520, %v5082
      %v5084 = vsel %vm1586, %v5083, %v5079
      %v5085 = vlaneseq
      %v5086 = vshrl.u32 %v5085, 7
      %v5087 = vsub.s32 %v1588, %v5086
      %v5088 = vrot.slane %v4523, %v5087
      %v5089 = vsel %vm1593, %v5088, %v5084
      %v5090 = vlaneseq
      %v5091 = vshrl.u32 %v5090, 7
      %v5092 = vsub.s32 %v1595, %v5091
      %v5093 = vrot.slane %v4526, %v5092
      %v5094 = vsel %vm1600, %v5093, %v5089
      %v5095 = vlaneseq
      %v5096 = vshrl.u32 %v5095, 7
      %v5097 = vsub.s32 %v1602, %v5096
      %v5098 = vrot.slane %v4529, %v5097
      %v5099 = vsel %vm1607, %v5098, %v5094
      %v5100 = vsel %vm2004, %v4783, %v4704
      %v5101 = vsel %vm2006, %v4862, %v5100
      %v5102 = vsel %vm2008, %v4941, %v5101
      %v5103 = vsel %vm2010, %v5020, %v5102
      %v5104 = vsel %vm2012, %v5099, %v5103
      %5106 = vst [vmem:[%s487] sm:$0x3f] %v5104
      %p5107 = scmp.lt.s32.totalorder %s36, 1
      %s5108 = scalar_select %p5107, %s36, 1
      %s5109 = smul.addr %s5108, 8
      %s5110 = scalar_lea.vmem %s15, %s5109
      // Predicated region
      $region73: #{lstm_pointer_net_forward.3} parent=71 // pred_check
        %p5111 = pneg %p342
      $region74: #{lstm_pointer_net_forward.3} parent=71 // pred_check_branch
        %5113 = sbr.rel (%p5111) target = $region76
      $region75: #{lstm_pointer_net_forward.3} parent=71 // pred_region
        _
      $region76: #{lstm_pointer_net_forward.3} parent=71 // pred_fallthru
        _
    $region72: #{lstm_pointer_net_forward.3} parent=5 // pred_fallthru
      _
    %p5114 = scmp.le.s32.totalorder 2, %s31
    // Predicated region
    $region77: #{lstm_pointer_net_forward.3} parent=5 // pred_check
      %p5115 = pneg %p5114
    $region78: #{lstm_pointer_net_forward.3} parent=5 // pred_check_branch
      %5117 = sbr.rel (%p5115) target = $region80
    $region79: #{lstm_pointer_net_forward.3} parent=5 // pred_region
      %s5118 = ssub.s32 %s31, 2
      // Predicated region
      $region81: #{lstm_pointer_net_forward.3} parent=79 // pred_check
        %p5119 = pneg %p348
      $region82: #{lstm_pointer_net_forward.3} parent=79 // pred_check_branch
        %5121 = sbr.rel (%p5119) target = $region84
      $region83: #{lstm_pointer_net_forward.3} parent=79 // pred_region
        %p5122 = scmp.lt.s32.totalorder %s37, 1
        %s5123 = scalar_select %p5122, %s37, 1
        %s5124 = smul.addr %s5123, 8
        %s5125 = scalar_lea.vmem %s15, %s5124
      $region84: #{lstm_pointer_net_forward.3} parent=79 // pred_fallthru
        _
    $region80: #{lstm_pointer_net_forward.3} parent=5 // pred_fallthru
      _
  $region6: #{lstm_pointer_net_forward.3} parent=0 // loop_footer
    %s35 = sadd.s32 1, %s31
  $region7: #{lstm_pointer_net_forward.3} parent=0 // loop_footer_branch
    %30 = sbr.rel target = $region3
  $region8: #{lstm_pointer_net_forward.3} parent=0 // loop_exit
    _

</llo_original>
